<compile_context>
chip_gen: v5e
topology: v5e:2x2
jax: 0.10.0
libtpu: 0.0.40
codegen_flags: <defaults>
</compile_context>

<pallas_src>
import functools

import numpy as np
import jax
import jax.numpy as jnp
from jax import lax
from jax.experimental import pallas as pl
from jax.experimental.pallas import tpu as pltpu


def _stable_expm1(v):
    # exp(v)-1 without cancellation for small |v|, built only from ops with
    # guaranteed Mosaic lowerings (tanh/exp on the EUP): expm1(v) = tanh(v/2)*(exp(v)+1).
    return jnp.tanh(0.5 * v) * (jnp.exp(v) + 1.0)


# ----------------------------------------------------------------------------
# Fused kernel: all layers of conv (same-padding, stride 1) + train-mode BN + ELU,
# channel-concatenated output, everything resident in VMEM.
# ----------------------------------------------------------------------------
def _fused_core_kernel(*refs, cfgs, n_imgs, c_total, Wb, F, pad_max, L_img,
                       count, eps, mxu_dtype):
    n_layers = len(cfgs)
    x_ref = refs[0]                                   # (N*Cin0, F) padded-flat input
    m_ref = refs[1]                                   # (1, N*L_img) validity mask
    w_refs = refs[2:2 + n_layers]                     # (Cout, K*K*Cin) per layer
    b_refs = refs[2 + n_layers:2 + 2 * n_layers]      # (Cout, 1)
    g_refs = refs[2 + 2 * n_layers:2 + 3 * n_layers]  # (Cout, 1) BN weight
    be_refs = refs[2 + 3 * n_layers:2 + 4 * n_layers]  # (Cout, 1) BN bias
    o_ref = refs[2 + 4 * n_layers]                    # (N*C_total, F) fused output
    p_ref = refs[3 + 4 * n_layers]                    # (K_rows_max, N*L_img) im2col scratch

    q0 = pad_max * Wb + pad_max

    # Zero the frame "ring" of the fused output once: these columns are never written
    # by the span stores below but are read as zero padding by the next layer's taps.
    if q0 > 0:
        o_ref[:, 0:q0] = jnp.zeros((o_ref.shape[0], q0), jnp.float32)
        o_ref[:, q0 + L_img:F] = jnp.zeros((o_ref.shape[0], F - q0 - L_img), jnp.float32)

    fmask = m_ref[...]                                # (1, N*L_img), 1.0 on valid columns
    inv_count = 1.0 / count

    ch_off = 0
    prev_off = 0
    for l, cfg in enumerate(cfgs):
        K, Cin, Cout, pad, use_elu = cfg["k"], cfg["cin"], cfg["cout"], cfg["pad"], cfg["elu"]
        nrows = K * K * Cin

        # ---- im2col (transposed): one contiguous lane-slice per (tap, image) ----
        for kh in range(K):
            for kw in range(K):
                t = kh * K + kw
                start = q0 + (kh - pad) * Wb + (kw - pad)
                for n in range(n_imgs):
                    if l == 0:
                        src = x_ref[n * Cin:(n + 1) * Cin, start:start + L_img]
                    else:
                        r0 = n * c_total + prev_off
                        src = o_ref[r0:r0 + Cin, start:start + L_img]
                    p_ref[t * Cin:(t + 1) * Cin, n * L_img:(n + 1) * L_img] = src

        # ---- one lane-dense MXU matmul per layer: (Cout, K*K*Cin) @ (K*K*Cin, N*L) ----
        patches = p_ref[0:nrows, :].astype(mxu_dtype)
        acc = jnp.dot(w_refs[l][...], patches, preferred_element_type=jnp.float32)
        acc = acc + b_refs[l][...]                    # conv bias (zeros for layer 0)

        # ---- BatchNorm2d, training batch stats (biased var), single masked pass ----
        am = acc * fmask
        s1 = jnp.sum(am, axis=1, keepdims=True)        # (Cout, 1)  sum over valid cols
        s2 = jnp.sum(am * acc, axis=1, keepdims=True)  # (Cout, 1)  sum of squares
        mean = s1 * inv_count
        var = s2 * inv_count - mean * mean
        y = (acc - mean) * lax.rsqrt(var + eps)
        y = y * g_refs[l][...] + be_refs[l][...]

        if use_elu:                                    # AdaptiveELU(0,0) == ELU(alpha=1)
            y = jnp.where(y > 0.0, y, _stable_expm1(y))

        # Zero the garbage / padding columns so they serve as the next layer's zeros.
        y = y * fmask

        # ---- write this layer's channel slab of the fused, padded, CHW-first output ----
        for n in range(n_imgs):
            r0 = n * c_total + ch_off
            o_ref[r0:r0 + Cout, q0:q0 + L_img] = y[:, n * L_img:(n + 1) * L_img]

        prev_off = ch_off
        ch_off += Cout


# ----------------------------------------------------------------------------
# Wrapper: prepares the flat-frame input / per-layer weights and calls the kernel.
# ----------------------------------------------------------------------------
def stacked2d_core_forward(x_nchw, params, *, final_nonlinearity=True, linear=False,
                           stack=None, mxu_dtype=jnp.bfloat16, eps=1e-5):
    if stack is not None:
        raise NotImplementedError("only stack=None (concat all layers) is implemented")

    N, C0, H, W = x_nchw.shape
    n_layers = len(params)

    ks = [int(p["w"].shape[0]) for p in params]
    pads = [int(p["pad"]) for p in params]
    for k, pad in zip(ks, pads):
        assert pad == k // 2, "fused kernel assumes 'same' convs (stride=1, dilation=1)"

    pad_max = max(pads)
    Hb, Wb = H + 2 * pad_max, W + 2 * pad_max
    F = Hb * Wb                       # flat size of one padded image frame
    q0 = pad_max * Wb + pad_max       # flat offset of output pixel (0, 0) inside a frame
    L_img = (H - 1) * Wb + W          # flat span of output pixels inside a frame
    c_total = sum(int(p["w"].shape[-1]) for p in params)

    # ---- tiny host-side prep: pad the input ONCE into the flat frame layout ----
    x2 = jnp.pad(x_nchw.reshape(N * C0, H, W),
                 ((0, 0), (pad_max, pad_max), (pad_max, pad_max))).reshape(N * C0, F)

    # validity mask over the N*L_img output columns (compile-time constant)
    jj = np.arange(N * L_img)
    cc = (q0 + (jj % L_img)) % Wb
    mask_np = ((cc >= pad_max) & (cc < pad_max + W)).astype(np.float32)[None, :]
    assert int(mask_np.sum()) == N * H * W
    fmask = jnp.asarray(mask_np)

    cfgs, w2s, bs, gs, bes = [], [], [], [], []
    cin = C0
    for l, p in enumerate(params):
        kh, kw, wcin, cout = p["w"].shape
        assert kh == kw and wcin == cin
        use_elu = (not linear) and ((l != n_layers - 1) or final_nonlinearity)
        cfgs.append(dict(k=int(kh), cin=int(cin), cout=int(cout), pad=pads[l], elu=use_elu))
        # weight (KH,KW,Cin,Cout) -> (Cout, KH*KW*Cin), rows ordered (kh,kw,cin)
        w2s.append(jnp.asarray(p["w"]).reshape(kh * kw * cin, cout).T.astype(mxu_dtype))
        bs.append(p["b"].reshape(cout, 1).astype(jnp.float32))
        gs.append(p["gamma"].reshape(cout, 1).astype(jnp.float32))
        bes.append(p["beta"].reshape(cout, 1).astype(jnp.float32))
        cin = cout

    k_rows_max = max(c["k"] * c["k"] * c["cin"] for c in cfgs)

    kernel = functools.partial(
        _fused_core_kernel, cfgs=cfgs, n_imgs=N, c_total=c_total, Wb=Wb, F=F,
        pad_max=pad_max, L_img=L_img, count=float(N * H * W), eps=eps,
        mxu_dtype=mxu_dtype)

    def full2d(shape):
        return pl.BlockSpec(shape, lambda i: (0, 0))

    in_specs = [full2d(x2.shape), full2d(fmask.shape)]
    in_specs += [full2d(w.shape) for w in w2s]
    in_specs += [full2d(b.shape) for b in bs]
    in_specs += [full2d(g.shape) for g in gs]
    in_specs += [full2d(b_.shape) for b_ in bes]

    out_flat = pl.pallas_call(
        kernel,
        out_shape=jax.ShapeDtypeStruct((N * c_total, F), jnp.float32),
        grid=(1,),
        in_specs=in_specs,
        out_specs=full2d((N * c_total, F)),
        scratch_shapes=[pltpu.VMEM((k_rows_max, N * L_img), jnp.float32)],
        compiler_params=pltpu.CompilerParams(dimension_semantics=("arbitrary",)),
    )(x2, fmask, *w2s, *bs, *gs, *bes)

    # Output is already (n, channel)-major (NCHW order); just drop the padding ring.
    out = out_flat.reshape(N, c_total, Hb, Wb)[:, :, pad_max:pad_max + H, pad_max:pad_max + W]
    return out


# ----------------------------------------------------------------------------
# Parameter construction (matches the module defaults)
# ----------------------------------------------------------------------------
def init_params(key, *, input_channels=4, hidden_channels=16, input_kern=5,
                hidden_kern=3, layers=3, hidden_dilation=1):
    hidden = [hidden_channels] * layers
    params = []
    cin = input_channels
    for l in range(layers):
        k = input_kern if l == 0 else hidden_kern
        cout = hidden[l]
        key, kw_, kb_, kg_, kbe_ = jax.random.split(key, 5)
        scale = 1.0 / (cin * k * k) ** 0.5
        w = jax.random.normal(kw_, (k, k, cin, cout), jnp.float32) * scale
        # layer 0: conv bias = (bias and not batch_norm) == False  -> zeros
        b = (jnp.zeros((cout,), jnp.float32) if l == 0
             else 0.1 * jax.random.normal(kb_, (cout,), jnp.float32))
        gamma = 1.0 + 0.1 * jax.random.normal(kg_, (cout,), jnp.float32)  # BN weight
        beta = 0.1 * jax.random.normal(kbe_, (cout,), jnp.float32)        # BN bias
        pad = (k // 2) if l == 0 else ((k - 1) * hidden_dilation + 1) // 2
        params.append(dict(w=w, b=b, gamma=gamma, beta=beta, pad=pad))
        cin = cout
    return params


# ----------------------------------------------------------------------------
# Pure-JAX reference (correctness check only)
# ----------------------------------------------------------------------------
def _reference_forward(x_nchw, params, *, final_nonlinearity=True, eps=1e-5):
    x = jnp.transpose(x_nchw, (0, 2, 3, 1))
    num_layers = len(params)
    ret = []
    for l, p in enumerate(params):
        out = lax.conv_general_dilated(
            x, p["w"], window_strides=(1, 1),
            padding=[(p["pad"], p["pad"]), (p["pad"], p["pad"])],
            dimension_numbers=("NHWC", "HWIO", "NHWC"))
        out = out + p["b"]
        mean = out.mean(axis=(0, 1, 2), keepdims=True)
        var = out.var(axis=(0, 1, 2), keepdims=True)
        y = (out - mean) / jnp.sqrt(var + eps) * p["gamma"] + p["beta"]
        if (l != num_layers - 1) or final_nonlinearity:
            y = jnp.where(y > 0.0, y, jnp.expm1(y))
        x = y
        ret.append(y)
    out = jnp.concatenate(ret, axis=-1)
    return jnp.transpose(out, (0, 3, 1, 2))


if __name__ == "__main__":
    key = jax.random.PRNGKey(0)
    kx, kp = jax.random.split(key)

    # batch=2, input_channels=4, spatial 16x16, hidden_channels=16,
    # input_kern=5, hidden_kern=3, layers=3  ->  output (2, 48, 16, 16)
    x = jax.random.normal(kx, (2, 4, 16, 16), jnp.float32)   # NCHW, like PyTorch
    params = init_params(kp, input_channels=4, hidden_channels=16,
                         input_kern=5, hidden_kern=3, layers=3)

    ref = jax.block_until_ready(_reference_forward(x, params))

    # f32 MXU operands: tight correctness check
    fwd32 = jax.jit(lambda inp: stacked2d_core_forward(inp, params, mxu_dtype=jnp.float32))
    out32 = jax.block_until_ready(fwd32(x))
    assert out32.shape == (2, 48, 16, 16), out32.shape
    err32 = float(jnp.max(jnp.abs(out32 - ref)))
    assert jnp.allclose(out32, ref, atol=1e-2, rtol=1e-2), err32

    # bf16 MXU operands (default fast path for v6e/v7x): looser check
    fwd16 = jax.jit(lambda inp: stacked2d_core_forward(inp, params))
    out16 = jax.block_until_ready(fwd16(x))
    assert out16.shape == (2, 48, 16, 16), out16.shape
    err16 = float(jnp.max(jnp.abs(out16 - ref)))
    assert jnp.allclose(out16, ref, atol=3e-2, rtol=3e-2), err16

    print("KERNEL_OK")
</pallas_src>

<mosaic_0001>
module attributes {stable_mosaic.version = 11 : i64} {
  func.func @_fused_core_kernel(%arg0: i32, %arg1: memref<8x400xf32, #tpu.memory_space<vmem>>, %arg2: memref<1x632xf32, #tpu.memory_space<vmem>>, %arg3: memref<16x100xf32, #tpu.memory_space<vmem>>, %arg4: memref<16x144xf32, #tpu.memory_space<vmem>>, %arg5: memref<16x144xf32, #tpu.memory_space<vmem>>, %arg6: memref<16x1xf32, #tpu.memory_space<vmem>>, %arg7: memref<16x1xf32, #tpu.memory_space<vmem>>, %arg8: memref<16x1xf32, #tpu.memory_space<vmem>>, %arg9: memref<16x1xf32, #tpu.memory_space<vmem>>, %arg10: memref<16x1xf32, #tpu.memory_space<vmem>>, %arg11: memref<16x1xf32, #tpu.memory_space<vmem>>, %arg12: memref<16x1xf32, #tpu.memory_space<vmem>>, %arg13: memref<16x1xf32, #tpu.memory_space<vmem>>, %arg14: memref<16x1xf32, #tpu.memory_space<vmem>>, %arg15: memref<96x400xf32, #tpu.memory_space<vmem>>, %arg16: memref<144x632xf32, #tpu.memory_space<vmem>>) attributes {dimension_semantics = [#tpu.dimension_semantics<arbitrary>], iteration_bounds = array<i64: 1>, scalar_prefetch = 0 : i64, scratch_operands = 1 : i64, tpu.core_type = #tpu.core_type<tc>, window_params = [{pipeline_mode = #tpu.pipeline_mode<synchronous>, transform_indices = @transform_0, window_bounds = array<i64: 8, 400>}, {pipeline_mode = #tpu.pipeline_mode<synchronous>, transform_indices = @transform_1, window_bounds = array<i64: 1, 632>}, {pipeline_mode = #tpu.pipeline_mode<synchronous>, transform_indices = @transform_2, window_bounds = array<i64: 16, 100>}, {pipeline_mode = #tpu.pipeline_mode<synchronous>, transform_indices = @transform_3, window_bounds = array<i64: 16, 144>}, {pipeline_mode = #tpu.pipeline_mode<synchronous>, transform_indices = @transform_4, window_bounds = array<i64: 16, 144>}, {pipeline_mode = #tpu.pipeline_mode<synchronous>, transform_indices = @transform_5, window_bounds = array<i64: 16, 1>}, {pipeline_mode = #tpu.pipeline_mode<synchronous>, transform_indices = @transform_6, window_bounds = array<i64: 16, 1>}, {pipeline_mode = #tpu.pipeline_mode<synchronous>, transform_indices = @transform_7, window_bounds = array<i64: 16, 1>}, {pipeline_mode = #tpu.pipeline_mode<synchronous>, transform_indices = @transform_8, window_bounds = array<i64: 16, 1>}, {pipeline_mode = #tpu.pipeline_mode<synchronous>, transform_indices = @transform_9, window_bounds = array<i64: 16, 1>}, {pipeline_mode = #tpu.pipeline_mode<synchronous>, transform_indices = @transform_10, window_bounds = array<i64: 16, 1>}, {pipeline_mode = #tpu.pipeline_mode<synchronous>, transform_indices = @transform_11, window_bounds = array<i64: 16, 1>}, {pipeline_mode = #tpu.pipeline_mode<synchronous>, transform_indices = @transform_12, window_bounds = array<i64: 16, 1>}, {pipeline_mode = #tpu.pipeline_mode<synchronous>, transform_indices = @transform_13, window_bounds = array<i64: 16, 1>}, {pipeline_mode = #tpu.pipeline_mode<synchronous>, transform_indices = @transform_14, window_bounds = array<i64: 96, 400>}]} {
    %cst = arith.constant 0.000000e+00 : f32
    %0 = vector.broadcast %cst : f32 to vector<96x42xf32>
    %c0 = arith.constant 0 : index
    %c0_0 = arith.constant 0 : index
    %1 = vector.load %arg15[%c0, %c0_0] : memref<96x400xf32, #tpu.memory_space<vmem>>, vector<96x42xf32>
    tpu.vector_store %arg15[%c0, %c0_0], %0 {strides = array<i32>} : memref<96x400xf32, #tpu.memory_space<vmem>>, vector<96x42xf32>,
    %cst_1 = arith.constant 0.000000e+00 : f32
    %2 = vector.broadcast %cst_1 : f32 to vector<96x42xf32>
    %c0_2 = arith.constant 0 : index
    %c358 = arith.constant 358 : index
    %3 = vector.load %arg15[%c0_2, %c358] : memref<96x400xf32, #tpu.memory_space<vmem>>, vector<96x42xf32>
    tpu.vector_store %arg15[%c0_2, %c358], %2 {strides = array<i32>} : memref<96x400xf32, #tpu.memory_space<vmem>>, vector<96x42xf32>,
    %c0_3 = arith.constant 0 : index
    %c0_4 = arith.constant 0 : index
    %4 = vector.load %arg2[%c0_3, %c0_4] : memref<1x632xf32, #tpu.memory_space<vmem>>, vector<1x632xf32>
    %c0_5 = arith.constant 0 : index
    %c0_6 = arith.constant 0 : index
    %5 = vector.load %arg1[%c0_5, %c0_6] : memref<8x400xf32, #tpu.memory_space<vmem>>, vector<4x316xf32>
    %c0_7 = arith.constant 0 : index
    %c0_8 = arith.constant 0 : index
    %6 = vector.load %arg16[%c0_7, %c0_8] : memref<144x632xf32, #tpu.memory_space<vmem>>, vector<4x316xf32>
    tpu.vector_store %arg16[%c0_7, %c0_8], %5 {strides = array<i32>} : memref<144x632xf32, #tpu.memory_space<vmem>>, vector<4x316xf32>,
    %c4 = arith.constant 4 : index
    %c0_9 = arith.constant 0 : index
    %7 = vector.load %arg1[%c4, %c0_9] : memref<8x400xf32, #tpu.memory_space<vmem>>, vector<4x316xf32>
    %c0_10 = arith.constant 0 : index
    %c316 = arith.constant 316 : index
    %8 = vector.load %arg16[%c0_10, %c316] : memref<144x632xf32, #tpu.memory_space<vmem>>, vector<4x316xf32>
    tpu.vector_store %arg16[%c0_10, %c316], %7 {strides = array<i32>} : memref<144x632xf32, #tpu.memory_space<vmem>>, vector<4x316xf32>,
    %c0_11 = arith.constant 0 : index
    %c1 = arith.constant 1 : index
    %9 = vector.load %arg1[%c0_11, %c1] : memref<8x400xf32, #tpu.memory_space<vmem>>, vector<4x316xf32>
    %c4_12 = arith.constant 4 : index
    %c0_13 = arith.constant 0 : index
    %10 = vector.load %arg16[%c4_12, %c0_13] : memref<144x632xf32, #tpu.memory_space<vmem>>, vector<4x316xf32>
    tpu.vector_store %arg16[%c4_12, %c0_13], %9 {strides = array<i32>} : memref<144x632xf32, #tpu.memory_space<vmem>>, vector<4x316xf32>,
    %c4_14 = arith.constant 4 : index
    %c1_15 = arith.constant 1 : index
    %11 = vector.load %arg1[%c4_14, %c1_15] : memref<8x400xf32, #tpu.memory_space<vmem>>, vector<4x316xf32>
    %c4_16 = arith.constant 4 : index
    %c316_17 = arith.constant 316 : index
    %12 = vector.load %arg16[%c4_16, %c316_17] : memref<144x632xf32, #tpu.memory_space<vmem>>, vector<4x316xf32>
    tpu.vector_store %arg16[%c4_16, %c316_17], %11 {strides = array<i32>} : memref<144x632xf32, #tpu.memory_space<vmem>>, vector<4x316xf32>,
    %c0_18 = arith.constant 0 : index
    %c2 = arith.constant 2 : index
    %13 = vector.load %arg1[%c0_18, %c2] : memref<8x400xf32, #tpu.memory_space<vmem>>, vector<4x316xf32>
    %c8 = arith.constant 8 : index
    %c0_19 = arith.constant 0 : index
    %14 = vector.load %arg16[%c8, %c0_19] : memref<144x632xf32, #tpu.memory_space<vmem>>, vector<4x316xf32>
    tpu.vector_store %arg16[%c8, %c0_19], %13 {strides = array<i32>} : memref<144x632xf32, #tpu.memory_space<vmem>>, vector<4x316xf32>,
    %c4_20 = arith.constant 4 : index
    %c2_21 = arith.constant 2 : index
    %15 = vector.load %arg1[%c4_20, %c2_21] : memref<8x400xf32, #tpu.memory_space<vmem>>, vector<4x316xf32>
    %c8_22 = arith.constant 8 : index
    %c316_23 = arith.constant 316 : index
    %16 = vector.load %arg16[%c8_22, %c316_23] : memref<144x632xf32, #tpu.memory_space<vmem>>, vector<4x316xf32>
    tpu.vector_store %arg16[%c8_22, %c316_23], %15 {strides = array<i32>} : memref<144x632xf32, #tpu.memory_space<vmem>>, vector<4x316xf32>,
    %c0_24 = arith.constant 0 : index
    %c3 = arith.constant 3 : index
    %17 = vector.load %arg1[%c0_24, %c3] : memref<8x400xf32, #tpu.memory_space<vmem>>, vector<4x316xf32>
    %c12 = arith.constant 12 : index
    %c0_25 = arith.constant 0 : index
    %18 = vector.load %arg16[%c12, %c0_25] : memref<144x632xf32, #tpu.memory_space<vmem>>, vector<4x316xf32>
    tpu.vector_store %arg16[%c12, %c0_25], %17 {strides = array<i32>} : memref<144x632xf32, #tpu.memory_space<vmem>>, vector<4x316xf32>,
    %c4_26 = arith.constant 4 : index
    %c3_27 = arith.constant 3 : index
    %19 = vector.load %arg1[%c4_26, %c3_27] : memref<8x400xf32, #tpu.memory_space<vmem>>, vector<4x316xf32>
    %c12_28 = arith.constant 12 : index
    %c316_29 = arith.constant 316 : index
    %20 = vector.load %arg16[%c12_28, %c316_29] : memref<144x632xf32, #tpu.memory_space<vmem>>, vector<4x316xf32>
    tpu.vector_store %arg16[%c12_28, %c316_29], %19 {strides = array<i32>} : memref<144x632xf32, #tpu.memory_space<vmem>>, vector<4x316xf32>,
    %c0_30 = arith.constant 0 : index
    %c4_31 = arith.constant 4 : index
    %21 = vector.load %arg1[%c0_30, %c4_31] : memref<8x400xf32, #tpu.memory_space<vmem>>, vector<4x316xf32>
    %c16 = arith.constant 16 : index
    %c0_32 = arith.constant 0 : index
    %22 = vector.load %arg16[%c16, %c0_32] : memref<144x632xf32, #tpu.memory_space<vmem>>, vector<4x316xf32>
    tpu.vector_store %arg16[%c16, %c0_32], %21 {strides = array<i32>} : memref<144x632xf32, #tpu.memory_space<vmem>>, vector<4x316xf32>,
    %c4_33 = arith.constant 4 : index
    %c4_34 = arith.constant 4 : index
    %23 = vector.load %arg1[%c4_33, %c4_34] : memref<8x400xf32, #tpu.memory_space<vmem>>, vector<4x316xf32>
    %c16_35 = arith.constant 16 : index
    %c316_36 = arith.constant 316 : index
    %24 = vector.load %arg16[%c16_35, %c316_36] : memref<144x632xf32, #tpu.memory_space<vmem>>, vector<4x316xf32>
    tpu.vector_store %arg16[%c16_35, %c316_36], %23 {strides = array<i32>} : memref<144x632xf32, #tpu.memory_space<vmem>>, vector<4x316xf32>,
    %c0_37 = arith.constant 0 : index
    %c20 = arith.constant 20 : index
    %25 = vector.load %arg1[%c0_37, %c20] : memref<8x400xf32, #tpu.memory_space<vmem>>, vector<4x316xf32>
    %c20_38 = arith.constant 20 : index
    %c0_39 = arith.constant 0 : index
    %26 = vector.load %arg16[%c20_38, %c0_39] : memref<144x632xf32, #tpu.memory_space<vmem>>, vector<4x316xf32>
    tpu.vector_store %arg16[%c20_38, %c0_39], %25 {strides = array<i32>} : memref<144x632xf32, #tpu.memory_space<vmem>>, vector<4x316xf32>,
    %c4_40 = arith.constant 4 : index
    %c20_41 = arith.constant 20 : index
    %27 = vector.load %arg1[%c4_40, %c20_41] : memref<8x400xf32, #tpu.memory_space<vmem>>, vector<4x316xf32>
    %c20_42 = arith.constant 20 : index
    %c316_43 = arith.constant 316 : index
    %28 = vector.load %arg16[%c20_42, %c316_43] : memref<144x632xf32, #tpu.memory_space<vmem>>, vector<4x316xf32>
    tpu.vector_store %arg16[%c20_42, %c316_43], %27 {strides = array<i32>} : memref<144x632xf32, #tpu.memory_space<vmem>>, vector<4x316xf32>,
    %c0_44 = arith.constant 0 : index
    %c21 = arith.constant 21 : index
    %29 = vector.load %arg1[%c0_44, %c21] : memref<8x400xf32, #tpu.memory_space<vmem>>, vector<4x316xf32>
    %c24 = arith.constant 24 : index
    %c0_45 = arith.constant 0 : index
    %30 = vector.load %arg16[%c24, %c0_45] : memref<144x632xf32, #tpu.memory_space<vmem>>, vector<4x316xf32>
    tpu.vector_store %arg16[%c24, %c0_45], %29 {strides = array<i32>} : memref<144x632xf32, #tpu.memory_space<vmem>>, vector<4x316xf32>,
    %c4_46 = arith.constant 4 : index
    %c21_47 = arith.constant 21 : index
    %31 = vector.load %arg1[%c4_46, %c21_47] : memref<8x400xf32, #tpu.memory_space<vmem>>, vector<4x316xf32>
    %c24_48 = arith.constant 24 : index
    %c316_49 = arith.constant 316 : index
    %32 = vector.load %arg16[%c24_48, %c316_49] : memref<144x632xf32, #tpu.memory_space<vmem>>, vector<4x316xf32>
    tpu.vector_store %arg16[%c24_48, %c316_49], %31 {strides = array<i32>} : memref<144x632xf32, #tpu.memory_space<vmem>>, vector<4x316xf32>,
    %c0_50 = arith.constant 0 : index
    %c22 = arith.constant 22 : index
    %33 = vector.load %arg1[%c0_50, %c22] : memref<8x400xf32, #tpu.memory_space<vmem>>, vector<4x316xf32>
    %c28 = arith.constant 28 : index
    %c0_51 = arith.constant 0 : index
    %34 = vector.load %arg16[%c28, %c0_51] : memref<144x632xf32, #tpu.memory_space<vmem>>, vector<4x316xf32>
    tpu.vector_store %arg16[%c28, %c0_51], %33 {strides = array<i32>} : memref<144x632xf32, #tpu.memory_space<vmem>>, vector<4x316xf32>,
    %c4_52 = arith.constant 4 : index
    %c22_53 = arith.constant 22 : index
    %35 = vector.load %arg1[%c4_52, %c22_53] : memref<8x400xf32, #tpu.memory_space<vmem>>, vector<4x316xf32>
    %c28_54 = arith.constant 28 : index
    %c316_55 = arith.constant 316 : index
    %36 = vector.load %arg16[%c28_54, %c316_55] : memref<144x632xf32, #tpu.memory_space<vmem>>, vector<4x316xf32>
    tpu.vector_store %arg16[%c28_54, %c316_55], %35 {strides = array<i32>} : memref<144x632xf32, #tpu.memory_space<vmem>>, vector<4x316xf32>,
    %c0_56 = arith.constant 0 : index
    %c23 = arith.constant 23 : index
    %37 = vector.load %arg1[%c0_56, %c23] : memref<8x400xf32, #tpu.memory_space<vmem>>, vector<4x316xf32>
    %c32 = arith.constant 32 : index
    %c0_57 = arith.constant 0 : index
    %38 = vector.load %arg16[%c32, %c0_57] : memref<144x632xf32, #tpu.memory_space<vmem>>, vector<4x316xf32>
    tpu.vector_store %arg16[%c32, %c0_57], %37 {strides = array<i32>} : memref<144x632xf32, #tpu.memory_space<vmem>>, vector<4x316xf32>,
    %c4_58 = arith.constant 4 : index
    %c23_59 = arith.constant 23 : index
    %39 = vector.load %arg1[%c4_58, %c23_59] : memref<8x400xf32, #tpu.memory_space<vmem>>, vector<4x316xf32>
    %c32_60 = arith.constant 32 : index
    %c316_61 = arith.constant 316 : index
    %40 = vector.load %arg16[%c32_60, %c316_61] : memref<144x632xf32, #tpu.memory_space<vmem>>, vector<4x316xf32>
    tpu.vector_store %arg16[%c32_60, %c316_61], %39 {strides = array<i32>} : memref<144x632xf32, #tpu.memory_space<vmem>>, vector<4x316xf32>,
    %c0_62 = arith.constant 0 : index
    %c24_63 = arith.constant 24 : index
    %41 = vector.load %arg1[%c0_62, %c24_63] : memref<8x400xf32, #tpu.memory_space<vmem>>, vector<4x316xf32>
    %c36 = arith.constant 36 : index
    %c0_64 = arith.constant 0 : index
    %42 = vector.load %arg16[%c36, %c0_64] : memref<144x632xf32, #tpu.memory_space<vmem>>, vector<4x316xf32>
    tpu.vector_store %arg16[%c36, %c0_64], %41 {strides = array<i32>} : memref<144x632xf32, #tpu.memory_space<vmem>>, vector<4x316xf32>,
    %c4_65 = arith.constant 4 : index
    %c24_66 = arith.constant 24 : index
    %43 = vector.load %arg1[%c4_65, %c24_66] : memref<8x400xf32, #tpu.memory_space<vmem>>, vector<4x316xf32>
    %c36_67 = arith.constant 36 : index
    %c316_68 = arith.constant 316 : index
    %44 = vector.load %arg16[%c36_67, %c316_68] : memref<144x632xf32, #tpu.memory_space<vmem>>, vector<4x316xf32>
    tpu.vector_store %arg16[%c36_67, %c316_68], %43 {strides = array<i32>} : memref<144x632xf32, #tpu.memory_space<vmem>>, vector<4x316xf32>,
    %c0_69 = arith.constant 0 : index
    %c40 = arith.constant 40 : index
    %45 = vector.load %arg1[%c0_69, %c40] : memref<8x400xf32, #tpu.memory_space<vmem>>, vector<4x316xf32>
    %c40_70 = arith.constant 40 : index
    %c0_71 = arith.constant 0 : index
    %46 = vector.load %arg16[%c40_70, %c0_71] : memref<144x632xf32, #tpu.memory_space<vmem>>, vector<4x316xf32>
    tpu.vector_store %arg16[%c40_70, %c0_71], %45 {strides = array<i32>} : memref<144x632xf32, #tpu.memory_space<vmem>>, vector<4x316xf32>,
    %c4_72 = arith.constant 4 : index
    %c40_73 = arith.constant 40 : index
    %47 = vector.load %arg1[%c4_72, %c40_73] : memref<8x400xf32, #tpu.memory_space<vmem>>, vector<4x316xf32>
    %c40_74 = arith.constant 40 : index
    %c316_75 = arith.constant 316 : index
    %48 = vector.load %arg16[%c40_74, %c316_75] : memref<144x632xf32, #tpu.memory_space<vmem>>, vector<4x316xf32>
    tpu.vector_store %arg16[%c40_74, %c316_75], %47 {strides = array<i32>} : memref<144x632xf32, #tpu.memory_space<vmem>>, vector<4x316xf32>,
    %c0_76 = arith.constant 0 : index
    %c41 = arith.constant 41 : index
    %49 = vector.load %arg1[%c0_76, %c41] : memref<8x400xf32, #tpu.memory_space<vmem>>, vector<4x316xf32>
    %c44 = arith.constant 44 : index
    %c0_77 = arith.constant 0 : index
    %50 = vector.load %arg16[%c44, %c0_77] : memref<144x632xf32, #tpu.memory_space<vmem>>, vector<4x316xf32>
    tpu.vector_store %arg16[%c44, %c0_77], %49 {strides = array<i32>} : memref<144x632xf32, #tpu.memory_space<vmem>>, vector<4x316xf32>,
    %c4_78 = arith.constant 4 : index
    %c41_79 = arith.constant 41 : index
    %51 = vector.load %arg1[%c4_78, %c41_79] : memref<8x400xf32, #tpu.memory_space<vmem>>, vector<4x316xf32>
    %c44_80 = arith.constant 44 : index
    %c316_81 = arith.constant 316 : index
    %52 = vector.load %arg16[%c44_80, %c316_81] : memref<144x632xf32, #tpu.memory_space<vmem>>, vector<4x316xf32>
    tpu.vector_store %arg16[%c44_80, %c316_81], %51 {strides = array<i32>} : memref<144x632xf32, #tpu.memory_space<vmem>>, vector<4x316xf32>,
    %c0_82 = arith.constant 0 : index
    %c42 = arith.constant 42 : index
    %53 = vector.load %arg1[%c0_82, %c42] : memref<8x400xf32, #tpu.memory_space<vmem>>, vector<4x316xf32>
    %c48 = arith.constant 48 : index
    %c0_83 = arith.constant 0 : index
    %54 = vector.load %arg16[%c48, %c0_83] : memref<144x632xf32, #tpu.memory_space<vmem>>, vector<4x316xf32>
    tpu.vector_store %arg16[%c48, %c0_83], %53 {strides = array<i32>} : memref<144x632xf32, #tpu.memory_space<vmem>>, vector<4x316xf32>,
    %c4_84 = arith.constant 4 : index
    %c42_85 = arith.constant 42 : index
    %55 = vector.load %arg1[%c4_84, %c42_85] : memref<8x400xf32, #tpu.memory_space<vmem>>, vector<4x316xf32>
    %c48_86 = arith.constant 48 : index
    %c316_87 = arith.constant 316 : index
    %56 = vector.load %arg16[%c48_86, %c316_87] : memref<144x632xf32, #tpu.memory_space<vmem>>, vector<4x316xf32>
    tpu.vector_store %arg16[%c48_86, %c316_87], %55 {strides = array<i32>} : memref<144x632xf32, #tpu.memory_space<vmem>>, vector<4x316xf32>,
    %c0_88 = arith.constant 0 : index
    %c43 = arith.constant 43 : index
    %57 = vector.load %arg1[%c0_88, %c43] : memref<8x400xf32, #tpu.memory_space<vmem>>, vector<4x316xf32>
    %c52 = arith.constant 52 : index
    %c0_89 = arith.constant 0 : index
    %58 = vector.load %arg16[%c52, %c0_89] : memref<144x632xf32, #tpu.memory_space<vmem>>, vector<4x316xf32>
    tpu.vector_store %arg16[%c52, %c0_89], %57 {strides = array<i32>} : memref<144x632xf32, #tpu.memory_space<vmem>>, vector<4x316xf32>,
    %c4_90 = arith.constant 4 : index
    %c43_91 = arith.constant 43 : index
    %59 = vector.load %arg1[%c4_90, %c43_91] : memref<8x400xf32, #tpu.memory_space<vmem>>, vector<4x316xf32>
    %c52_92 = arith.constant 52 : index
    %c316_93 = arith.constant 316 : index
    %60 = vector.load %arg16[%c52_92, %c316_93] : memref<144x632xf32, #tpu.memory_space<vmem>>, vector<4x316xf32>
    tpu.vector_store %arg16[%c52_92, %c316_93], %59 {strides = array<i32>} : memref<144x632xf32, #tpu.memory_space<vmem>>, vector<4x316xf32>,
    %c0_94 = arith.constant 0 : index
    %c44_95 = arith.constant 44 : index
    %61 = vector.load %arg1[%c0_94, %c44_95] : memref<8x400xf32, #tpu.memory_space<vmem>>, vector<4x316xf32>
    %c56 = arith.constant 56 : index
    %c0_96 = arith.constant 0 : index
    %62 = vector.load %arg16[%c56, %c0_96] : memref<144x632xf32, #tpu.memory_space<vmem>>, vector<4x316xf32>
    tpu.vector_store %arg16[%c56, %c0_96], %61 {strides = array<i32>} : memref<144x632xf32, #tpu.memory_space<vmem>>, vector<4x316xf32>,
    %c4_97 = arith.constant 4 : index
    %c44_98 = arith.constant 44 : index
    %63 = vector.load %arg1[%c4_97, %c44_98] : memref<8x400xf32, #tpu.memory_space<vmem>>, vector<4x316xf32>
    %c56_99 = arith.constant 56 : index
    %c316_100 = arith.constant 316 : index
    %64 = vector.load %arg16[%c56_99, %c316_100] : memref<144x632xf32, #tpu.memory_space<vmem>>, vector<4x316xf32>
    tpu.vector_store %arg16[%c56_99, %c316_100], %63 {strides = array<i32>} : memref<144x632xf32, #tpu.memory_space<vmem>>, vector<4x316xf32>,
    %c0_101 = arith.constant 0 : index
    %c60 = arith.constant 60 : index
    %65 = vector.load %arg1[%c0_101, %c60] : memref<8x400xf32, #tpu.memory_space<vmem>>, vector<4x316xf32>
    %c60_102 = arith.constant 60 : index
    %c0_103 = arith.constant 0 : index
    %66 = vector.load %arg16[%c60_102, %c0_103] : memref<144x632xf32, #tpu.memory_space<vmem>>, vector<4x316xf32>
    tpu.vector_store %arg16[%c60_102, %c0_103], %65 {strides = array<i32>} : memref<144x632xf32, #tpu.memory_space<vmem>>, vector<4x316xf32>,
    %c4_104 = arith.constant 4 : index
    %c60_105 = arith.constant 60 : index
    %67 = vector.load %arg1[%c4_104, %c60_105] : memref<8x400xf32, #tpu.memory_space<vmem>>, vector<4x316xf32>
    %c60_106 = arith.constant 60 : index
    %c316_107 = arith.constant 316 : index
    %68 = vector.load %arg16[%c60_106, %c316_107] : memref<144x632xf32, #tpu.memory_space<vmem>>, vector<4x316xf32>
    tpu.vector_store %arg16[%c60_106, %c316_107], %67 {strides = array<i32>} : memref<144x632xf32, #tpu.memory_space<vmem>>, vector<4x316xf32>,
    %c0_108 = arith.constant 0 : index
    %c61 = arith.constant 61 : index
    %69 = vector.load %arg1[%c0_108, %c61] : memref<8x400xf32, #tpu.memory_space<vmem>>, vector<4x316xf32>
    %c64 = arith.constant 64 : index
    %c0_109 = arith.constant 0 : index
    %70 = vector.load %arg16[%c64, %c0_109] : memref<144x632xf32, #tpu.memory_space<vmem>>, vector<4x316xf32>
    tpu.vector_store %arg16[%c64, %c0_109], %69 {strides = array<i32>} : memref<144x632xf32, #tpu.memory_space<vmem>>, vector<4x316xf32>,
    %c4_110 = arith.constant 4 : index
    %c61_111 = arith.constant 61 : index
    %71 = vector.load %arg1[%c4_110, %c61_111] : memref<8x400xf32, #tpu.memory_space<vmem>>, vector<4x316xf32>
    %c64_112 = arith.constant 64 : index
    %c316_113 = arith.constant 316 : index
    %72 = vector.load %arg16[%c64_112, %c316_113] : memref<144x632xf32, #tpu.memory_space<vmem>>, vector<4x316xf32>
    tpu.vector_store %arg16[%c64_112, %c316_113], %71 {strides = array<i32>} : memref<144x632xf32, #tpu.memory_space<vmem>>, vector<4x316xf32>,
    %c0_114 = arith.constant 0 : index
    %c62 = arith.constant 62 : index
    %73 = vector.load %arg1[%c0_114, %c62] : memref<8x400xf32, #tpu.memory_space<vmem>>, vector<4x316xf32>
    %c68 = arith.constant 68 : index
    %c0_115 = arith.constant 0 : index
    %74 = vector.load %arg16[%c68, %c0_115] : memref<144x632xf32, #tpu.memory_space<vmem>>, vector<4x316xf32>
    tpu.vector_store %arg16[%c68, %c0_115], %73 {strides = array<i32>} : memref<144x632xf32, #tpu.memory_space<vmem>>, vector<4x316xf32>,
    %c4_116 = arith.constant 4 : index
    %c62_117 = arith.constant 62 : index
    %75 = vector.load %arg1[%c4_116, %c62_117] : memref<8x400xf32, #tpu.memory_space<vmem>>, vector<4x316xf32>
    %c68_118 = arith.constant 68 : index
    %c316_119 = arith.constant 316 : index
    %76 = vector.load %arg16[%c68_118, %c316_119] : memref<144x632xf32, #tpu.memory_space<vmem>>, vector<4x316xf32>
    tpu.vector_store %arg16[%c68_118, %c316_119], %75 {strides = array<i32>} : memref<144x632xf32, #tpu.memory_space<vmem>>, vector<4x316xf32>,
    %c0_120 = arith.constant 0 : index
    %c63 = arith.constant 63 : index
    %77 = vector.load %arg1[%c0_120, %c63] : memref<8x400xf32, #tpu.memory_space<vmem>>, vector<4x316xf32>
    %c72 = arith.constant 72 : index
    %c0_121 = arith.constant 0 : index
    %78 = vector.load %arg16[%c72, %c0_121] : memref<144x632xf32, #tpu.memory_space<vmem>>, vector<4x316xf32>
    tpu.vector_store %arg16[%c72, %c0_121], %77 {strides = array<i32>} : memref<144x632xf32, #tpu.memory_space<vmem>>, vector<4x316xf32>,
    %c4_122 = arith.constant 4 : index
    %c63_123 = arith.constant 63 : index
    %79 = vector.load %arg1[%c4_122, %c63_123] : memref<8x400xf32, #tpu.memory_space<vmem>>, vector<4x316xf32>
    %c72_124 = arith.constant 72 : index
    %c316_125 = arith.constant 316 : index
    %80 = vector.load %arg16[%c72_124, %c316_125] : memref<144x632xf32, #tpu.memory_space<vmem>>, vector<4x316xf32>
    tpu.vector_store %arg16[%c72_124, %c316_125], %79 {strides = array<i32>} : memref<144x632xf32, #tpu.memory_space<vmem>>, vector<4x316xf32>,
    %c0_126 = arith.constant 0 : index
    %c64_127 = arith.constant 64 : index
    %81 = vector.load %arg1[%c0_126, %c64_127] : memref<8x400xf32, #tpu.memory_space<vmem>>, vector<4x316xf32>
    %c76 = arith.constant 76 : index
    %c0_128 = arith.constant 0 : index
    %82 = vector.load %arg16[%c76, %c0_128] : memref<144x632xf32, #tpu.memory_space<vmem>>, vector<4x316xf32>
    tpu.vector_store %arg16[%c76, %c0_128], %81 {strides = array<i32>} : memref<144x632xf32, #tpu.memory_space<vmem>>, vector<4x316xf32>,
    %c4_129 = arith.constant 4 : index
    %c64_130 = arith.constant 64 : index
    %83 = vector.load %arg1[%c4_129, %c64_130] : memref<8x400xf32, #tpu.memory_space<vmem>>, vector<4x316xf32>
    %c76_131 = arith.constant 76 : index
    %c316_132 = arith.constant 316 : index
    %84 = vector.load %arg16[%c76_131, %c316_132] : memref<144x632xf32, #tpu.memory_space<vmem>>, vector<4x316xf32>
    tpu.vector_store %arg16[%c76_131, %c316_132], %83 {strides = array<i32>} : memref<144x632xf32, #tpu.memory_space<vmem>>, vector<4x316xf32>,
    %c0_133 = arith.constant 0 : index
    %c80 = arith.constant 80 : index
    %85 = vector.load %arg1[%c0_133, %c80] : memref<8x400xf32, #tpu.memory_space<vmem>>, vector<4x316xf32>
    %c80_134 = arith.constant 80 : index
    %c0_135 = arith.constant 0 : index
    %86 = vector.load %arg16[%c80_134, %c0_135] : memref<144x632xf32, #tpu.memory_space<vmem>>, vector<4x316xf32>
    tpu.vector_store %arg16[%c80_134, %c0_135], %85 {strides = array<i32>} : memref<144x632xf32, #tpu.memory_space<vmem>>, vector<4x316xf32>,
    %c4_136 = arith.constant 4 : index
    %c80_137 = arith.constant 80 : index
    %87 = vector.load %arg1[%c4_136, %c80_137] : memref<8x400xf32, #tpu.memory_space<vmem>>, vector<4x316xf32>
    %c80_138 = arith.constant 80 : index
    %c316_139 = arith.constant 316 : index
    %88 = vector.load %arg16[%c80_138, %c316_139] : memref<144x632xf32, #tpu.memory_space<vmem>>, vector<4x316xf32>
    tpu.vector_store %arg16[%c80_138, %c316_139], %87 {strides = array<i32>} : memref<144x632xf32, #tpu.memory_space<vmem>>, vector<4x316xf32>,
    %c0_140 = arith.constant 0 : index
    %c81 = arith.constant 81 : index
    %89 = vector.load %arg1[%c0_140, %c81] : memref<8x400xf32, #tpu.memory_space<vmem>>, vector<4x316xf32>
    %c84 = arith.constant 84 : index
    %c0_141 = arith.constant 0 : index
    %90 = vector.load %arg16[%c84, %c0_141] : memref<144x632xf32, #tpu.memory_space<vmem>>, vector<4x316xf32>
    tpu.vector_store %arg16[%c84, %c0_141], %89 {strides = array<i32>} : memref<144x632xf32, #tpu.memory_space<vmem>>, vector<4x316xf32>,
    %c4_142 = arith.constant 4 : index
    %c81_143 = arith.constant 81 : index
    %91 = vector.load %arg1[%c4_142, %c81_143] : memref<8x400xf32, #tpu.memory_space<vmem>>, vector<4x316xf32>
    %c84_144 = arith.constant 84 : index
    %c316_145 = arith.constant 316 : index
    %92 = vector.load %arg16[%c84_144, %c316_145] : memref<144x632xf32, #tpu.memory_space<vmem>>, vector<4x316xf32>
    tpu.vector_store %arg16[%c84_144, %c316_145], %91 {strides = array<i32>} : memref<144x632xf32, #tpu.memory_space<vmem>>, vector<4x316xf32>,
    %c0_146 = arith.constant 0 : index
    %c82 = arith.constant 82 : index
    %93 = vector.load %arg1[%c0_146, %c82] : memref<8x400xf32, #tpu.memory_space<vmem>>, vector<4x316xf32>
    %c88 = arith.constant 88 : index
    %c0_147 = arith.constant 0 : index
    %94 = vector.load %arg16[%c88, %c0_147] : memref<144x632xf32, #tpu.memory_space<vmem>>, vector<4x316xf32>
    tpu.vector_store %arg16[%c88, %c0_147], %93 {strides = array<i32>} : memref<144x632xf32, #tpu.memory_space<vmem>>, vector<4x316xf32>,
    %c4_148 = arith.constant 4 : index
    %c82_149 = arith.constant 82 : index
    %95 = vector.load %arg1[%c4_148, %c82_149] : memref<8x400xf32, #tpu.memory_space<vmem>>, vector<4x316xf32>
    %c88_150 = arith.constant 88 : index
    %c316_151 = arith.constant 316 : index
    %96 = vector.load %arg16[%c88_150, %c316_151] : memref<144x632xf32, #tpu.memory_space<vmem>>, vector<4x316xf32>
    tpu.vector_store %arg16[%c88_150, %c316_151], %95 {strides = array<i32>} : memref<144x632xf32, #tpu.memory_space<vmem>>, vector<4x316xf32>,
    %c0_152 = arith.constant 0 : index
    %c83 = arith.constant 83 : index
    %97 = vector.load %arg1[%c0_152, %c83] : memref<8x400xf32, #tpu.memory_space<vmem>>, vector<4x316xf32>
    %c92 = arith.constant 92 : index
    %c0_153 = arith.constant 0 : index
    %98 = vector.load %arg16[%c92, %c0_153] : memref<144x632xf32, #tpu.memory_space<vmem>>, vector<4x316xf32>
    tpu.vector_store %arg16[%c92, %c0_153], %97 {strides = array<i32>} : memref<144x632xf32, #tpu.memory_space<vmem>>, vector<4x316xf32>,
    %c4_154 = arith.constant 4 : index
    %c83_155 = arith.constant 83 : index
    %99 = vector.load %arg1[%c4_154, %c83_155] : memref<8x400xf32, #tpu.memory_space<vmem>>, vector<4x316xf32>
    %c92_156 = arith.constant 92 : index
    %c316_157 = arith.constant 316 : index
    %100 = vector.load %arg16[%c92_156, %c316_157] : memref<144x632xf32, #tpu.memory_space<vmem>>, vector<4x316xf32>
    tpu.vector_store %arg16[%c92_156, %c316_157], %99 {strides = array<i32>} : memref<144x632xf32, #tpu.memory_space<vmem>>, vector<4x316xf32>,
    %c0_158 = arith.constant 0 : index
    %c84_159 = arith.constant 84 : index
    %101 = vector.load %arg1[%c0_158, %c84_159] : memref<8x400xf32, #tpu.memory_space<vmem>>, vector<4x316xf32>
    %c96 = arith.constant 96 : index
    %c0_160 = arith.constant 0 : index
    %102 = vector.load %arg16[%c96, %c0_160] : memref<144x632xf32, #tpu.memory_space<vmem>>, vector<4x316xf32>
    tpu.vector_store %arg16[%c96, %c0_160], %101 {strides = array<i32>} : memref<144x632xf32, #tpu.memory_space<vmem>>, vector<4x316xf32>,
    %c4_161 = arith.constant 4 : index
    %c84_162 = arith.constant 84 : index
    %103 = vector.load %arg1[%c4_161, %c84_162] : memref<8x400xf32, #tpu.memory_space<vmem>>, vector<4x316xf32>
    %c96_163 = arith.constant 96 : index
    %c316_164 = arith.constant 316 : index
    %104 = vector.load %arg16[%c96_163, %c316_164] : memref<144x632xf32, #tpu.memory_space<vmem>>, vector<4x316xf32>
    tpu.vector_store %arg16[%c96_163, %c316_164], %103 {strides = array<i32>} : memref<144x632xf32, #tpu.memory_space<vmem>>, vector<4x316xf32>,
    %c0_165 = arith.constant 0 : index
    %c0_166 = arith.constant 0 : index
    %105 = vector.load %arg16[%c0_165, %c0_166] : memref<144x632xf32, #tpu.memory_space<vmem>>, vector<100x632xf32>
    %c0_167 = arith.constant 0 : index
    %c0_168 = arith.constant 0 : index
    %106 = vector.load %arg3[%c0_167, %c0_168] : memref<16x100xf32, #tpu.memory_space<vmem>>, vector<16x100xf32>
    %cst_169 = arith.constant dense<0.000000e+00> : vector<16x632xf32>
    %107 = tpu.matmul %106, %105, %cst_169 {dimension_numbers = #tpu.dot_dimension_numbers<[1], [0], [0], [1], [0, 0, 1, 1], [], []>} : vector<16x100xf32>, vector<100x632xf32>, vector<16x632xf32> -> vector<16x632xf32>
    %c0_170 = arith.constant 0 : index
    %c0_171 = arith.constant 0 : index
    %108 = vector.load %arg6[%c0_170, %c0_171] : memref<16x1xf32, #tpu.memory_space<vmem>>, vector<16x1xf32>
    %109 = vector.broadcast %108 : vector<16x1xf32> to vector<16x632xf32>
    %110 = arith.addf %107, %109 : vector<16x632xf32>
    %111 = vector.broadcast %4 : vector<1x632xf32> to vector<16x632xf32>
    %112 = arith.mulf %110, %111 : vector<16x632xf32>
    %cst_172 = arith.constant dense<0.000000e+00> : vector<16xf32>
    %113 = vector.multi_reduction <add>, %112, %cst_172 [1] : vector<16x632xf32> to vector<16xf32>
    %114 = vector.shape_cast %113 : vector<16xf32> to vector<16x1xf32>
    %115 = arith.mulf %112, %110 : vector<16x632xf32>
    %cst_173 = arith.constant dense<0.000000e+00> : vector<16xf32>
    %116 = vector.multi_reduction <add>, %115, %cst_173 [1] : vector<16x632xf32> to vector<16xf32>
    %117 = vector.shape_cast %116 : vector<16xf32> to vector<16x1xf32>
    %cst_174 = arith.constant 0.001953125 : f32
    %118 = vector.broadcast %cst_174 : f32 to vector<16x1xf32>
    %119 = arith.mulf %114, %118 : vector<16x1xf32>
    %cst_175 = arith.constant 0.001953125 : f32
    %120 = vector.broadcast %cst_175 : f32 to vector<16x1xf32>
    %121 = arith.mulf %117, %120 : vector<16x1xf32>
    %122 = arith.mulf %119, %119 : vector<16x1xf32>
    %123 = arith.subf %121, %122 : vector<16x1xf32>
    %124 = vector.broadcast %119 : vector<16x1xf32> to vector<16x632xf32>
    %125 = arith.subf %110, %124 : vector<16x632xf32>
    %cst_176 = arith.constant 9.99999974E-6 : f32
    %126 = vector.broadcast %cst_176 : f32 to vector<16x1xf32>
    %127 = arith.addf %123, %126 : vector<16x1xf32>
    %128 = math.rsqrt %127 : vector<16x1xf32>
    %129 = vector.broadcast %128 : vector<16x1xf32> to vector<16x632xf32>
    %130 = arith.mulf %125, %129 : vector<16x632xf32>
    %c0_177 = arith.constant 0 : index
    %c0_178 = arith.constant 0 : index
    %131 = vector.load %arg9[%c0_177, %c0_178] : memref<16x1xf32, #tpu.memory_space<vmem>>, vector<16x1xf32>
    %132 = vector.broadcast %131 : vector<16x1xf32> to vector<16x632xf32>
    %133 = arith.mulf %130, %132 : vector<16x632xf32>
    %c0_179 = arith.constant 0 : index
    %c0_180 = arith.constant 0 : index
    %134 = vector.load %arg12[%c0_179, %c0_180] : memref<16x1xf32, #tpu.memory_space<vmem>>, vector<16x1xf32>
    %135 = vector.broadcast %134 : vector<16x1xf32> to vector<16x632xf32>
    %136 = arith.addf %133, %135 : vector<16x632xf32>
    %cst_181 = arith.constant 0.000000e+00 : f32
    %137 = vector.broadcast %cst_181 : f32 to vector<16x632xf32>
    %138 = arith.cmpf ogt, %136, %137 : vector<16x632xf32>
    %cst_182 = arith.constant 5.000000e-01 : f32
    %139 = vector.broadcast %cst_182 : f32 to vector<16x632xf32>
    %140 = arith.mulf %139, %136 : vector<16x632xf32>
    %141 = math.tanh %140 : vector<16x632xf32>
    %142 = math.exp %136 : vector<16x632xf32>
    %cst_183 = arith.constant 1.000000e+00 : f32
    %143 = vector.broadcast %cst_183 : f32 to vector<16x632xf32>
    %144 = arith.addf %142, %143 : vector<16x632xf32>
    %145 = arith.mulf %141, %144 : vector<16x632xf32>
    %146 = arith.select %138, %136, %145 : vector<16x632xi1>, vector<16x632xf32>
    %147 = vector.broadcast %4 : vector<1x632xf32> to vector<16x632xf32>
    %148 = arith.mulf %146, %147 : vector<16x632xf32>
    %149 = vector.extract_strided_slice %148 {offsets = [0, 0], sizes = [16, 316], strides = [1, 1]} : vector<16x632xf32> to vector<16x316xf32>
    %c0_184 = arith.constant 0 : index
    %c42_185 = arith.constant 42 : index
    %150 = vector.load %arg15[%c0_184, %c42_185] : memref<96x400xf32, #tpu.memory_space<vmem>>, vector<16x316xf32>
    tpu.vector_store %arg15[%c0_184, %c42_185], %149 {strides = array<i32>} : memref<96x400xf32, #tpu.memory_space<vmem>>, vector<16x316xf32>,
    %151 = vector.extract_strided_slice %148 {offsets = [0, 316], sizes = [16, 316], strides = [1, 1]} : vector<16x632xf32> to vector<16x316xf32>
    %c48_186 = arith.constant 48 : index
    %c42_187 = arith.constant 42 : index
    %152 = vector.load %arg15[%c48_186, %c42_187] : memref<96x400xf32, #tpu.memory_space<vmem>>, vector<16x316xf32>
    tpu.vector_store %arg15[%c48_186, %c42_187], %151 {strides = array<i32>} : memref<96x400xf32, #tpu.memory_space<vmem>>, vector<16x316xf32>,
    %c0_188 = arith.constant 0 : index
    %c21_189 = arith.constant 21 : index
    %153 = vector.load %arg15[%c0_188, %c21_189] : memref<96x400xf32, #tpu.memory_space<vmem>>, vector<16x316xf32>
    %c0_190 = arith.constant 0 : index
    %c0_191 = arith.constant 0 : index
    %154 = vector.load %arg16[%c0_190, %c0_191] : memref<144x632xf32, #tpu.memory_space<vmem>>, vector<16x316xf32>
    tpu.vector_store %arg16[%c0_190, %c0_191], %153 {strides = array<i32>} : memref<144x632xf32, #tpu.memory_space<vmem>>, vector<16x316xf32>,
    %c48_192 = arith.constant 48 : index
    %c21_193 = arith.constant 21 : index
    %155 = vector.load %arg15[%c48_192, %c21_193] : memref<96x400xf32, #tpu.memory_space<vmem>>, vector<16x316xf32>
    %c0_194 = arith.constant 0 : index
    %c316_195 = arith.constant 316 : index
    %156 = vector.load %arg16[%c0_194, %c316_195] : memref<144x632xf32, #tpu.memory_space<vmem>>, vector<16x316xf32>
    tpu.vector_store %arg16[%c0_194, %c316_195], %155 {strides = array<i32>} : memref<144x632xf32, #tpu.memory_space<vmem>>, vector<16x316xf32>,
    %c0_196 = arith.constant 0 : index
    %c22_197 = arith.constant 22 : index
    %157 = vector.load %arg15[%c0_196, %c22_197] : memref<96x400xf32, #tpu.memory_space<vmem>>, vector<16x316xf32>
    %c16_198 = arith.constant 16 : index
    %c0_199 = arith.constant 0 : index
    %158 = vector.load %arg16[%c16_198, %c0_199] : memref<144x632xf32, #tpu.memory_space<vmem>>, vector<16x316xf32>
    tpu.vector_store %arg16[%c16_198, %c0_199], %157 {strides = array<i32>} : memref<144x632xf32, #tpu.memory_space<vmem>>, vector<16x316xf32>,
    %c48_200 = arith.constant 48 : index
    %c22_201 = arith.constant 22 : index
    %159 = vector.load %arg15[%c48_200, %c22_201] : memref<96x400xf32, #tpu.memory_space<vmem>>, vector<16x316xf32>
    %c16_202 = arith.constant 16 : index
    %c316_203 = arith.constant 316 : index
    %160 = vector.load %arg16[%c16_202, %c316_203] : memref<144x632xf32, #tpu.memory_space<vmem>>, vector<16x316xf32>
    tpu.vector_store %arg16[%c16_202, %c316_203], %159 {strides = array<i32>} : memref<144x632xf32, #tpu.memory_space<vmem>>, vector<16x316xf32>,
    %c0_204 = arith.constant 0 : index
    %c23_205 = arith.constant 23 : index
    %161 = vector.load %arg15[%c0_204, %c23_205] : memref<96x400xf32, #tpu.memory_space<vmem>>, vector<16x316xf32>
    %c32_206 = arith.constant 32 : index
    %c0_207 = arith.constant 0 : index
    %162 = vector.load %arg16[%c32_206, %c0_207] : memref<144x632xf32, #tpu.memory_space<vmem>>, vector<16x316xf32>
    tpu.vector_store %arg16[%c32_206, %c0_207], %161 {strides = array<i32>} : memref<144x632xf32, #tpu.memory_space<vmem>>, vector<16x316xf32>,
    %c48_208 = arith.constant 48 : index
    %c23_209 = arith.constant 23 : index
    %163 = vector.load %arg15[%c48_208, %c23_209] : memref<96x400xf32, #tpu.memory_space<vmem>>, vector<16x316xf32>
    %c32_210 = arith.constant 32 : index
    %c316_211 = arith.constant 316 : index
    %164 = vector.load %arg16[%c32_210, %c316_211] : memref<144x632xf32, #tpu.memory_space<vmem>>, vector<16x316xf32>
    tpu.vector_store %arg16[%c32_210, %c316_211], %163 {strides = array<i32>} : memref<144x632xf32, #tpu.memory_space<vmem>>, vector<16x316xf32>,
    %c0_212 = arith.constant 0 : index
    %c41_213 = arith.constant 41 : index
    %165 = vector.load %arg15[%c0_212, %c41_213] : memref<96x400xf32, #tpu.memory_space<vmem>>, vector<16x316xf32>
    %c48_214 = arith.constant 48 : index
    %c0_215 = arith.constant 0 : index
    %166 = vector.load %arg16[%c48_214, %c0_215] : memref<144x632xf32, #tpu.memory_space<vmem>>, vector<16x316xf32>
    tpu.vector_store %arg16[%c48_214, %c0_215], %165 {strides = array<i32>} : memref<144x632xf32, #tpu.memory_space<vmem>>, vector<16x316xf32>,
    %c48_216 = arith.constant 48 : index
    %c41_217 = arith.constant 41 : index
    %167 = vector.load %arg15[%c48_216, %c41_217] : memref<96x400xf32, #tpu.memory_space<vmem>>, vector<16x316xf32>
    %c48_218 = arith.constant 48 : index
    %c316_219 = arith.constant 316 : index
    %168 = vector.load %arg16[%c48_218, %c316_219] : memref<144x632xf32, #tpu.memory_space<vmem>>, vector<16x316xf32>
    tpu.vector_store %arg16[%c48_218, %c316_219], %167 {strides = array<i32>} : memref<144x632xf32, #tpu.memory_space<vmem>>, vector<16x316xf32>,
    %c0_220 = arith.constant 0 : index
    %c42_221 = arith.constant 42 : index
    %169 = vector.load %arg15[%c0_220, %c42_221] : memref<96x400xf32, #tpu.memory_space<vmem>>, vector<16x316xf32>
    %c64_222 = arith.constant 64 : index
    %c0_223 = arith.constant 0 : index
    %170 = vector.load %arg16[%c64_222, %c0_223] : memref<144x632xf32, #tpu.memory_space<vmem>>, vector<16x316xf32>
    tpu.vector_store %arg16[%c64_222, %c0_223], %169 {strides = array<i32>} : memref<144x632xf32, #tpu.memory_space<vmem>>, vector<16x316xf32>,
    %c48_224 = arith.constant 48 : index
    %c42_225 = arith.constant 42 : index
    %171 = vector.load %arg15[%c48_224, %c42_225] : memref<96x400xf32, #tpu.memory_space<vmem>>, vector<16x316xf32>
    %c64_226 = arith.constant 64 : index
    %c316_227 = arith.constant 316 : index
    %172 = vector.load %arg16[%c64_226, %c316_227] : memref<144x632xf32, #tpu.memory_space<vmem>>, vector<16x316xf32>
    tpu.vector_store %arg16[%c64_226, %c316_227], %171 {strides = array<i32>} : memref<144x632xf32, #tpu.memory_space<vmem>>, vector<16x316xf32>,
    %c0_228 = arith.constant 0 : index
    %c43_229 = arith.constant 43 : index
    %173 = vector.load %arg15[%c0_228, %c43_229] : memref<96x400xf32, #tpu.memory_space<vmem>>, vector<16x316xf32>
    %c80_230 = arith.constant 80 : index
    %c0_231 = arith.constant 0 : index
    %174 = vector.load %arg16[%c80_230, %c0_231] : memref<144x632xf32, #tpu.memory_space<vmem>>, vector<16x316xf32>
    tpu.vector_store %arg16[%c80_230, %c0_231], %173 {strides = array<i32>} : memref<144x632xf32, #tpu.memory_space<vmem>>, vector<16x316xf32>,
    %c48_232 = arith.constant 48 : index
    %c43_233 = arith.constant 43 : index
    %175 = vector.load %arg15[%c48_232, %c43_233] : memref<96x400xf32, #tpu.memory_space<vmem>>, vector<16x316xf32>
    %c80_234 = arith.constant 80 : index
    %c316_235 = arith.constant 316 : index
    %176 = vector.load %arg16[%c80_234, %c316_235] : memref<144x632xf32, #tpu.memory_space<vmem>>, vector<16x316xf32>
    tpu.vector_store %arg16[%c80_234, %c316_235], %175 {strides = array<i32>} : memref<144x632xf32, #tpu.memory_space<vmem>>, vector<16x316xf32>,
    %c0_236 = arith.constant 0 : index
    %c61_237 = arith.constant 61 : index
    %177 = vector.load %arg15[%c0_236, %c61_237] : memref<96x400xf32, #tpu.memory_space<vmem>>, vector<16x316xf32>
    %c96_238 = arith.constant 96 : index
    %c0_239 = arith.constant 0 : index
    %178 = vector.load %arg16[%c96_238, %c0_239] : memref<144x632xf32, #tpu.memory_space<vmem>>, vector<16x316xf32>
    tpu.vector_store %arg16[%c96_238, %c0_239], %177 {strides = array<i32>} : memref<144x632xf32, #tpu.memory_space<vmem>>, vector<16x316xf32>,
    %c48_240 = arith.constant 48 : index
    %c61_241 = arith.constant 61 : index
    %179 = vector.load %arg15[%c48_240, %c61_241] : memref<96x400xf32, #tpu.memory_space<vmem>>, vector<16x316xf32>
    %c96_242 = arith.constant 96 : index
    %c316_243 = arith.constant 316 : index
    %180 = vector.load %arg16[%c96_242, %c316_243] : memref<144x632xf32, #tpu.memory_space<vmem>>, vector<16x316xf32>
    tpu.vector_store %arg16[%c96_242, %c316_243], %179 {strides = array<i32>} : memref<144x632xf32, #tpu.memory_space<vmem>>, vector<16x316xf32>,
    %c0_244 = arith.constant 0 : index
    %c62_245 = arith.constant 62 : index
    %181 = vector.load %arg15[%c0_244, %c62_245] : memref<96x400xf32, #tpu.memory_space<vmem>>, vector<16x316xf32>
    %c112 = arith.constant 112 : index
    %c0_246 = arith.constant 0 : index
    %182 = vector.load %arg16[%c112, %c0_246] : memref<144x632xf32, #tpu.memory_space<vmem>>, vector<16x316xf32>
    tpu.vector_store %arg16[%c112, %c0_246], %181 {strides = array<i32>} : memref<144x632xf32, #tpu.memory_space<vmem>>, vector<16x316xf32>,
    %c48_247 = arith.constant 48 : index
    %c62_248 = arith.constant 62 : index
    %183 = vector.load %arg15[%c48_247, %c62_248] : memref<96x400xf32, #tpu.memory_space<vmem>>, vector<16x316xf32>
    %c112_249 = arith.constant 112 : index
    %c316_250 = arith.constant 316 : index
    %184 = vector.load %arg16[%c112_249, %c316_250] : memref<144x632xf32, #tpu.memory_space<vmem>>, vector<16x316xf32>
    tpu.vector_store %arg16[%c112_249, %c316_250], %183 {strides = array<i32>} : memref<144x632xf32, #tpu.memory_space<vmem>>, vector<16x316xf32>,
    %c0_251 = arith.constant 0 : index
    %c63_252 = arith.constant 63 : index
    %185 = vector.load %arg15[%c0_251, %c63_252] : memref<96x400xf32, #tpu.memory_space<vmem>>, vector<16x316xf32>
    %c128 = arith.constant 128 : index
    %c0_253 = arith.constant 0 : index
    %186 = vector.load %arg16[%c128, %c0_253] : memref<144x632xf32, #tpu.memory_space<vmem>>, vector<16x316xf32>
    tpu.vector_store %arg16[%c128, %c0_253], %185 {strides = array<i32>} : memref<144x632xf32, #tpu.memory_space<vmem>>, vector<16x316xf32>,
    %c48_254 = arith.constant 48 : index
    %c63_255 = arith.constant 63 : index
    %187 = vector.load %arg15[%c48_254, %c63_255] : memref<96x400xf32, #tpu.memory_space<vmem>>, vector<16x316xf32>
    %c128_256 = arith.constant 128 : index
    %c316_257 = arith.constant 316 : index
    %188 = vector.load %arg16[%c128_256, %c316_257] : memref<144x632xf32, #tpu.memory_space<vmem>>, vector<16x316xf32>
    tpu.vector_store %arg16[%c128_256, %c316_257], %187 {strides = array<i32>} : memref<144x632xf32, #tpu.memory_space<vmem>>, vector<16x316xf32>,
    %c0_258 = arith.constant 0 : index
    %c0_259 = arith.constant 0 : index
    %189 = vector.load %arg16[%c0_258, %c0_259] : memref<144x632xf32, #tpu.memory_space<vmem>>, vector<144x632xf32>
    %c0_260 = arith.constant 0 : index
    %c0_261 = arith.constant 0 : index
    %190 = vector.load %arg4[%c0_260, %c0_261] : memref<16x144xf32, #tpu.memory_space<vmem>>, vector<16x144xf32>
    %cst_262 = arith.constant dense<0.000000e+00> : vector<16x632xf32>
    %191 = tpu.matmul %190, %189, %cst_262 {dimension_numbers = #tpu.dot_dimension_numbers<[1], [0], [0], [1], [0, 0, 1, 1], [], []>} : vector<16x144xf32>, vector<144x632xf32>, vector<16x632xf32> -> vector<16x632xf32>
    %c0_263 = arith.constant 0 : index
    %c0_264 = arith.constant 0 : index
    %192 = vector.load %arg7[%c0_263, %c0_264] : memref<16x1xf32, #tpu.memory_space<vmem>>, vector<16x1xf32>
    %193 = vector.broadcast %192 : vector<16x1xf32> to vector<16x632xf32>
    %194 = arith.addf %191, %193 : vector<16x632xf32>
    %195 = vector.broadcast %4 : vector<1x632xf32> to vector<16x632xf32>
    %196 = arith.mulf %194, %195 : vector<16x632xf32>
    %cst_265 = arith.constant dense<0.000000e+00> : vector<16xf32>
    %197 = vector.multi_reduction <add>, %196, %cst_265 [1] : vector<16x632xf32> to vector<16xf32>
    %198 = vector.shape_cast %197 : vector<16xf32> to vector<16x1xf32>
    %199 = arith.mulf %196, %194 : vector<16x632xf32>
    %cst_266 = arith.constant dense<0.000000e+00> : vector<16xf32>
    %200 = vector.multi_reduction <add>, %199, %cst_266 [1] : vector<16x632xf32> to vector<16xf32>
    %201 = vector.shape_cast %200 : vector<16xf32> to vector<16x1xf32>
    %cst_267 = arith.constant 0.001953125 : f32
    %202 = vector.broadcast %cst_267 : f32 to vector<16x1xf32>
    %203 = arith.mulf %198, %202 : vector<16x1xf32>
    %cst_268 = arith.constant 0.001953125 : f32
    %204 = vector.broadcast %cst_268 : f32 to vector<16x1xf32>
    %205 = arith.mulf %201, %204 : vector<16x1xf32>
    %206 = arith.mulf %203, %203 : vector<16x1xf32>
    %207 = arith.subf %205, %206 : vector<16x1xf32>
    %208 = vector.broadcast %203 : vector<16x1xf32> to vector<16x632xf32>
    %209 = arith.subf %194, %208 : vector<16x632xf32>
    %cst_269 = arith.constant 9.99999974E-6 : f32
    %210 = vector.broadcast %cst_269 : f32 to vector<16x1xf32>
    %211 = arith.addf %207, %210 : vector<16x1xf32>
    %212 = math.rsqrt %211 : vector<16x1xf32>
    %213 = vector.broadcast %212 : vector<16x1xf32> to vector<16x632xf32>
    %214 = arith.mulf %209, %213 : vector<16x632xf32>
    %c0_270 = arith.constant 0 : index
    %c0_271 = arith.constant 0 : index
    %215 = vector.load %arg10[%c0_270, %c0_271] : memref<16x1xf32, #tpu.memory_space<vmem>>, vector<16x1xf32>
    %216 = vector.broadcast %215 : vector<16x1xf32> to vector<16x632xf32>
    %217 = arith.mulf %214, %216 : vector<16x632xf32>
    %c0_272 = arith.constant 0 : index
    %c0_273 = arith.constant 0 : index
    %218 = vector.load %arg13[%c0_272, %c0_273] : memref<16x1xf32, #tpu.memory_space<vmem>>, vector<16x1xf32>
    %219 = vector.broadcast %218 : vector<16x1xf32> to vector<16x632xf32>
    %220 = arith.addf %217, %219 : vector<16x632xf32>
    %cst_274 = arith.constant 0.000000e+00 : f32
    %221 = vector.broadcast %cst_274 : f32 to vector<16x632xf32>
    %222 = arith.cmpf ogt, %220, %221 : vector<16x632xf32>
    %cst_275 = arith.constant 5.000000e-01 : f32
    %223 = vector.broadcast %cst_275 : f32 to vector<16x632xf32>
    %224 = arith.mulf %223, %220 : vector<16x632xf32>
    %225 = math.tanh %224 : vector<16x632xf32>
    %226 = math.exp %220 : vector<16x632xf32>
    %cst_276 = arith.constant 1.000000e+00 : f32
    %227 = vector.broadcast %cst_276 : f32 to vector<16x632xf32>
    %228 = arith.addf %226, %227 : vector<16x632xf32>
    %229 = arith.mulf %225, %228 : vector<16x632xf32>
    %230 = arith.select %222, %220, %229 : vector<16x632xi1>, vector<16x632xf32>
    %231 = vector.broadcast %4 : vector<1x632xf32> to vector<16x632xf32>
    %232 = arith.mulf %230, %231 : vector<16x632xf32>
    %233 = vector.extract_strided_slice %232 {offsets = [0, 0], sizes = [16, 316], strides = [1, 1]} : vector<16x632xf32> to vector<16x316xf32>
    %c16_277 = arith.constant 16 : index
    %c42_278 = arith.constant 42 : index
    %234 = vector.load %arg15[%c16_277, %c42_278] : memref<96x400xf32, #tpu.memory_space<vmem>>, vector<16x316xf32>
    tpu.vector_store %arg15[%c16_277, %c42_278], %233 {strides = array<i32>} : memref<96x400xf32, #tpu.memory_space<vmem>>, vector<16x316xf32>,
    %235 = vector.extract_strided_slice %232 {offsets = [0, 316], sizes = [16, 316], strides = [1, 1]} : vector<16x632xf32> to vector<16x316xf32>
    %c64_279 = arith.constant 64 : index
    %c42_280 = arith.constant 42 : index
    %236 = vector.load %arg15[%c64_279, %c42_280] : memref<96x400xf32, #tpu.memory_space<vmem>>, vector<16x316xf32>
    tpu.vector_store %arg15[%c64_279, %c42_280], %235 {strides = array<i32>} : memref<96x400xf32, #tpu.memory_space<vmem>>, vector<16x316xf32>,
    %c16_281 = arith.constant 16 : index
    %c21_282 = arith.constant 21 : index
    %237 = vector.load %arg15[%c16_281, %c21_282] : memref<96x400xf32, #tpu.memory_space<vmem>>, vector<16x316xf32>
    %c0_283 = arith.constant 0 : index
    %c0_284 = arith.constant 0 : index
    %238 = vector.load %arg16[%c0_283, %c0_284] : memref<144x632xf32, #tpu.memory_space<vmem>>, vector<16x316xf32>
    tpu.vector_store %arg16[%c0_283, %c0_284], %237 {strides = array<i32>} : memref<144x632xf32, #tpu.memory_space<vmem>>, vector<16x316xf32>,
    %c64_285 = arith.constant 64 : index
    %c21_286 = arith.constant 21 : index
    %239 = vector.load %arg15[%c64_285, %c21_286] : memref<96x400xf32, #tpu.memory_space<vmem>>, vector<16x316xf32>
    %c0_287 = arith.constant 0 : index
    %c316_288 = arith.constant 316 : index
    %240 = vector.load %arg16[%c0_287, %c316_288] : memref<144x632xf32, #tpu.memory_space<vmem>>, vector<16x316xf32>
    tpu.vector_store %arg16[%c0_287, %c316_288], %239 {strides = array<i32>} : memref<144x632xf32, #tpu.memory_space<vmem>>, vector<16x316xf32>,
    %c16_289 = arith.constant 16 : index
    %c22_290 = arith.constant 22 : index
    %241 = vector.load %arg15[%c16_289, %c22_290] : memref<96x400xf32, #tpu.memory_space<vmem>>, vector<16x316xf32>
    %c16_291 = arith.constant 16 : index
    %c0_292 = arith.constant 0 : index
    %242 = vector.load %arg16[%c16_291, %c0_292] : memref<144x632xf32, #tpu.memory_space<vmem>>, vector<16x316xf32>
    tpu.vector_store %arg16[%c16_291, %c0_292], %241 {strides = array<i32>} : memref<144x632xf32, #tpu.memory_space<vmem>>, vector<16x316xf32>,
    %c64_293 = arith.constant 64 : index
    %c22_294 = arith.constant 22 : index
    %243 = vector.load %arg15[%c64_293, %c22_294] : memref<96x400xf32, #tpu.memory_space<vmem>>, vector<16x316xf32>
    %c16_295 = arith.constant 16 : index
    %c316_296 = arith.constant 316 : index
    %244 = vector.load %arg16[%c16_295, %c316_296] : memref<144x632xf32, #tpu.memory_space<vmem>>, vector<16x316xf32>
    tpu.vector_store %arg16[%c16_295, %c316_296], %243 {strides = array<i32>} : memref<144x632xf32, #tpu.memory_space<vmem>>, vector<16x316xf32>,
    %c16_297 = arith.constant 16 : index
    %c23_298 = arith.constant 23 : index
    %245 = vector.load %arg15[%c16_297, %c23_298] : memref<96x400xf32, #tpu.memory_space<vmem>>, vector<16x316xf32>
    %c32_299 = arith.constant 32 : index
    %c0_300 = arith.constant 0 : index
    %246 = vector.load %arg16[%c32_299, %c0_300] : memref<144x632xf32, #tpu.memory_space<vmem>>, vector<16x316xf32>
    tpu.vector_store %arg16[%c32_299, %c0_300], %245 {strides = array<i32>} : memref<144x632xf32, #tpu.memory_space<vmem>>, vector<16x316xf32>,
    %c64_301 = arith.constant 64 : index
    %c23_302 = arith.constant 23 : index
    %247 = vector.load %arg15[%c64_301, %c23_302] : memref<96x400xf32, #tpu.memory_space<vmem>>, vector<16x316xf32>
    %c32_303 = arith.constant 32 : index
    %c316_304 = arith.constant 316 : index
    %248 = vector.load %arg16[%c32_303, %c316_304] : memref<144x632xf32, #tpu.memory_space<vmem>>, vector<16x316xf32>
    tpu.vector_store %arg16[%c32_303, %c316_304], %247 {strides = array<i32>} : memref<144x632xf32, #tpu.memory_space<vmem>>, vector<16x316xf32>,
    %c16_305 = arith.constant 16 : index
    %c41_306 = arith.constant 41 : index
    %249 = vector.load %arg15[%c16_305, %c41_306] : memref<96x400xf32, #tpu.memory_space<vmem>>, vector<16x316xf32>
    %c48_307 = arith.constant 48 : index
    %c0_308 = arith.constant 0 : index
    %250 = vector.load %arg16[%c48_307, %c0_308] : memref<144x632xf32, #tpu.memory_space<vmem>>, vector<16x316xf32>
    tpu.vector_store %arg16[%c48_307, %c0_308], %249 {strides = array<i32>} : memref<144x632xf32, #tpu.memory_space<vmem>>, vector<16x316xf32>,
    %c64_309 = arith.constant 64 : index
    %c41_310 = arith.constant 41 : index
    %251 = vector.load %arg15[%c64_309, %c41_310] : memref<96x400xf32, #tpu.memory_space<vmem>>, vector<16x316xf32>
    %c48_311 = arith.constant 48 : index
    %c316_312 = arith.constant 316 : index
    %252 = vector.load %arg16[%c48_311, %c316_312] : memref<144x632xf32, #tpu.memory_space<vmem>>, vector<16x316xf32>
    tpu.vector_store %arg16[%c48_311, %c316_312], %251 {strides = array<i32>} : memref<144x632xf32, #tpu.memory_space<vmem>>, vector<16x316xf32>,
    %c16_313 = arith.constant 16 : index
    %c42_314 = arith.constant 42 : index
    %253 = vector.load %arg15[%c16_313, %c42_314] : memref<96x400xf32, #tpu.memory_space<vmem>>, vector<16x316xf32>
    %c64_315 = arith.constant 64 : index
    %c0_316 = arith.constant 0 : index
    %254 = vector.load %arg16[%c64_315, %c0_316] : memref<144x632xf32, #tpu.memory_space<vmem>>, vector<16x316xf32>
    tpu.vector_store %arg16[%c64_315, %c0_316], %253 {strides = array<i32>} : memref<144x632xf32, #tpu.memory_space<vmem>>, vector<16x316xf32>,
    %c64_317 = arith.constant 64 : index
    %c42_318 = arith.constant 42 : index
    %255 = vector.load %arg15[%c64_317, %c42_318] : memref<96x400xf32, #tpu.memory_space<vmem>>, vector<16x316xf32>
    %c64_319 = arith.constant 64 : index
    %c316_320 = arith.constant 316 : index
    %256 = vector.load %arg16[%c64_319, %c316_320] : memref<144x632xf32, #tpu.memory_space<vmem>>, vector<16x316xf32>
    tpu.vector_store %arg16[%c64_319, %c316_320], %255 {strides = array<i32>} : memref<144x632xf32, #tpu.memory_space<vmem>>, vector<16x316xf32>,
    %c16_321 = arith.constant 16 : index
    %c43_322 = arith.constant 43 : index
    %257 = vector.load %arg15[%c16_321, %c43_322] : memref<96x400xf32, #tpu.memory_space<vmem>>, vector<16x316xf32>
    %c80_323 = arith.constant 80 : index
    %c0_324 = arith.constant 0 : index
    %258 = vector.load %arg16[%c80_323, %c0_324] : memref<144x632xf32, #tpu.memory_space<vmem>>, vector<16x316xf32>
    tpu.vector_store %arg16[%c80_323, %c0_324], %257 {strides = array<i32>} : memref<144x632xf32, #tpu.memory_space<vmem>>, vector<16x316xf32>,
    %c64_325 = arith.constant 64 : index
    %c43_326 = arith.constant 43 : index
    %259 = vector.load %arg15[%c64_325, %c43_326] : memref<96x400xf32, #tpu.memory_space<vmem>>, vector<16x316xf32>
    %c80_327 = arith.constant 80 : index
    %c316_328 = arith.constant 316 : index
    %260 = vector.load %arg16[%c80_327, %c316_328] : memref<144x632xf32, #tpu.memory_space<vmem>>, vector<16x316xf32>
    tpu.vector_store %arg16[%c80_327, %c316_328], %259 {strides = array<i32>} : memref<144x632xf32, #tpu.memory_space<vmem>>, vector<16x316xf32>,
    %c16_329 = arith.constant 16 : index
    %c61_330 = arith.constant 61 : index
    %261 = vector.load %arg15[%c16_329, %c61_330] : memref<96x400xf32, #tpu.memory_space<vmem>>, vector<16x316xf32>
    %c96_331 = arith.constant 96 : index
    %c0_332 = arith.constant 0 : index
    %262 = vector.load %arg16[%c96_331, %c0_332] : memref<144x632xf32, #tpu.memory_space<vmem>>, vector<16x316xf32>
    tpu.vector_store %arg16[%c96_331, %c0_332], %261 {strides = array<i32>} : memref<144x632xf32, #tpu.memory_space<vmem>>, vector<16x316xf32>,
    %c64_333 = arith.constant 64 : index
    %c61_334 = arith.constant 61 : index
    %263 = vector.load %arg15[%c64_333, %c61_334] : memref<96x400xf32, #tpu.memory_space<vmem>>, vector<16x316xf32>
    %c96_335 = arith.constant 96 : index
    %c316_336 = arith.constant 316 : index
    %264 = vector.load %arg16[%c96_335, %c316_336] : memref<144x632xf32, #tpu.memory_space<vmem>>, vector<16x316xf32>
    tpu.vector_store %arg16[%c96_335, %c316_336], %263 {strides = array<i32>} : memref<144x632xf32, #tpu.memory_space<vmem>>, vector<16x316xf32>,
    %c16_337 = arith.constant 16 : index
    %c62_338 = arith.constant 62 : index
    %265 = vector.load %arg15[%c16_337, %c62_338] : memref<96x400xf32, #tpu.memory_space<vmem>>, vector<16x316xf32>
    %c112_339 = arith.constant 112 : index
    %c0_340 = arith.constant 0 : index
    %266 = vector.load %arg16[%c112_339, %c0_340] : memref<144x632xf32, #tpu.memory_space<vmem>>, vector<16x316xf32>
    tpu.vector_store %arg16[%c112_339, %c0_340], %265 {strides = array<i32>} : memref<144x632xf32, #tpu.memory_space<vmem>>, vector<16x316xf32>,
    %c64_341 = arith.constant 64 : index
    %c62_342 = arith.constant 62 : index
    %267 = vector.load %arg15[%c64_341, %c62_342] : memref<96x400xf32, #tpu.memory_space<vmem>>, vector<16x316xf32>
    %c112_343 = arith.constant 112 : index
    %c316_344 = arith.constant 316 : index
    %268 = vector.load %arg16[%c112_343, %c316_344] : memref<144x632xf32, #tpu.memory_space<vmem>>, vector<16x316xf32>
    tpu.vector_store %arg16[%c112_343, %c316_344], %267 {strides = array<i32>} : memref<144x632xf32, #tpu.memory_space<vmem>>, vector<16x316xf32>,
    %c16_345 = arith.constant 16 : index
    %c63_346 = arith.constant 63 : index
    %269 = vector.load %arg15[%c16_345, %c63_346] : memref<96x400xf32, #tpu.memory_space<vmem>>, vector<16x316xf32>
    %c128_347 = arith.constant 128 : index
    %c0_348 = arith.constant 0 : index
    %270 = vector.load %arg16[%c128_347, %c0_348] : memref<144x632xf32, #tpu.memory_space<vmem>>, vector<16x316xf32>
    tpu.vector_store %arg16[%c128_347, %c0_348], %269 {strides = array<i32>} : memref<144x632xf32, #tpu.memory_space<vmem>>, vector<16x316xf32>,
    %c64_349 = arith.constant 64 : index
    %c63_350 = arith.constant 63 : index
    %271 = vector.load %arg15[%c64_349, %c63_350] : memref<96x400xf32, #tpu.memory_space<vmem>>, vector<16x316xf32>
    %c128_351 = arith.constant 128 : index
    %c316_352 = arith.constant 316 : index
    %272 = vector.load %arg16[%c128_351, %c316_352] : memref<144x632xf32, #tpu.memory_space<vmem>>, vector<16x316xf32>
    tpu.vector_store %arg16[%c128_351, %c316_352], %271 {strides = array<i32>} : memref<144x632xf32, #tpu.memory_space<vmem>>, vector<16x316xf32>,
    %c0_353 = arith.constant 0 : index
    %c0_354 = arith.constant 0 : index
    %273 = vector.load %arg16[%c0_353, %c0_354] : memref<144x632xf32, #tpu.memory_space<vmem>>, vector<144x632xf32>
    %c0_355 = arith.constant 0 : index
    %c0_356 = arith.constant 0 : index
    %274 = vector.load %arg5[%c0_355, %c0_356] : memref<16x144xf32, #tpu.memory_space<vmem>>, vector<16x144xf32>
    %cst_357 = arith.constant dense<0.000000e+00> : vector<16x632xf32>
    %275 = tpu.matmul %274, %273, %cst_357 {dimension_numbers = #tpu.dot_dimension_numbers<[1], [0], [0], [1], [0, 0, 1, 1], [], []>} : vector<16x144xf32>, vector<144x632xf32>, vector<16x632xf32> -> vector<16x632xf32>
    %c0_358 = arith.constant 0 : index
    %c0_359 = arith.constant 0 : index
    %276 = vector.load %arg8[%c0_358, %c0_359] : memref<16x1xf32, #tpu.memory_space<vmem>>, vector<16x1xf32>
    %277 = vector.broadcast %276 : vector<16x1xf32> to vector<16x632xf32>
    %278 = arith.addf %275, %277 : vector<16x632xf32>
    %279 = vector.broadcast %4 : vector<1x632xf32> to vector<16x632xf32>
    %280 = arith.mulf %278, %279 : vector<16x632xf32>
    %cst_360 = arith.constant dense<0.000000e+00> : vector<16xf32>
    %281 = vector.multi_reduction <add>, %280, %cst_360 [1] : vector<16x632xf32> to vector<16xf32>
    %282 = vector.shape_cast %281 : vector<16xf32> to vector<16x1xf32>
    %283 = arith.mulf %280, %278 : vector<16x632xf32>
    %cst_361 = arith.constant dense<0.000000e+00> : vector<16xf32>
    %284 = vector.multi_reduction <add>, %283, %cst_361 [1] : vector<16x632xf32> to vector<16xf32>
    %285 = vector.shape_cast %284 : vector<16xf32> to vector<16x1xf32>
    %cst_362 = arith.constant 0.001953125 : f32
    %286 = vector.broadcast %cst_362 : f32 to vector<16x1xf32>
    %287 = arith.mulf %282, %286 : vector<16x1xf32>
    %cst_363 = arith.constant 0.001953125 : f32
    %288 = vector.broadcast %cst_363 : f32 to vector<16x1xf32>
    %289 = arith.mulf %285, %288 : vector<16x1xf32>
    %290 = arith.mulf %287, %287 : vector<16x1xf32>
    %291 = arith.subf %289, %290 : vector<16x1xf32>
    %292 = vector.broadcast %287 : vector<16x1xf32> to vector<16x632xf32>
    %293 = arith.subf %278, %292 : vector<16x632xf32>
    %cst_364 = arith.constant 9.99999974E-6 : f32
    %294 = vector.broadcast %cst_364 : f32 to vector<16x1xf32>
    %295 = arith.addf %291, %294 : vector<16x1xf32>
    %296 = math.rsqrt %295 : vector<16x1xf32>
    %297 = vector.broadcast %296 : vector<16x1xf32> to vector<16x632xf32>
    %298 = arith.mulf %293, %297 : vector<16x632xf32>
    %c0_365 = arith.constant 0 : index
    %c0_366 = arith.constant 0 : index
    %299 = vector.load %arg11[%c0_365, %c0_366] : memref<16x1xf32, #tpu.memory_space<vmem>>, vector<16x1xf32>
    %300 = vector.broadcast %299 : vector<16x1xf32> to vector<16x632xf32>
    %301 = arith.mulf %298, %300 : vector<16x632xf32>
    %c0_367 = arith.constant 0 : index
    %c0_368 = arith.constant 0 : index
    %302 = vector.load %arg14[%c0_367, %c0_368] : memref<16x1xf32, #tpu.memory_space<vmem>>, vector<16x1xf32>
    %303 = vector.broadcast %302 : vector<16x1xf32> to vector<16x632xf32>
    %304 = arith.addf %301, %303 : vector<16x632xf32>
    %cst_369 = arith.constant 0.000000e+00 : f32
    %305 = vector.broadcast %cst_369 : f32 to vector<16x632xf32>
    %306 = arith.cmpf ogt, %304, %305 : vector<16x632xf32>
    %cst_370 = arith.constant 5.000000e-01 : f32
    %307 = vector.broadcast %cst_370 : f32 to vector<16x632xf32>
    %308 = arith.mulf %307, %304 : vector<16x632xf32>
    %309 = math.tanh %308 : vector<16x632xf32>
    %310 = math.exp %304 : vector<16x632xf32>
    %cst_371 = arith.constant 1.000000e+00 : f32
    %311 = vector.broadcast %cst_371 : f32 to vector<16x632xf32>
    %312 = arith.addf %310, %311 : vector<16x632xf32>
    %313 = arith.mulf %309, %312 : vector<16x632xf32>
    %314 = arith.select %306, %304, %313 : vector<16x632xi1>, vector<16x632xf32>
    %315 = vector.broadcast %4 : vector<1x632xf32> to vector<16x632xf32>
    %316 = arith.mulf %314, %315 : vector<16x632xf32>
    %317 = vector.extract_strided_slice %316 {offsets = [0, 0], sizes = [16, 316], strides = [1, 1]} : vector<16x632xf32> to vector<16x316xf32>
    %c32_372 = arith.constant 32 : index
    %c42_373 = arith.constant 42 : index
    %318 = vector.load %arg15[%c32_372, %c42_373] : memref<96x400xf32, #tpu.memory_space<vmem>>, vector<16x316xf32>
    tpu.vector_store %arg15[%c32_372, %c42_373], %317 {strides = array<i32>} : memref<96x400xf32, #tpu.memory_space<vmem>>, vector<16x316xf32>,
    %319 = vector.extract_strided_slice %316 {offsets = [0, 316], sizes = [16, 316], strides = [1, 1]} : vector<16x632xf32> to vector<16x316xf32>
    %c80_374 = arith.constant 80 : index
    %c42_375 = arith.constant 42 : index
    %320 = vector.load %arg15[%c80_374, %c42_375] : memref<96x400xf32, #tpu.memory_space<vmem>>, vector<16x316xf32>
    tpu.vector_store %arg15[%c80_374, %c42_375], %319 {strides = array<i32>} : memref<96x400xf32, #tpu.memory_space<vmem>>, vector<16x316xf32>,
    return
  }
  func.func @transform_0(%arg0: i32) -> (i32, i32) {
    %c0_i32 = arith.constant 0 : i32
    %c0_i32_0 = arith.constant 0 : i32
    %c0_i32_1 = arith.constant 0 : i32
    return %c0_i32, %c0_i32_0 : i32, i32
  }
  func.func @transform_1(%arg0: i32) -> (i32, i32) {
    %c0_i32 = arith.constant 0 : i32
    %c0_i32_0 = arith.constant 0 : i32
    %c0_i32_1 = arith.constant 0 : i32
    return %c0_i32, %c0_i32_0 : i32, i32
  }
  func.func @transform_2(%arg0: i32) -> (i32, i32) {
    %c0_i32 = arith.constant 0 : i32
    %c0_i32_0 = arith.constant 0 : i32
    %c0_i32_1 = arith.constant 0 : i32
    return %c0_i32, %c0_i32_0 : i32, i32
  }
  func.func @transform_3(%arg0: i32) -> (i32, i32) {
    %c0_i32 = arith.constant 0 : i32
    %c0_i32_0 = arith.constant 0 : i32
    %c0_i32_1 = arith.constant 0 : i32
    return %c0_i32, %c0_i32_0 : i32, i32
  }
  func.func @transform_4(%arg0: i32) -> (i32, i32) {
    %c0_i32 = arith.constant 0 : i32
    %c0_i32_0 = arith.constant 0 : i32
    %c0_i32_1 = arith.constant 0 : i32
    return %c0_i32, %c0_i32_0 : i32, i32
  }
  func.func @transform_5(%arg0: i32) -> (i32, i32) {
    %c0_i32 = arith.constant 0 : i32
    %c0_i32_0 = arith.constant 0 : i32
    %c0_i32_1 = arith.constant 0 : i32
    return %c0_i32, %c0_i32_0 : i32, i32
  }
  func.func @transform_6(%arg0: i32) -> (i32, i32) {
    %c0_i32 = arith.constant 0 : i32
    %c0_i32_0 = arith.constant 0 : i32
    %c0_i32_1 = arith.constant 0 : i32
    return %c0_i32, %c0_i32_0 : i32, i32
  }
  func.func @transform_7(%arg0: i32) -> (i32, i32) {
    %c0_i32 = arith.constant 0 : i32
    %c0_i32_0 = arith.constant 0 : i32
    %c0_i32_1 = arith.constant 0 : i32
    return %c0_i32, %c0_i32_0 : i32, i32
  }
  func.func @transform_8(%arg0: i32) -> (i32, i32) {
    %c0_i32 = arith.constant 0 : i32
    %c0_i32_0 = arith.constant 0 : i32
    %c0_i32_1 = arith.constant 0 : i32
    return %c0_i32, %c0_i32_0 : i32, i32
  }
  func.func @transform_9(%arg0: i32) -> (i32, i32) {
    %c0_i32 = arith.constant 0 : i32
    %c0_i32_0 = arith.constant 0 : i32
    %c0_i32_1 = arith.constant 0 : i32
    return %c0_i32, %c0_i32_0 : i32, i32
  }
  func.func @transform_10(%arg0: i32) -> (i32, i32) {
    %c0_i32 = arith.constant 0 : i32
    %c0_i32_0 = arith.constant 0 : i32
    %c0_i32_1 = arith.constant 0 : i32
    return %c0_i32, %c0_i32_0 : i32, i32
  }
  func.func @transform_11(%arg0: i32) -> (i32, i32) {
    %c0_i32 = arith.constant 0 : i32
    %c0_i32_0 = arith.constant 0 : i32
    %c0_i32_1 = arith.constant 0 : i32
    return %c0_i32, %c0_i32_0 : i32, i32
  }
  func.func @transform_12(%arg0: i32) -> (i32, i32) {
    %c0_i32 = arith.constant 0 : i32
    %c0_i32_0 = arith.constant 0 : i32
    %c0_i32_1 = arith.constant 0 : i32
    return %c0_i32, %c0_i32_0 : i32, i32
  }
  func.func @transform_13(%arg0: i32) -> (i32, i32) {
    %c0_i32 = arith.constant 0 : i32
    %c0_i32_0 = arith.constant 0 : i32
    %c0_i32_1 = arith.constant 0 : i32
    return %c0_i32, %c0_i32_0 : i32, i32
  }
  func.func @transform_14(%arg0: i32) -> (i32, i32) {
    %c0_i32 = arith.constant 0 : i32
    %c0_i32_0 = arith.constant 0 : i32
    %c0_i32_1 = arith.constant 0 : i32
    return %c0_i32, %c0_i32_0 : i32, i32
  }
}

</mosaic_0001>

<llo_original>
// kernel: _lambda_.1
$region0: #{_lambda_.1}
  #allocation0 [shape = 'u32[]', space=smem, size = 0x4, offset = 0x4, fixed_abs, tag = 'smem constant byte address 0x4 - core index']
  #allocation1 [shape = 'u32[72,128]{1,0:T(1,128)}', space=vmem, size = 0x9000, scoped, tag = 'internal scratch']
  #allocation2 [shape = 'f32[144,632]{1,0:T(8,128)}', space=vmem, size = 0x5a000, scoped, tag = 'scratch operand']
  %s0 = inlined_call_operand.vmem [shape: f32[8,400], index: 0, kind: input, shape index: {}]
  %s1 = inlined_call_operand.vmem [shape: f32[1,632], index: 1, kind: input, shape index: {}]
  %s2 = inlined_call_operand.vmem [shape: f32[16,100], index: 2, kind: input, shape index: {}]
  %s3 = inlined_call_operand.vmem [shape: f32[16,144], index: 3, kind: input, shape index: {}]
  %s4 = inlined_call_operand.vmem [shape: f32[16,144], index: 4, kind: input, shape index: {}]
  %s5 = inlined_call_operand.vmem [shape: f32[16,1], index: 5, kind: input, shape index: {}]
  %s6 = inlined_call_operand.vmem [shape: f32[16,1], index: 6, kind: input, shape index: {}]
  %s7 = inlined_call_operand.vmem [shape: f32[16,1], index: 7, kind: input, shape index: {}]
  %s8 = inlined_call_operand.vmem [shape: f32[16,1], index: 8, kind: input, shape index: {}]
  %s9 = inlined_call_operand.vmem [shape: f32[16,1], index: 9, kind: input, shape index: {}]
  %s10 = inlined_call_operand.vmem [shape: f32[16,1], index: 10, kind: input, shape index: {}]
  %s11 = inlined_call_operand.vmem [shape: f32[16,1], index: 11, kind: input, shape index: {}]
  %s12 = inlined_call_operand.vmem [shape: f32[16,1], index: 12, kind: input, shape index: {}]
  %s13 = inlined_call_operand.vmem [shape: f32[16,1], index: 13, kind: input, shape index: {}]
  %s14 = inlined_call_operand.vmem [shape: f32[96,400], index: 14, kind: output, shape index: {}]
  %s15 = sld [smem:[#allocation0]]
  $region66: #{_lambda_.1} parent=0
    _
  %s17 = ssub.s32 1, %s15
  %s18 = scalar_select 0, %s17, %s15
  // Predicated region
  $region2: #{_lambda_.1} parent=0 // pred_check
    _
  $region3: #{_lambda_.1} parent=0 // pred_check_branch
    %20 = sbr.rel (0) target = $region5
  $region4: #{_lambda_.1} parent=0 // pred_region
    _
  $region5: #{_lambda_.1} parent=0 // pred_fallthru
    _
  // Predicated region
  $region6: #{_lambda_.1} parent=0 // pred_check
    _
  $region7: #{_lambda_.1} parent=0 // pred_check_branch
    %22 = sbr.rel (0) target = $region9
  $region8: #{_lambda_.1} parent=0 // pred_region
    _
  $region9: #{_lambda_.1} parent=0 // pred_fallthru
    _
  // Predicated region
  $region10: #{_lambda_.1} parent=0 // pred_check
    _
  $region11: #{_lambda_.1} parent=0 // pred_check_branch
    %24 = sbr.rel (0) target = $region13
  $region12: #{_lambda_.1} parent=0 // pred_region
    _
  $region13: #{_lambda_.1} parent=0 // pred_fallthru
    _
  // Predicated region
  $region14: #{_lambda_.1} parent=0 // pred_check
    _
  $region15: #{_lambda_.1} parent=0 // pred_check_branch
    %26 = sbr.rel (0) target = $region17
  $region16: #{_lambda_.1} parent=0 // pred_region
    _
  $region17: #{_lambda_.1} parent=0 // pred_fallthru
    _
  // Predicated region
  $region18: #{_lambda_.1} parent=0 // pred_check
    _
  $region19: #{_lambda_.1} parent=0 // pred_check_branch
    %28 = sbr.rel (0) target = $region21
  $region20: #{_lambda_.1} parent=0 // pred_region
    _
  $region21: #{_lambda_.1} parent=0 // pred_fallthru
    _
  // Predicated region
  $region22: #{_lambda_.1} parent=0 // pred_check
    _
  $region23: #{_lambda_.1} parent=0 // pred_check_branch
    %30 = sbr.rel (0) target = $region25
  $region24: #{_lambda_.1} parent=0 // pred_region
    _
  $region25: #{_lambda_.1} parent=0 // pred_fallthru
    _
  // Predicated region
  $region26: #{_lambda_.1} parent=0 // pred_check
    _
  $region27: #{_lambda_.1} parent=0 // pred_check_branch
    %32 = sbr.rel (0) target = $region29
  $region28: #{_lambda_.1} parent=0 // pred_region
    _
  $region29: #{_lambda_.1} parent=0 // pred_fallthru
    _
  // Predicated region
  $region30: #{_lambda_.1} parent=0 // pred_check
    _
  $region31: #{_lambda_.1} parent=0 // pred_check_branch
    %34 = sbr.rel (0) target = $region33
  $region32: #{_lambda_.1} parent=0 // pred_region
    _
  $region33: #{_lambda_.1} parent=0 // pred_fallthru
    _
  // Predicated region
  $region34: #{_lambda_.1} parent=0 // pred_check
    _
  $region35: #{_lambda_.1} parent=0 // pred_check_branch
    %36 = sbr.rel (0) target = $region37
  $region36: #{_lambda_.1} parent=0 // pred_region
    _
  $region37: #{_lambda_.1} parent=0 // pred_fallthru
    _
  // Predicated region
  $region38: #{_lambda_.1} parent=0 // pred_check
    _
  $region39: #{_lambda_.1} parent=0 // pred_check_branch
    %38 = sbr.rel (0) target = $region41
  $region40: #{_lambda_.1} parent=0 // pred_region
    _
  $region41: #{_lambda_.1} parent=0 // pred_fallthru
    _
  // Predicated region
  $region42: #{_lambda_.1} parent=0 // pred_check
    _
  $region43: #{_lambda_.1} parent=0 // pred_check_branch
    %40 = sbr.rel (0) target = $region45
  $region44: #{_lambda_.1} parent=0 // pred_region
    _
  $region45: #{_lambda_.1} parent=0 // pred_fallthru
    _
  // Predicated region
  $region46: #{_lambda_.1} parent=0 // pred_check
    _
  $region47: #{_lambda_.1} parent=0 // pred_check_branch
    %42 = sbr.rel (0) target = $region49
  $region48: #{_lambda_.1} parent=0 // pred_region
    _
  $region49: #{_lambda_.1} parent=0 // pred_fallthru
    _
  // Predicated region
  $region50: #{_lambda_.1} parent=0 // pred_check
    _
  $region51: #{_lambda_.1} parent=0 // pred_check_branch
    %44 = sbr.rel (0) target = $region53
  $region52: #{_lambda_.1} parent=0 // pred_region
    _
  $region53: #{_lambda_.1} parent=0 // pred_fallthru
    _
  // Predicated region
  $region54: #{_lambda_.1} parent=0 // pred_check
    _
  $region55: #{_lambda_.1} parent=0 // pred_check_branch
    %46 = sbr.rel (0) target = $region57
  $region56: #{_lambda_.1} parent=0 // pred_region
    _
  $region57: #{_lambda_.1} parent=0 // pred_fallthru
    _
  %vm47 = vcmask 343040
  %48 = vst.msk [vmem:[%s14] sm:$0xff] %vm47, 0.0
  %49 = vst.msk [vmem:[%s14 + $0x20] sm:$0xff] %vm47, 0.0
  %50 = vst.msk [vmem:[%s14 + $0x40] sm:$0xff] %vm47, 0.0
  %51 = vst.msk [vmem:[%s14 + $0x60] sm:$0xff] %vm47, 0.0
  %52 = vst.msk [vmem:[%s14 + $0x80] sm:$0xff] %vm47, 0.0
  %53 = vst.msk [vmem:[%s14 + $0xa0] sm:$0xff] %vm47, 0.0
  %54 = vst.msk [vmem:[%s14 + $0xc0] sm:$0xff] %vm47, 0.0
  %55 = vst.msk [vmem:[%s14 + $0xe0] sm:$0xff] %vm47, 0.0
  %56 = vst.msk [vmem:[%s14 + $0x100] sm:$0xff] %vm47, 0.0
  %57 = vst.msk [vmem:[%s14 + $0x120] sm:$0xff] %vm47, 0.0
  %58 = vst.msk [vmem:[%s14 + $0x140] sm:$0xff] %vm47, 0.0
  %59 = vst.msk [vmem:[%s14 + $0x160] sm:$0xff] %vm47, 0.0
  %vm60 = vcmask 1048368
  %61 = vst.msk [vmem:[%s14 + $0x10] sm:$0xff] %vm60, 0.0
  %vm62 = vcmask 130048
  %63 = vst.msk [vmem:[%s14 + $0x18] sm:$0xff] %vm62, 0.0
  %64 = vst.msk [vmem:[%s14 + $0x30] sm:$0xff] %vm60, 0.0
  %65 = vst.msk [vmem:[%s14 + $0x38] sm:$0xff] %vm62, 0.0
  %66 = vst.msk [vmem:[%s14 + $0x50] sm:$0xff] %vm60, 0.0
  %67 = vst.msk [vmem:[%s14 + $0x58] sm:$0xff] %vm62, 0.0
  %68 = vst.msk [vmem:[%s14 + $0x70] sm:$0xff] %vm60, 0.0
  %69 = vst.msk [vmem:[%s14 + $0x78] sm:$0xff] %vm62, 0.0
  %70 = vst.msk [vmem:[%s14 + $0x90] sm:$0xff] %vm60, 0.0
  %71 = vst.msk [vmem:[%s14 + $0x98] sm:$0xff] %vm62, 0.0
  %72 = vst.msk [vmem:[%s14 + $0xb0] sm:$0xff] %vm60, 0.0
  %73 = vst.msk [vmem:[%s14 + $0xb8] sm:$0xff] %vm62, 0.0
  %74 = vst.msk [vmem:[%s14 + $0xd0] sm:$0xff] %vm60, 0.0
  %75 = vst.msk [vmem:[%s14 + $0xd8] sm:$0xff] %vm62, 0.0
  %76 = vst.msk [vmem:[%s14 + $0xf0] sm:$0xff] %vm60, 0.0
  %77 = vst.msk [vmem:[%s14 + $0xf8] sm:$0xff] %vm62, 0.0
  %78 = vst.msk [vmem:[%s14 + $0x110] sm:$0xff] %vm60, 0.0
  %79 = vst.msk [vmem:[%s14 + $0x118] sm:$0xff] %vm62, 0.0
  %80 = vst.msk [vmem:[%s14 + $0x130] sm:$0xff] %vm60, 0.0
  %81 = vst.msk [vmem:[%s14 + $0x138] sm:$0xff] %vm62, 0.0
  %82 = vst.msk [vmem:[%s14 + $0x150] sm:$0xff] %vm60, 0.0
  %83 = vst.msk [vmem:[%s14 + $0x158] sm:$0xff] %vm62, 0.0
  %84 = vst.msk [vmem:[%s14 + $0x170] sm:$0xff] %vm60, 0.0
  %85 = vst.msk [vmem:[%s14 + $0x178] sm:$0xff] %vm62, 0.0
  %v86 = vld [vmem:[%s1] sm:$0x1f]
  %v87 = vld [vmem:[%s0] sm:$0xf]
  %v88 = vld [vmem:[%s0 + $0x8] sm:$0xf]
  %v89 = vld [vmem:[%s0 + $0x10] sm:$0xf]
  %90 = vst [vmem:[#allocation2] sm:$0xf] %v87
  %91 = vst [vmem:[#allocation2 + $0x8] sm:$0xf] %v88
  %vm92 = vcmask 486400
  %93 = vst.msk [vmem:[#allocation2 + $0x10] sm:$0xf] %vm92, %v89
  %v94 = vld [vmem:[%s0] sm:$0xf0]
  %v95 = vld [vmem:[%s0 + $0x8] sm:$0xf0]
  %v96 = vld [vmem:[%s0 + $0x10] sm:$0xf0]
  %v100 = vrot.slane %v94, 4
  %v101 = vrot.slane %v95, 4
  %v102 = vrot.slane %v96, 4
  %103 = vrot.lane.b32.xlu0 %v100, 60
  %v104 = vpop.permute.xlu0 %103
  %105 = vrot.lane.b32.xlu0 %v101, 60
  %v106 = vpop.permute.xlu0 %105
  %107 = vrot.lane.b32.xlu0 %v102, 60
  %v108 = vpop.permute.xlu0 %107
  %vm109 = vcmask 490496
  %v110 = vsel %vm109, %v104, %v106
  %v111 = vsel %vm109, %v106, %v108
  %vm115 = vcmask 1043936
  %116 = vst.msk [vmem:[#allocation2 + $0x10] sm:$0xf] %vm115, %v104
  %117 = vst [vmem:[#allocation2 + $0x18] sm:$0xf] %v110
  %vm118 = vcmask 977920
  %119 = vst.msk [vmem:[#allocation2 + $0x20] sm:$0xf] %vm118, %v111
  %v120 = vld [vmem:[%s0] sm:$0xf]
  %v121 = vld [vmem:[%s0 + $0x8] sm:$0xf]
  %v122 = vld [vmem:[%s0 + $0x10] sm:$0xf]
  %v126 = vrot.slane %v120, 4
  %v127 = vrot.slane %v121, 4
  %v128 = vrot.slane %v122, 4
  %129 = vrot.lane.b32.xlu0 %v126, 127
  %v130 = vpop.permute.xlu0 %129
  %131 = vrot.lane.b32.xlu0 %v127, 127
  %v132 = vpop.permute.xlu0 %131
  %133 = vrot.lane.b32.xlu0 %v128, 127
  %v134 = vpop.permute.xlu0 %133
  %vm135 = vcmask 1039360
  %v136 = vsel %vm135, %v130, %v132
  %v137 = vsel %vm135, %v132, %v134
  %141 = vst [vmem:[#allocation2] sm:$0xf0] %v136
  %142 = vst [vmem:[#allocation2 + $0x8] sm:$0xf0] %v137
  %vm143 = vcmask 490500
  %144 = vst.msk [vmem:[#allocation2 + $0x10] sm:$0xf0] %vm143, %v134
  %v145 = vld [vmem:[%s0] sm:$0xf0]
  %v146 = vld [vmem:[%s0 + $0x8] sm:$0xf0]
  %v147 = vld [vmem:[%s0 + $0x10] sm:$0xf0]
  %151 = vrot.lane.b32.xlu0 %v145, 59
  %v152 = vpop.permute.xlu0 %151
  %153 = vrot.lane.b32.xlu0 %v146, 59
  %v154 = vpop.permute.xlu0 %153
  %155 = vrot.lane.b32.xlu0 %v147, 59
  %v156 = vpop.permute.xlu0 %155
  %vm157 = vcmask 482304
  %v158 = vsel %vm157, %v152, %v154
  %v159 = vsel %vm157, %v154, %v156
  %vm163 = vcmask 1048036
  %164 = vst.msk [vmem:[#allocation2 + $0x10] sm:$0xf0] %vm163, %v152
  %165 = vst [vmem:[#allocation2 + $0x18] sm:$0xf0] %v158
  %vm166 = vcmask 982020
  %167 = vst.msk [vmem:[#allocation2 + $0x20] sm:$0xf0] %vm166, %v159
  %v168 = vld [vmem:[%s0] sm:$0xf]
  %v169 = vld [vmem:[%s0 + $0x8] sm:$0xf]
  %v170 = vld [vmem:[%s0 + $0x10] sm:$0xf]
  %174 = vrot.lane.b32.xlu0 %v168, 126
  %v175 = vpop.permute.xlu0 %174
  %176 = vrot.lane.b32.xlu0 %v169, 126
  %v177 = vpop.permute.xlu0 %176
  %178 = vrot.lane.b32.xlu0 %v170, 126
  %v179 = vpop.permute.xlu0 %178
  %vm180 = vcmask 1031168
  %v181 = vsel %vm180, %v175, %v177
  %v182 = vsel %vm180, %v177, %v179
  %186 = vst [vmem:[#allocation2 + $0x28] sm:$0xf] %v181
  %187 = vst [vmem:[#allocation2 + $0x30] sm:$0xf] %v182
  %188 = vst.msk [vmem:[#allocation2 + $0x38] sm:$0xf] %vm92, %v179
  %v189 = vld [vmem:[%s0] sm:$0xf0]
  %v190 = vld [vmem:[%s0 + $0x8] sm:$0xf0]
  %v191 = vld [vmem:[%s0 + $0x10] sm:$0xf0]
  %v195 = vrot.slane %v189, 4
  %v196 = vrot.slane %v190, 4
  %v197 = vrot.slane %v191, 4
  %198 = vrot.lane.b32.xlu0 %v195, 58
  %v199 = vpop.permute.xlu0 %198
  %200 = vrot.lane.b32.xlu0 %v196, 58
  %v201 = vpop.permute.xlu0 %200
  %202 = vrot.lane.b32.xlu0 %v197, 58
  %v203 = vpop.permute.xlu0 %202
  %vm204 = vcmask 474112
  %v205 = vsel %vm204, %v199, %v201
  %v206 = vsel %vm204, %v201, %v203
  %210 = vst.msk [vmem:[#allocation2 + $0x38] sm:$0xf] %vm115, %v199
  %211 = vst [vmem:[#allocation2 + $0x40] sm:$0xf] %v205
  %212 = vst.msk [vmem:[#allocation2 + $0x48] sm:$0xf] %vm118, %v206
  %v213 = vld [vmem:[%s0] sm:$0xf]
  %v214 = vld [vmem:[%s0 + $0x8] sm:$0xf]
  %v215 = vld [vmem:[%s0 + $0x10] sm:$0xf]
  %v219 = vrot.slane %v213, 4
  %v220 = vrot.slane %v214, 4
  %v221 = vrot.slane %v215, 4
  %222 = vrot.lane.b32.xlu0 %v219, 125
  %v223 = vpop.permute.xlu0 %222
  %224 = vrot.lane.b32.xlu0 %v220, 125
  %v225 = vpop.permute.xlu0 %224
  %226 = vrot.lane.b32.xlu0 %v221, 125
  %v227 = vpop.permute.xlu0 %226
  %vm228 = vcmask 1022976
  %v229 = vsel %vm228, %v223, %v225
  %v230 = vsel %vm228, %v225, %v227
  %234 = vst [vmem:[#allocation2 + $0x28] sm:$0xf0] %v229
  %235 = vst [vmem:[#allocation2 + $0x30] sm:$0xf0] %v230
  %236 = vst.msk [vmem:[#allocation2 + $0x38] sm:$0xf0] %vm143, %v227
  %v237 = vld [vmem:[%s0] sm:$0xf0]
  %v238 = vld [vmem:[%s0 + $0x8] sm:$0xf0]
  %v239 = vld [vmem:[%s0 + $0x10] sm:$0xf0]
  %243 = vrot.lane.b32.xlu0 %v237, 57
  %v244 = vpop.permute.xlu0 %243
  %245 = vrot.lane.b32.xlu0 %v238, 57
  %v246 = vpop.permute.xlu0 %245
  %247 = vrot.lane.b32.xlu0 %v239, 57
  %v248 = vpop.permute.xlu0 %247
  %vm249 = vcmask 465920
  %v250 = vsel %vm249, %v244, %v246
  %v251 = vsel %vm249, %v246, %v248
  %255 = vst.msk [vmem:[#allocation2 + $0x38] sm:$0xf0] %vm163, %v244
  %256 = vst [vmem:[#allocation2 + $0x40] sm:$0xf0] %v250
  %257 = vst.msk [vmem:[#allocation2 + $0x48] sm:$0xf0] %vm166, %v251
  %v258 = vld [vmem:[%s0] sm:$0xf]
  %v259 = vld [vmem:[%s0 + $0x8] sm:$0xf]
  %v260 = vld [vmem:[%s0 + $0x10] sm:$0xf]
  %264 = vrot.lane.b32.xlu0 %v258, 124
  %v265 = vpop.permute.xlu0 %264
  %266 = vrot.lane.b32.xlu0 %v259, 124
  %v267 = vpop.permute.xlu0 %266
  %268 = vrot.lane.b32.xlu0 %v260, 124
  %v269 = vpop.permute.xlu0 %268
  %vm270 = vcmask 1014784
  %v271 = vsel %vm270, %v265, %v267
  %v272 = vsel %vm270, %v267, %v269
  %276 = vst [vmem:[#allocation2 + $0x50] sm:$0xf] %v271
  %277 = vst [vmem:[#allocation2 + $0x58] sm:$0xf] %v272
  %278 = vst.msk [vmem:[#allocation2 + $0x60] sm:$0xf] %vm92, %v269
  %v279 = vld [vmem:[%s0] sm:$0xf0]
  %v280 = vld [vmem:[%s0 + $0x8] sm:$0xf0]
  %v281 = vld [vmem:[%s0 + $0x10] sm:$0xf0]
  %v285 = vrot.slane %v279, 4
  %v286 = vrot.slane %v280, 4
  %v287 = vrot.slane %v281, 4
  %288 = vrot.lane.b32.xlu0 %v285, 56
  %v289 = vpop.permute.xlu0 %288
  %290 = vrot.lane.b32.xlu0 %v286, 56
  %v291 = vpop.permute.xlu0 %290
  %292 = vrot.lane.b32.xlu0 %v287, 56
  %v293 = vpop.permute.xlu0 %292
  %vm294 = vcmask 457728
  %v295 = vsel %vm294, %v289, %v291
  %v296 = vsel %vm294, %v291, %v293
  %300 = vst.msk [vmem:[#allocation2 + $0x60] sm:$0xf] %vm115, %v289
  %301 = vst [vmem:[#allocation2 + $0x68] sm:$0xf] %v295
  %302 = vst.msk [vmem:[#allocation2 + $0x70] sm:$0xf] %vm118, %v296
  %v303 = vld [vmem:[%s0] sm:$0xf]
  %v304 = vld [vmem:[%s0 + $0x8] sm:$0xf]
  %v305 = vld [vmem:[%s0 + $0x10] sm:$0xf]
  %v309 = vrot.slane %v303, 4
  %v310 = vrot.slane %v304, 4
  %v311 = vrot.slane %v305, 4
  %312 = vrot.lane.b32.xlu0 %v309, 108
  %v313 = vpop.permute.xlu0 %312
  %314 = vrot.lane.b32.xlu0 %v310, 108
  %v315 = vpop.permute.xlu0 %314
  %316 = vrot.lane.b32.xlu0 %v311, 108
  %v317 = vpop.permute.xlu0 %316
  %vm318 = vcmask 883712
  %v319 = vsel %vm318, %v313, %v315
  %v320 = vsel %vm318, %v315, %v317
  %324 = vst [vmem:[#allocation2 + $0x50] sm:$0xf0] %v319
  %325 = vst [vmem:[#allocation2 + $0x58] sm:$0xf0] %v320
  %326 = vst.msk [vmem:[#allocation2 + $0x60] sm:$0xf0] %vm143, %v317
  %v327 = vld [vmem:[%s0] sm:$0xf0]
  %v328 = vld [vmem:[%s0 + $0x8] sm:$0xf0]
  %v329 = vld [vmem:[%s0 + $0x10] sm:$0xf0]
  %333 = vrot.lane.b32.xlu0 %v327, 40
  %v334 = vpop.permute.xlu0 %333
  %335 = vrot.lane.b32.xlu0 %v328, 40
  %v336 = vpop.permute.xlu0 %335
  %337 = vrot.lane.b32.xlu0 %v329, 40
  %v338 = vpop.permute.xlu0 %337
  %vm339 = vcmask 326656
  %v340 = vsel %vm339, %v334, %v336
  %v341 = vsel %vm339, %v336, %v338
  %345 = vst.msk [vmem:[#allocation2 + $0x60] sm:$0xf0] %vm163, %v334
  %346 = vst [vmem:[#allocation2 + $0x68] sm:$0xf0] %v340
  %347 = vst.msk [vmem:[#allocation2 + $0x70] sm:$0xf0] %vm166, %v341
  %v348 = vld [vmem:[%s0] sm:$0xf]
  %v349 = vld [vmem:[%s0 + $0x8] sm:$0xf]
  %v350 = vld [vmem:[%s0 + $0x10] sm:$0xf]
  %354 = vrot.lane.b32.xlu0 %v348, 107
  %v355 = vpop.permute.xlu0 %354
  %356 = vrot.lane.b32.xlu0 %v349, 107
  %v357 = vpop.permute.xlu0 %356
  %358 = vrot.lane.b32.xlu0 %v350, 107
  %v359 = vpop.permute.xlu0 %358
  %vm360 = vcmask 875520
  %v361 = vsel %vm360, %v355, %v357
  %v362 = vsel %vm360, %v357, %v359
  %366 = vst [vmem:[#allocation2 + $0x78] sm:$0xf] %v361
  %367 = vst [vmem:[#allocation2 + $0x80] sm:$0xf] %v362
  %368 = vst.msk [vmem:[#allocation2 + $0x88] sm:$0xf] %vm92, %v359
  %v369 = vld [vmem:[%s0] sm:$0xf0]
  %v370 = vld [vmem:[%s0 + $0x8] sm:$0xf0]
  %v371 = vld [vmem:[%s0 + $0x10] sm:$0xf0]
  %v375 = vrot.slane %v369, 4
  %v376 = vrot.slane %v370, 4
  %v377 = vrot.slane %v371, 4
  %378 = vrot.lane.b32.xlu0 %v375, 39
  %v379 = vpop.permute.xlu0 %378
  %380 = vrot.lane.b32.xlu0 %v376, 39
  %v381 = vpop.permute.xlu0 %380
  %382 = vrot.lane.b32.xlu0 %v377, 39
  %v383 = vpop.permute.xlu0 %382
  %vm384 = vcmask 318464
  %v385 = vsel %vm384, %v379, %v381
  %v386 = vsel %vm384, %v381, %v383
  %390 = vst.msk [vmem:[#allocation2 + $0x88] sm:$0xf] %vm115, %v379
  %391 = vst [vmem:[#allocation2 + $0x90] sm:$0xf] %v385
  %392 = vst.msk [vmem:[#allocation2 + $0x98] sm:$0xf] %vm118, %v386
  %v393 = vld [vmem:[%s0] sm:$0xf]
  %v394 = vld [vmem:[%s0 + $0x8] sm:$0xf]
  %v395 = vld [vmem:[%s0 + $0x10] sm:$0xf]
  %v399 = vrot.slane %v393, 4
  %v400 = vrot.slane %v394, 4
  %v401 = vrot.slane %v395, 4
  %402 = vrot.lane.b32.xlu0 %v399, 106
  %v403 = vpop.permute.xlu0 %402
  %404 = vrot.lane.b32.xlu0 %v400, 106
  %v405 = vpop.permute.xlu0 %404
  %406 = vrot.lane.b32.xlu0 %v401, 106
  %v407 = vpop.permute.xlu0 %406
  %vm408 = vcmask 867328
  %v409 = vsel %vm408, %v403, %v405
  %v410 = vsel %vm408, %v405, %v407
  %414 = vst [vmem:[#allocation2 + $0x78] sm:$0xf0] %v409
  %415 = vst [vmem:[#allocation2 + $0x80] sm:$0xf0] %v410
  %416 = vst.msk [vmem:[#allocation2 + $0x88] sm:$0xf0] %vm143, %v407
  %v417 = vld [vmem:[%s0] sm:$0xf0]
  %v418 = vld [vmem:[%s0 + $0x8] sm:$0xf0]
  %v419 = vld [vmem:[%s0 + $0x10] sm:$0xf0]
  %423 = vrot.lane.b32.xlu0 %v417, 38
  %v424 = vpop.permute.xlu0 %423
  %425 = vrot.lane.b32.xlu0 %v418, 38
  %v426 = vpop.permute.xlu0 %425
  %427 = vrot.lane.b32.xlu0 %v419, 38
  %v428 = vpop.permute.xlu0 %427
  %vm429 = vcmask 310272
  %v430 = vsel %vm429, %v424, %v426
  %v431 = vsel %vm429, %v426, %v428
  %435 = vst.msk [vmem:[#allocation2 + $0x88] sm:$0xf0] %vm163, %v424
  %436 = vst [vmem:[#allocation2 + $0x90] sm:$0xf0] %v430
  %437 = vst.msk [vmem:[#allocation2 + $0x98] sm:$0xf0] %vm166, %v431
  %v438 = vld [vmem:[%s0] sm:$0xf]
  %v439 = vld [vmem:[%s0 + $0x8] sm:$0xf]
  %v440 = vld [vmem:[%s0 + $0x10] sm:$0xf]
  %444 = vrot.lane.b32.xlu0 %v438, 105
  %v445 = vpop.permute.xlu0 %444
  %446 = vrot.lane.b32.xlu0 %v439, 105
  %v447 = vpop.permute.xlu0 %446
  %448 = vrot.lane.b32.xlu0 %v440, 105
  %v449 = vpop.permute.xlu0 %448
  %vm450 = vcmask 859136
  %v451 = vsel %vm450, %v445, %v447
  %v452 = vsel %vm450, %v447, %v449
  %456 = vst [vmem:[#allocation2 + $0xa0] sm:$0xf] %v451
  %457 = vst [vmem:[#allocation2 + $0xa8] sm:$0xf] %v452
  %458 = vst.msk [vmem:[#allocation2 + $0xb0] sm:$0xf] %vm92, %v449
  %v459 = vld [vmem:[%s0] sm:$0xf0]
  %v460 = vld [vmem:[%s0 + $0x8] sm:$0xf0]
  %v461 = vld [vmem:[%s0 + $0x10] sm:$0xf0]
  %v465 = vrot.slane %v459, 4
  %v466 = vrot.slane %v460, 4
  %v467 = vrot.slane %v461, 4
  %468 = vrot.lane.b32.xlu0 %v465, 37
  %v469 = vpop.permute.xlu0 %468
  %470 = vrot.lane.b32.xlu0 %v466, 37
  %v471 = vpop.permute.xlu0 %470
  %472 = vrot.lane.b32.xlu0 %v467, 37
  %v473 = vpop.permute.xlu0 %472
  %vm474 = vcmask 302080
  %v475 = vsel %vm474, %v469, %v471
  %v476 = vsel %vm474, %v471, %v473
  %480 = vst.msk [vmem:[#allocation2 + $0xb0] sm:$0xf] %vm115, %v469
  %481 = vst [vmem:[#allocation2 + $0xb8] sm:$0xf] %v475
  %482 = vst.msk [vmem:[#allocation2 + $0xc0] sm:$0xf] %vm118, %v476
  %v483 = vld [vmem:[%s0] sm:$0xf]
  %v484 = vld [vmem:[%s0 + $0x8] sm:$0xf]
  %v485 = vld [vmem:[%s0 + $0x10] sm:$0xf]
  %v489 = vrot.slane %v483, 4
  %v490 = vrot.slane %v484, 4
  %v491 = vrot.slane %v485, 4
  %492 = vrot.lane.b32.xlu0 %v489, 104
  %v493 = vpop.permute.xlu0 %492
  %494 = vrot.lane.b32.xlu0 %v490, 104
  %v495 = vpop.permute.xlu0 %494
  %496 = vrot.lane.b32.xlu0 %v491, 104
  %v497 = vpop.permute.xlu0 %496
  %vm498 = vcmask 850944
  %v499 = vsel %vm498, %v493, %v495
  %v500 = vsel %vm498, %v495, %v497
  %504 = vst [vmem:[#allocation2 + $0xa0] sm:$0xf0] %v499
  %505 = vst [vmem:[#allocation2 + $0xa8] sm:$0xf0] %v500
  %506 = vst.msk [vmem:[#allocation2 + $0xb0] sm:$0xf0] %vm143, %v497
  %v507 = vld [vmem:[%s0] sm:$0xf0]
  %v508 = vld [vmem:[%s0 + $0x8] sm:$0xf0]
  %v509 = vld [vmem:[%s0 + $0x10] sm:$0xf0]
  %513 = vrot.lane.b32.xlu0 %v507, 36
  %v514 = vpop.permute.xlu0 %513
  %515 = vrot.lane.b32.xlu0 %v508, 36
  %v516 = vpop.permute.xlu0 %515
  %517 = vrot.lane.b32.xlu0 %v509, 36
  %v518 = vpop.permute.xlu0 %517
  %vm519 = vcmask 293888
  %v520 = vsel %vm519, %v514, %v516
  %v521 = vsel %vm519, %v516, %v518
  %525 = vst.msk [vmem:[#allocation2 + $0xb0] sm:$0xf0] %vm163, %v514
  %526 = vst [vmem:[#allocation2 + $0xb8] sm:$0xf0] %v520
  %527 = vst.msk [vmem:[#allocation2 + $0xc0] sm:$0xf0] %vm166, %v521
  %v528 = vld [vmem:[%s0] sm:$0xf]
  %v529 = vld [vmem:[%s0 + $0x8] sm:$0xf]
  %v530 = vld [vmem:[%s0 + $0x10] sm:$0xf]
  %534 = vrot.lane.b32.xlu0 %v528, 88
  %v535 = vpop.permute.xlu0 %534
  %536 = vrot.lane.b32.xlu0 %v529, 88
  %v537 = vpop.permute.xlu0 %536
  %538 = vrot.lane.b32.xlu0 %v530, 88
  %v539 = vpop.permute.xlu0 %538
  %vm540 = vcmask 719872
  %v541 = vsel %vm540, %v535, %v537
  %v542 = vsel %vm540, %v537, %v539
  %546 = vst [vmem:[#allocation2 + $0xc8] sm:$0xf] %v541
  %547 = vst [vmem:[#allocation2 + $0xd0] sm:$0xf] %v542
  %548 = vst.msk [vmem:[#allocation2 + $0xd8] sm:$0xf] %vm92, %v539
  %v549 = vld [vmem:[%s0] sm:$0xf0]
  %v550 = vld [vmem:[%s0 + $0x8] sm:$0xf0]
  %v551 = vld [vmem:[%s0 + $0x10] sm:$0xf0]
  %v555 = vrot.slane %v549, 4
  %v556 = vrot.slane %v550, 4
  %v557 = vrot.slane %v551, 4
  %558 = vrot.lane.b32.xlu0 %v555, 20
  %v559 = vpop.permute.xlu0 %558
  %560 = vrot.lane.b32.xlu0 %v556, 20
  %v561 = vpop.permute.xlu0 %560
  %562 = vrot.lane.b32.xlu0 %v557, 20
  %v563 = vpop.permute.xlu0 %562
  %vm564 = vcmask 162816
  %v565 = vsel %vm564, %v559, %v561
  %v566 = vsel %vm564, %v561, %v563
  %570 = vst.msk [vmem:[#allocation2 + $0xd8] sm:$0xf] %vm115, %v559
  %571 = vst [vmem:[#allocation2 + $0xe0] sm:$0xf] %v565
  %572 = vst.msk [vmem:[#allocation2 + $0xe8] sm:$0xf] %vm118, %v566
  %v573 = vld [vmem:[%s0] sm:$0xf]
  %v574 = vld [vmem:[%s0 + $0x8] sm:$0xf]
  %v575 = vld [vmem:[%s0 + $0x10] sm:$0xf]
  %v579 = vrot.slane %v573, 4
  %v580 = vrot.slane %v574, 4
  %v581 = vrot.slane %v575, 4
  %582 = vrot.lane.b32.xlu0 %v579, 87
  %v583 = vpop.permute.xlu0 %582
  %584 = vrot.lane.b32.xlu0 %v580, 87
  %v585 = vpop.permute.xlu0 %584
  %586 = vrot.lane.b32.xlu0 %v581, 87
  %v587 = vpop.permute.xlu0 %586
  %vm588 = vcmask 711680
  %v589 = vsel %vm588, %v583, %v585
  %v590 = vsel %vm588, %v585, %v587
  %594 = vst [vmem:[#allocation2 + $0xc8] sm:$0xf0] %v589
  %595 = vst [vmem:[#allocation2 + $0xd0] sm:$0xf0] %v590
  %596 = vst.msk [vmem:[#allocation2 + $0xd8] sm:$0xf0] %vm143, %v587
  %v597 = vld [vmem:[%s0] sm:$0xf0]
  %v598 = vld [vmem:[%s0 + $0x8] sm:$0xf0]
  %v599 = vld [vmem:[%s0 + $0x10] sm:$0xf0]
  %603 = vrot.lane.b32.xlu0 %v597, 19
  %v604 = vpop.permute.xlu0 %603
  %605 = vrot.lane.b32.xlu0 %v598, 19
  %v606 = vpop.permute.xlu0 %605
  %607 = vrot.lane.b32.xlu0 %v599, 19
  %v608 = vpop.permute.xlu0 %607
  %vm609 = vcmask 154624
  %v610 = vsel %vm609, %v604, %v606
  %v611 = vsel %vm609, %v606, %v608
  %615 = vst.msk [vmem:[#allocation2 + $0xd8] sm:$0xf0] %vm163, %v604
  %616 = vst [vmem:[#allocation2 + $0xe0] sm:$0xf0] %v610
  %617 = vst.msk [vmem:[#allocation2 + $0xe8] sm:$0xf0] %vm166, %v611
  %v618 = vld [vmem:[%s0] sm:$0xf]
  %v619 = vld [vmem:[%s0 + $0x8] sm:$0xf]
  %v620 = vld [vmem:[%s0 + $0x10] sm:$0xf]
  %624 = vrot.lane.b32.xlu0 %v618, 86
  %v625 = vpop.permute.xlu0 %624
  %626 = vrot.lane.b32.xlu0 %v619, 86
  %v627 = vpop.permute.xlu0 %626
  %628 = vrot.lane.b32.xlu0 %v620, 86
  %v629 = vpop.permute.xlu0 %628
  %vm630 = vcmask 703488
  %v631 = vsel %vm630, %v625, %v627
  %v632 = vsel %vm630, %v627, %v629
  %636 = vst [vmem:[#allocation2 + $0xf0] sm:$0xf] %v631
  %637 = vst [vmem:[#allocation2 + $0xf8] sm:$0xf] %v632
  %638 = vst.msk [vmem:[#allocation2 + $0x100] sm:$0xf] %vm92, %v629
  %v639 = vld [vmem:[%s0] sm:$0xf0]
  %v640 = vld [vmem:[%s0 + $0x8] sm:$0xf0]
  %v641 = vld [vmem:[%s0 + $0x10] sm:$0xf0]
  %v645 = vrot.slane %v639, 4
  %v646 = vrot.slane %v640, 4
  %v647 = vrot.slane %v641, 4
  %648 = vrot.lane.b32.xlu0 %v645, 18
  %v649 = vpop.permute.xlu0 %648
  %650 = vrot.lane.b32.xlu0 %v646, 18
  %v651 = vpop.permute.xlu0 %650
  %652 = vrot.lane.b32.xlu0 %v647, 18
  %v653 = vpop.permute.xlu0 %652
  %vm654 = vcmask 146432
  %v655 = vsel %vm654, %v649, %v651
  %v656 = vsel %vm654, %v651, %v653
  %660 = vst.msk [vmem:[#allocation2 + $0x100] sm:$0xf] %vm115, %v649
  %661 = vst [vmem:[#allocation2 + $0x108] sm:$0xf] %v655
  %662 = vst.msk [vmem:[#allocation2 + $0x110] sm:$0xf] %vm118, %v656
  %v663 = vld [vmem:[%s0] sm:$0xf]
  %v664 = vld [vmem:[%s0 + $0x8] sm:$0xf]
  %v665 = vld [vmem:[%s0 + $0x10] sm:$0xf]
  %v669 = vrot.slane %v663, 4
  %v670 = vrot.slane %v664, 4
  %v671 = vrot.slane %v665, 4
  %672 = vrot.lane.b32.xlu0 %v669, 85
  %v673 = vpop.permute.xlu0 %672
  %674 = vrot.lane.b32.xlu0 %v670, 85
  %v675 = vpop.permute.xlu0 %674
  %676 = vrot.lane.b32.xlu0 %v671, 85
  %v677 = vpop.permute.xlu0 %676
  %vm678 = vcmask 695296
  %v679 = vsel %vm678, %v673, %v675
  %v680 = vsel %vm678, %v675, %v677
  %684 = vst [vmem:[#allocation2 + $0xf0] sm:$0xf0] %v679
  %685 = vst [vmem:[#allocation2 + $0xf8] sm:$0xf0] %v680
  %686 = vst.msk [vmem:[#allocation2 + $0x100] sm:$0xf0] %vm143, %v677
  %v687 = vld [vmem:[%s0] sm:$0xf0]
  %v688 = vld [vmem:[%s0 + $0x8] sm:$0xf0]
  %v689 = vld [vmem:[%s0 + $0x10] sm:$0xf0]
  %693 = vrot.lane.b32.xlu0 %v687, 17
  %v694 = vpop.permute.xlu0 %693
  %695 = vrot.lane.b32.xlu0 %v688, 17
  %v696 = vpop.permute.xlu0 %695
  %697 = vrot.lane.b32.xlu0 %v689, 17
  %v698 = vpop.permute.xlu0 %697
  %vm699 = vcmask 138240
  %v700 = vsel %vm699, %v694, %v696
  %v701 = vsel %vm699, %v696, %v698
  %705 = vst.msk [vmem:[#allocation2 + $0x100] sm:$0xf0] %vm163, %v694
  %706 = vst [vmem:[#allocation2 + $0x108] sm:$0xf0] %v700
  %707 = vst.msk [vmem:[#allocation2 + $0x110] sm:$0xf0] %vm166, %v701
  %v708 = vld [vmem:[%s0] sm:$0xf]
  %v709 = vld [vmem:[%s0 + $0x8] sm:$0xf]
  %v710 = vld [vmem:[%s0 + $0x10] sm:$0xf]
  %714 = vrot.lane.b32.xlu0 %v708, 84
  %v715 = vpop.permute.xlu0 %714
  %716 = vrot.lane.b32.xlu0 %v709, 84
  %v717 = vpop.permute.xlu0 %716
  %718 = vrot.lane.b32.xlu0 %v710, 84
  %v719 = vpop.permute.xlu0 %718
  %vm720 = vcmask 687104
  %v721 = vsel %vm720, %v715, %v717
  %v722 = vsel %vm720, %v717, %v719
  %726 = vst [vmem:[#allocation2 + $0x118] sm:$0xf] %v721
  %727 = vst [vmem:[#allocation2 + $0x120] sm:$0xf] %v722
  %728 = vst.msk [vmem:[#allocation2 + $0x128] sm:$0xf] %vm92, %v719
  %v729 = vld [vmem:[%s0] sm:$0xf0]
  %v730 = vld [vmem:[%s0 + $0x8] sm:$0xf0]
  %v731 = vld [vmem:[%s0 + $0x10] sm:$0xf0]
  %v735 = vrot.slane %v729, 4
  %v736 = vrot.slane %v730, 4
  %v737 = vrot.slane %v731, 4
  %738 = vrot.lane.b32.xlu0 %v735, 16
  %v739 = vpop.permute.xlu0 %738
  %740 = vrot.lane.b32.xlu0 %v736, 16
  %v741 = vpop.permute.xlu0 %740
  %742 = vrot.lane.b32.xlu0 %v737, 16
  %v743 = vpop.permute.xlu0 %742
  %v744 = vsel %vm62, %v739, %v741
  %v745 = vsel %vm62, %v741, %v743
  %749 = vst.msk [vmem:[#allocation2 + $0x128] sm:$0xf] %vm115, %v739
  %750 = vst [vmem:[#allocation2 + $0x130] sm:$0xf] %v744
  %751 = vst.msk [vmem:[#allocation2 + $0x138] sm:$0xf] %vm118, %v745
  %v752 = vld [vmem:[%s0] sm:$0xf]
  %v753 = vld [vmem:[%s0 + $0x8] sm:$0xf]
  %v754 = vld [vmem:[%s0 + $0x10] sm:$0xf]
  %v758 = vrot.slane %v752, 4
  %v759 = vrot.slane %v753, 4
  %v760 = vrot.slane %v754, 4
  %761 = vrot.lane.b32.xlu0 %v758, 68
  %v762 = vpop.permute.xlu0 %761
  %763 = vrot.lane.b32.xlu0 %v759, 68
  %v764 = vpop.permute.xlu0 %763
  %765 = vrot.lane.b32.xlu0 %v760, 68
  %v766 = vpop.permute.xlu0 %765
  %vm767 = vcmask 556032
  %v768 = vsel %vm767, %v762, %v764
  %v769 = vsel %vm767, %v764, %v766
  %773 = vst [vmem:[#allocation2 + $0x118] sm:$0xf0] %v768
  %774 = vst [vmem:[#allocation2 + $0x120] sm:$0xf0] %v769
  %775 = vst.msk [vmem:[#allocation2 + $0x128] sm:$0xf0] %vm143, %v766
  %v776 = vld [vmem:[%s0] sm:$0xf0]
  %v777 = vld [vmem:[%s0 + $0x8] sm:$0xf0]
  %v778 = vld [vmem:[%s0 + $0x10] sm:$0xf0]
  %779 = vst.msk [vmem:[#allocation2 + $0x128] sm:$0xf0] %vm163, %v776
  %780 = vst [vmem:[#allocation2 + $0x130] sm:$0xf0] %v777
  %781 = vst.msk [vmem:[#allocation2 + $0x138] sm:$0xf0] %vm166, %v778
  %v782 = vld [vmem:[%s0] sm:$0xf]
  %v783 = vld [vmem:[%s0 + $0x8] sm:$0xf]
  %v784 = vld [vmem:[%s0 + $0x10] sm:$0xf]
  %788 = vrot.lane.b32.xlu0 %v782, 67
  %v789 = vpop.permute.xlu0 %788
  %790 = vrot.lane.b32.xlu0 %v783, 67
  %v791 = vpop.permute.xlu0 %790
  %792 = vrot.lane.b32.xlu0 %v784, 67
  %v793 = vpop.permute.xlu0 %792
  %vm794 = vcmask 547840
  %v795 = vsel %vm794, %v789, %v791
  %v796 = vsel %vm794, %v791, %v793
  %800 = vst [vmem:[#allocation2 + $0x140] sm:$0xf] %v795
  %801 = vst [vmem:[#allocation2 + $0x148] sm:$0xf] %v796
  %802 = vst.msk [vmem:[#allocation2 + $0x150] sm:$0xf] %vm92, %v793
  %v803 = vld [vmem:[%s0] sm:$0xf0]
  %v804 = vld [vmem:[%s0 + $0x8] sm:$0xf0]
  %v805 = vld [vmem:[%s0 + $0x10] sm:$0xf0]
  %v809 = vrot.slane %v803, 4
  %v810 = vrot.slane %v804, 4
  %v811 = vrot.slane %v805, 4
  %812 = vrot.lane.b32.xlu0 %v809, 127
  %v813 = vpop.permute.xlu0 %812
  %814 = vrot.lane.b32.xlu0 %v810, 127
  %v815 = vpop.permute.xlu0 %814
  %816 = vrot.lane.b32.xlu0 %v811, 127
  %v817 = vpop.permute.xlu0 %816
  %v818 = vsel %vm135, %v813, %v815
  %v819 = vsel %vm135, %v815, %v817
  %823 = vst.msk [vmem:[#allocation2 + $0x150] sm:$0xf] %vm115, %v818
  %824 = vst [vmem:[#allocation2 + $0x158] sm:$0xf] %v819
  %825 = vst.msk [vmem:[#allocation2 + $0x160] sm:$0xf] %vm118, %v817
  %v826 = vld [vmem:[%s0] sm:$0xf]
  %v827 = vld [vmem:[%s0 + $0x8] sm:$0xf]
  %v828 = vld [vmem:[%s0 + $0x10] sm:$0xf]
  %v832 = vrot.slane %v826, 4
  %v833 = vrot.slane %v827, 4
  %v834 = vrot.slane %v828, 4
  %835 = vrot.lane.b32.xlu0 %v832, 66
  %v836 = vpop.permute.xlu0 %835
  %837 = vrot.lane.b32.xlu0 %v833, 66
  %v838 = vpop.permute.xlu0 %837
  %839 = vrot.lane.b32.xlu0 %v834, 66
  %v840 = vpop.permute.xlu0 %839
  %vm841 = vcmask 539648
  %v842 = vsel %vm841, %v836, %v838
  %v843 = vsel %vm841, %v838, %v840
  %847 = vst [vmem:[#allocation2 + $0x140] sm:$0xf0] %v842
  %848 = vst [vmem:[#allocation2 + $0x148] sm:$0xf0] %v843
  %849 = vst.msk [vmem:[#allocation2 + $0x150] sm:$0xf0] %vm143, %v840
  %v850 = vld [vmem:[%s0] sm:$0xf0]
  %v851 = vld [vmem:[%s0 + $0x8] sm:$0xf0]
  %v852 = vld [vmem:[%s0 + $0x10] sm:$0xf0]
  %856 = vrot.lane.b32.xlu0 %v850, 126
  %v857 = vpop.permute.xlu0 %856
  %858 = vrot.lane.b32.xlu0 %v851, 126
  %v859 = vpop.permute.xlu0 %858
  %860 = vrot.lane.b32.xlu0 %v852, 126
  %v861 = vpop.permute.xlu0 %860
  %v862 = vsel %vm180, %v857, %v859
  %v863 = vsel %vm180, %v859, %v861
  %867 = vst.msk [vmem:[#allocation2 + $0x150] sm:$0xf0] %vm163, %v862
  %868 = vst [vmem:[#allocation2 + $0x158] sm:$0xf0] %v863
  %869 = vst.msk [vmem:[#allocation2 + $0x160] sm:$0xf0] %vm166, %v861
  %v870 = vld [vmem:[%s0] sm:$0xf]
  %v871 = vld [vmem:[%s0 + $0x8] sm:$0xf]
  %v872 = vld [vmem:[%s0 + $0x10] sm:$0xf]
  %876 = vrot.lane.b32.xlu0 %v870, 65
  %v877 = vpop.permute.xlu0 %876
  %878 = vrot.lane.b32.xlu0 %v871, 65
  %v879 = vpop.permute.xlu0 %878
  %880 = vrot.lane.b32.xlu0 %v872, 65
  %v881 = vpop.permute.xlu0 %880
  %vm882 = vcmask 531456
  %v883 = vsel %vm882, %v877, %v879
  %v884 = vsel %vm882, %v879, %v881
  %888 = vst [vmem:[#allocation2 + $0x168] sm:$0xf] %v883
  %889 = vst [vmem:[#allocation2 + $0x170] sm:$0xf] %v884
  %890 = vst.msk [vmem:[#allocation2 + $0x178] sm:$0xf] %vm92, %v881
  %v891 = vld [vmem:[%s0] sm:$0xf0]
  %v892 = vld [vmem:[%s0 + $0x8] sm:$0xf0]
  %v893 = vld [vmem:[%s0 + $0x10] sm:$0xf0]
  %v897 = vrot.slane %v891, 4
  %v898 = vrot.slane %v892, 4
  %v899 = vrot.slane %v893, 4
  %900 = vrot.lane.b32.xlu0 %v897, 125
  %v901 = vpop.permute.xlu0 %900
  %902 = vrot.lane.b32.xlu0 %v898, 125
  %v903 = vpop.permute.xlu0 %902
  %904 = vrot.lane.b32.xlu0 %v899, 125
  %v905 = vpop.permute.xlu0 %904
  %v906 = vsel %vm228, %v901, %v903
  %v907 = vsel %vm228, %v903, %v905
  %911 = vst.msk [vmem:[#allocation2 + $0x178] sm:$0xf] %vm115, %v906
  %912 = vst [vmem:[#allocation2 + $0x180] sm:$0xf] %v907
  %913 = vst.msk [vmem:[#allocation2 + $0x188] sm:$0xf] %vm118, %v905
  %v914 = vld [vmem:[%s0] sm:$0xf]
  %v915 = vld [vmem:[%s0 + $0x8] sm:$0xf]
  %v916 = vld [vmem:[%s0 + $0x10] sm:$0xf]
  %v920 = vrot.slane %v914, 4
  %v921 = vrot.slane %v915, 4
  %v922 = vrot.slane %v916, 4
  %923 = vrot.lane.b32.xlu0 %v920, 64
  %v924 = vpop.permute.xlu0 %923
  %925 = vrot.lane.b32.xlu0 %v921, 64
  %v926 = vpop.permute.xlu0 %925
  %927 = vrot.lane.b32.xlu0 %v922, 64
  %v928 = vpop.permute.xlu0 %927
  %vm929 = vcmask 523264
  %v930 = vsel %vm929, %v924, %v926
  %v931 = vsel %vm929, %v926, %v928
  %935 = vst [vmem:[#allocation2 + $0x168] sm:$0xf0] %v930
  %936 = vst [vmem:[#allocation2 + $0x170] sm:$0xf0] %v931
  %937 = vst.msk [vmem:[#allocation2 + $0x178] sm:$0xf0] %vm143, %v928
  %v938 = vld [vmem:[%s0] sm:$0xf0]
  %v939 = vld [vmem:[%s0 + $0x8] sm:$0xf0]
  %v940 = vld [vmem:[%s0 + $0x10] sm:$0xf0]
  %944 = vrot.lane.b32.xlu0 %v938, 124
  %v945 = vpop.permute.xlu0 %944
  %946 = vrot.lane.b32.xlu0 %v939, 124
  %v947 = vpop.permute.xlu0 %946
  %948 = vrot.lane.b32.xlu0 %v940, 124
  %v949 = vpop.permute.xlu0 %948
  %v950 = vsel %vm270, %v945, %v947
  %v951 = vsel %vm270, %v947, %v949
  %955 = vst.msk [vmem:[#allocation2 + $0x178] sm:$0xf0] %vm163, %v950
  %956 = vst [vmem:[#allocation2 + $0x180] sm:$0xf0] %v951
  %957 = vst.msk [vmem:[#allocation2 + $0x188] sm:$0xf0] %vm166, %v949
  %v958 = vld [vmem:[%s0] sm:$0xf]
  %v959 = vld [vmem:[%s0 + $0x8] sm:$0xf]
  %v960 = vld [vmem:[%s0 + $0x10] sm:$0xf]
  %v961 = vld [vmem:[%s0 + $0x18] sm:$0xf]
  %966 = vrot.lane.b32.xlu0 %v958, 48
  %v967 = vpop.permute.xlu0 %966
  %968 = vrot.lane.b32.xlu0 %v959, 48
  %v969 = vpop.permute.xlu0 %968
  %970 = vrot.lane.b32.xlu0 %v960, 48
  %v971 = vpop.permute.xlu0 %970
  %972 = vrot.lane.b32.xlu0 %v961, 48
  %v973 = vpop.permute.xlu0 %972
  %vm974 = vcmask 392192
  %v975 = vsel %vm974, %v967, %v969
  %v976 = vsel %vm974, %v969, %v971
  %v977 = vsel %vm974, %v971, %v973
  %981 = vst [vmem:[#allocation2 + $0x190] sm:$0xf] %v975
  %982 = vst [vmem:[#allocation2 + $0x198] sm:$0xf] %v976
  %983 = vst.msk [vmem:[#allocation2 + $0x1a0] sm:$0xf] %vm92, %v977
  %v984 = vld [vmem:[%s0] sm:$0xf0]
  %v985 = vld [vmem:[%s0 + $0x8] sm:$0xf0]
  %v986 = vld [vmem:[%s0 + $0x10] sm:$0xf0]
  %v987 = vld [vmem:[%s0 + $0x18] sm:$0xf0]
  %v992 = vrot.slane %v984, 4
  %v993 = vrot.slane %v985, 4
  %v994 = vrot.slane %v986, 4
  %v995 = vrot.slane %v987, 4
  %996 = vrot.lane.b32.xlu0 %v992, 108
  %v997 = vpop.permute.xlu0 %996
  %998 = vrot.lane.b32.xlu0 %v993, 108
  %v999 = vpop.permute.xlu0 %998
  %1000 = vrot.lane.b32.xlu0 %v994, 108
  %v1001 = vpop.permute.xlu0 %1000
  %1002 = vrot.lane.b32.xlu0 %v995, 108
  %v1003 = vpop.permute.xlu0 %1002
  %v1004 = vsel %vm318, %v997, %v999
  %v1005 = vsel %vm318, %v999, %v1001
  %v1006 = vsel %vm318, %v1001, %v1003
  %1010 = vst.msk [vmem:[#allocation2 + $0x1a0] sm:$0xf] %vm115, %v1004
  %1011 = vst [vmem:[#allocation2 + $0x1a8] sm:$0xf] %v1005
  %1012 = vst.msk [vmem:[#allocation2 + $0x1b0] sm:$0xf] %vm118, %v1006
  %v1013 = vld [vmem:[%s0] sm:$0xf]
  %v1014 = vld [vmem:[%s0 + $0x8] sm:$0xf]
  %v1015 = vld [vmem:[%s0 + $0x10] sm:$0xf]
  %v1016 = vld [vmem:[%s0 + $0x18] sm:$0xf]
  %v1021 = vrot.slane %v1013, 4
  %v1022 = vrot.slane %v1014, 4
  %v1023 = vrot.slane %v1015, 4
  %v1024 = vrot.slane %v1016, 4
  %1025 = vrot.lane.b32.xlu0 %v1021, 47
  %v1026 = vpop.permute.xlu0 %1025
  %1027 = vrot.lane.b32.xlu0 %v1022, 47
  %v1028 = vpop.permute.xlu0 %1027
  %1029 = vrot.lane.b32.xlu0 %v1023, 47
  %v1030 = vpop.permute.xlu0 %1029
  %1031 = vrot.lane.b32.xlu0 %v1024, 47
  %v1032 = vpop.permute.xlu0 %1031
  %vm1033 = vcmask 384000
  %v1034 = vsel %vm1033, %v1026, %v1028
  %v1035 = vsel %vm1033, %v1028, %v1030
  %v1036 = vsel %vm1033, %v1030, %v1032
  %1040 = vst [vmem:[#allocation2 + $0x190] sm:$0xf0] %v1034
  %1041 = vst [vmem:[#allocation2 + $0x198] sm:$0xf0] %v1035
  %1042 = vst.msk [vmem:[#allocation2 + $0x1a0] sm:$0xf0] %vm143, %v1036
  %v1043 = vld [vmem:[%s0] sm:$0xf0]
  %v1044 = vld [vmem:[%s0 + $0x8] sm:$0xf0]
  %v1045 = vld [vmem:[%s0 + $0x10] sm:$0xf0]
  %v1046 = vld [vmem:[%s0 + $0x18] sm:$0xf0]
  %1051 = vrot.lane.b32.xlu0 %v1043, 107
  %v1052 = vpop.permute.xlu0 %1051
  %1053 = vrot.lane.b32.xlu0 %v1044, 107
  %v1054 = vpop.permute.xlu0 %1053
  %1055 = vrot.lane.b32.xlu0 %v1045, 107
  %v1056 = vpop.permute.xlu0 %1055
  %1057 = vrot.lane.b32.xlu0 %v1046, 107
  %v1058 = vpop.permute.xlu0 %1057
  %v1059 = vsel %vm360, %v1052, %v1054
  %v1060 = vsel %vm360, %v1054, %v1056
  %v1061 = vsel %vm360, %v1056, %v1058
  %1065 = vst.msk [vmem:[#allocation2 + $0x1a0] sm:$0xf0] %vm163, %v1059
  %1066 = vst [vmem:[#allocation2 + $0x1a8] sm:$0xf0] %v1060
  %1067 = vst.msk [vmem:[#allocation2 + $0x1b0] sm:$0xf0] %vm166, %v1061
  %v1068 = vld [vmem:[%s0] sm:$0xf]
  %v1069 = vld [vmem:[%s0 + $0x8] sm:$0xf]
  %v1070 = vld [vmem:[%s0 + $0x10] sm:$0xf]
  %v1071 = vld [vmem:[%s0 + $0x18] sm:$0xf]
  %1076 = vrot.lane.b32.xlu0 %v1068, 46
  %v1077 = vpop.permute.xlu0 %1076
  %1078 = vrot.lane.b32.xlu0 %v1069, 46
  %v1079 = vpop.permute.xlu0 %1078
  %1080 = vrot.lane.b32.xlu0 %v1070, 46
  %v1081 = vpop.permute.xlu0 %1080
  %1082 = vrot.lane.b32.xlu0 %v1071, 46
  %v1083 = vpop.permute.xlu0 %1082
  %vm1084 = vcmask 375808
  %v1085 = vsel %vm1084, %v1077, %v1079
  %v1086 = vsel %vm1084, %v1079, %v1081
  %v1087 = vsel %vm1084, %v1081, %v1083
  %1091 = vst [vmem:[#allocation2 + $0x1b8] sm:$0xf] %v1085
  %1092 = vst [vmem:[#allocation2 + $0x1c0] sm:$0xf] %v1086
  %1093 = vst.msk [vmem:[#allocation2 + $0x1c8] sm:$0xf] %vm92, %v1087
  %v1094 = vld [vmem:[%s0] sm:$0xf0]
  %v1095 = vld [vmem:[%s0 + $0x8] sm:$0xf0]
  %v1096 = vld [vmem:[%s0 + $0x10] sm:$0xf0]
  %v1097 = vld [vmem:[%s0 + $0x18] sm:$0xf0]
  %v1102 = vrot.slane %v1094, 4
  %v1103 = vrot.slane %v1095, 4
  %v1104 = vrot.slane %v1096, 4
  %v1105 = vrot.slane %v1097, 4
  %1106 = vrot.lane.b32.xlu0 %v1102, 106
  %v1107 = vpop.permute.xlu0 %1106
  %1108 = vrot.lane.b32.xlu0 %v1103, 106
  %v1109 = vpop.permute.xlu0 %1108
  %1110 = vrot.lane.b32.xlu0 %v1104, 106
  %v1111 = vpop.permute.xlu0 %1110
  %1112 = vrot.lane.b32.xlu0 %v1105, 106
  %v1113 = vpop.permute.xlu0 %1112
  %v1114 = vsel %vm408, %v1107, %v1109
  %v1115 = vsel %vm408, %v1109, %v1111
  %v1116 = vsel %vm408, %v1111, %v1113
  %1120 = vst.msk [vmem:[#allocation2 + $0x1c8] sm:$0xf] %vm115, %v1114
  %1121 = vst [vmem:[#allocation2 + $0x1d0] sm:$0xf] %v1115
  %1122 = vst.msk [vmem:[#allocation2 + $0x1d8] sm:$0xf] %vm118, %v1116
  %v1123 = vld [vmem:[%s0] sm:$0xf]
  %v1124 = vld [vmem:[%s0 + $0x8] sm:$0xf]
  %v1125 = vld [vmem:[%s0 + $0x10] sm:$0xf]
  %v1126 = vld [vmem:[%s0 + $0x18] sm:$0xf]
  %v1131 = vrot.slane %v1123, 4
  %v1132 = vrot.slane %v1124, 4
  %v1133 = vrot.slane %v1125, 4
  %v1134 = vrot.slane %v1126, 4
  %1135 = vrot.lane.b32.xlu0 %v1131, 45
  %v1136 = vpop.permute.xlu0 %1135
  %1137 = vrot.lane.b32.xlu0 %v1132, 45
  %v1138 = vpop.permute.xlu0 %1137
  %1139 = vrot.lane.b32.xlu0 %v1133, 45
  %v1140 = vpop.permute.xlu0 %1139
  %1141 = vrot.lane.b32.xlu0 %v1134, 45
  %v1142 = vpop.permute.xlu0 %1141
  %vm1143 = vcmask 367616
  %v1144 = vsel %vm1143, %v1136, %v1138
  %v1145 = vsel %vm1143, %v1138, %v1140
  %v1146 = vsel %vm1143, %v1140, %v1142
  %1150 = vst [vmem:[#allocation2 + $0x1b8] sm:$0xf0] %v1144
  %1151 = vst [vmem:[#allocation2 + $0x1c0] sm:$0xf0] %v1145
  %1152 = vst.msk [vmem:[#allocation2 + $0x1c8] sm:$0xf0] %vm143, %v1146
  %v1153 = vld [vmem:[%s0] sm:$0xf0]
  %v1154 = vld [vmem:[%s0 + $0x8] sm:$0xf0]
  %v1155 = vld [vmem:[%s0 + $0x10] sm:$0xf0]
  %v1156 = vld [vmem:[%s0 + $0x18] sm:$0xf0]
  %1161 = vrot.lane.b32.xlu0 %v1153, 105
  %v1162 = vpop.permute.xlu0 %1161
  %1163 = vrot.lane.b32.xlu0 %v1154, 105
  %v1164 = vpop.permute.xlu0 %1163
  %1165 = vrot.lane.b32.xlu0 %v1155, 105
  %v1166 = vpop.permute.xlu0 %1165
  %1167 = vrot.lane.b32.xlu0 %v1156, 105
  %v1168 = vpop.permute.xlu0 %1167
  %v1169 = vsel %vm450, %v1162, %v1164
  %v1170 = vsel %vm450, %v1164, %v1166
  %v1171 = vsel %vm450, %v1166, %v1168
  %1175 = vst.msk [vmem:[#allocation2 + $0x1c8] sm:$0xf0] %vm163, %v1169
  %1176 = vst [vmem:[#allocation2 + $0x1d0] sm:$0xf0] %v1170
  %1177 = vst.msk [vmem:[#allocation2 + $0x1d8] sm:$0xf0] %vm166, %v1171
  %v1178 = vld [vmem:[%s0] sm:$0xf]
  %v1179 = vld [vmem:[%s0 + $0x8] sm:$0xf]
  %v1180 = vld [vmem:[%s0 + $0x10] sm:$0xf]
  %v1181 = vld [vmem:[%s0 + $0x18] sm:$0xf]
  %1186 = vrot.lane.b32.xlu0 %v1178, 44
  %v1187 = vpop.permute.xlu0 %1186
  %1188 = vrot.lane.b32.xlu0 %v1179, 44
  %v1189 = vpop.permute.xlu0 %1188
  %1190 = vrot.lane.b32.xlu0 %v1180, 44
  %v1191 = vpop.permute.xlu0 %1190
  %1192 = vrot.lane.b32.xlu0 %v1181, 44
  %v1193 = vpop.permute.xlu0 %1192
  %vm1194 = vcmask 359424
  %v1195 = vsel %vm1194, %v1187, %v1189
  %v1196 = vsel %vm1194, %v1189, %v1191
  %v1197 = vsel %vm1194, %v1191, %v1193
  %1201 = vst [vmem:[#allocation2 + $0x1e0] sm:$0xf] %v1195
  %1202 = vst [vmem:[#allocation2 + $0x1e8] sm:$0xf] %v1196
  %1203 = vst.msk [vmem:[#allocation2 + $0x1f0] sm:$0xf] %vm92, %v1197
  %v1204 = vld [vmem:[%s0] sm:$0xf0]
  %v1205 = vld [vmem:[%s0 + $0x8] sm:$0xf0]
  %v1206 = vld [vmem:[%s0 + $0x10] sm:$0xf0]
  %v1207 = vld [vmem:[%s0 + $0x18] sm:$0xf0]
  %v1212 = vrot.slane %v1204, 4
  %v1213 = vrot.slane %v1205, 4
  %v1214 = vrot.slane %v1206, 4
  %v1215 = vrot.slane %v1207, 4
  %1216 = vrot.lane.b32.xlu0 %v1212, 104
  %v1217 = vpop.permute.xlu0 %1216
  %1218 = vrot.lane.b32.xlu0 %v1213, 104
  %v1219 = vpop.permute.xlu0 %1218
  %1220 = vrot.lane.b32.xlu0 %v1214, 104
  %v1221 = vpop.permute.xlu0 %1220
  %1222 = vrot.lane.b32.xlu0 %v1215, 104
  %v1223 = vpop.permute.xlu0 %1222
  %v1224 = vsel %vm498, %v1217, %v1219
  %v1225 = vsel %vm498, %v1219, %v1221
  %v1226 = vsel %vm498, %v1221, %v1223
  %1230 = vst.msk [vmem:[#allocation2 + $0x1f0] sm:$0xf] %vm115, %v1224
  %1231 = vst [vmem:[#allocation2 + $0x1f8] sm:$0xf] %v1225
  %1232 = vst.msk [vmem:[#allocation2 + $0x200] sm:$0xf] %vm118, %v1226
  %v1233 = vld [vmem:[#allocation2] sm:$0xff]
  %v1234 = vld [vmem:[#allocation2 + $0x8] sm:$0xff]
  %v1235 = vld [vmem:[#allocation2 + $0x10] sm:$0xff]
  %v1236 = vld [vmem:[#allocation2 + $0x18] sm:$0xff]
  %v1237 = vld [vmem:[#allocation2 + $0x20] sm:$0xff]
  %v1238 = vld [vmem:[#allocation2 + $0x28] sm:$0xff]
  %v1239 = vld [vmem:[#allocation2 + $0x30] sm:$0xff]
  %v1240 = vld [vmem:[#allocation2 + $0x38] sm:$0xff]
  %v1241 = vld [vmem:[#allocation2 + $0x40] sm:$0xff]
  %v1242 = vld [vmem:[#allocation2 + $0x48] sm:$0xff]
  %v1243 = vld [vmem:[#allocation2 + $0x50] sm:$0xff]
  %v1244 = vld [vmem:[#allocation2 + $0x58] sm:$0xff]
  %v1245 = vld [vmem:[#allocation2 + $0x60] sm:$0xff]
  %v1246 = vld [vmem:[#allocation2 + $0x68] sm:$0xff]
  %v1247 = vld [vmem:[#allocation2 + $0x70] sm:$0xff]
  %v1248 = vld [vmem:[#allocation2 + $0x78] sm:$0xff]
  %v1249 = vld [vmem:[#allocation2 + $0x80] sm:$0xff]
  %v1250 = vld [vmem:[#allocation2 + $0x88] sm:$0xff]
  %v1251 = vld [vmem:[#allocation2 + $0x90] sm:$0xff]
  %v1252 = vld [vmem:[#allocation2 + $0x98] sm:$0xff]
  %v1253 = vld [vmem:[#allocation2 + $0xa0] sm:$0xff]
  %v1254 = vld [vmem:[#allocation2 + $0xa8] sm:$0xff]
  %v1255 = vld [vmem:[#allocation2 + $0xb0] sm:$0xff]
  %v1256 = vld [vmem:[#allocation2 + $0xb8] sm:$0xff]
  %v1257 = vld [vmem:[#allocation2 + $0xc0] sm:$0xff]
  %v1258 = vld [vmem:[#allocation2 + $0xc8] sm:$0xff]
  %v1259 = vld [vmem:[#allocation2 + $0xd0] sm:$0xff]
  %v1260 = vld [vmem:[#allocation2 + $0xd8] sm:$0xff]
  %v1261 = vld [vmem:[#allocation2 + $0xe0] sm:$0xff]
  %v1262 = vld [vmem:[#allocation2 + $0xe8] sm:$0xff]
  %v1263 = vld [vmem:[#allocation2 + $0xf0] sm:$0xff]
  %v1264 = vld [vmem:[#allocation2 + $0xf8] sm:$0xff]
  %v1265 = vld [vmem:[#allocation2 + $0x100] sm:$0xff]
  %v1266 = vld [vmem:[#allocation2 + $0x108] sm:$0xff]
  %v1267 = vld [vmem:[#allocation2 + $0x110] sm:$0xff]
  %v1268 = vld [vmem:[#allocation2 + $0x118] sm:$0xff]
  %v1269 = vld [vmem:[#allocation2 + $0x120] sm:$0xff]
  %v1270 = vld [vmem:[#allocation2 + $0x128] sm:$0xff]
  %v1271 = vld [vmem:[#allocation2 + $0x130] sm:$0xff]
  %v1272 = vld [vmem:[#allocation2 + $0x138] sm:$0xff]
  %v1273 = vld [vmem:[#allocation2 + $0x140] sm:$0xff]
  %v1274 = vld [vmem:[#allocation2 + $0x148] sm:$0xff]
  %v1275 = vld [vmem:[#allocation2 + $0x150] sm:$0xff]
  %v1276 = vld [vmem:[#allocation2 + $0x158] sm:$0xff]
  %v1277 = vld [vmem:[#allocation2 + $0x160] sm:$0xff]
  %v1278 = vld [vmem:[#allocation2 + $0x168] sm:$0xff]
  %v1279 = vld [vmem:[#allocation2 + $0x170] sm:$0xff]
  %v1280 = vld [vmem:[#allocation2 + $0x178] sm:$0xff]
  %v1281 = vld [vmem:[#allocation2 + $0x180] sm:$0xff]
  %v1282 = vld [vmem:[#allocation2 + $0x188] sm:$0xff]
  %v1283 = vld [vmem:[#allocation2 + $0x190] sm:$0xff]
  %v1284 = vld [vmem:[#allocation2 + $0x198] sm:$0xff]
  %v1285 = vld [vmem:[#allocation2 + $0x1a0] sm:$0xff]
  %v1286 = vld [vmem:[#allocation2 + $0x1a8] sm:$0xff]
  %v1287 = vld [vmem:[#allocation2 + $0x1b0] sm:$0xff]
  %v1288 = vld [vmem:[#allocation2 + $0x1b8] sm:$0xff]
  %v1289 = vld [vmem:[#allocation2 + $0x1c0] sm:$0xff]
  %v1290 = vld [vmem:[#allocation2 + $0x1c8] sm:$0xff]
  %v1291 = vld [vmem:[#allocation2 + $0x1d0] sm:$0xff]
  %v1292 = vld [vmem:[#allocation2 + $0x1d8] sm:$0xff]
  %v1293 = vld [vmem:[#allocation2 + $0x1e0] sm:$0xf]
  %v1294 = vld [vmem:[#allocation2 + $0x1e8] sm:$0xf]
  %v1295 = vld [vmem:[#allocation2 + $0x1f0] sm:$0xf]
  %v1296 = vld [vmem:[#allocation2 + $0x1f8] sm:$0xf]
  %v1297 = vld [vmem:[#allocation2 + $0x200] sm:$0xf]
  %v1298 = vld [vmem:[%s2] sm:$0xff]
  %v1299 = vld [vmem:[%s2 + $0x8] sm:$0xff]
  %v1300 = vld [vmem:[%s5] sm:$0xff]
  %v1301 = vld [vmem:[%s5 + $0x8] sm:$0xff]
  %1303 = vset.pattern.permute.xlu0 0
  %1304 = vperm.xlu0 %1303, %v1300
  %v1305 = vpop.permute.xlu0 %1304
  %1308 = vset.pattern.permute.xlu0 0
  %1309 = vperm.xlu0 %1308, %v1301
  %v1310 = vpop.permute.xlu0 %1309
  %vm1312 = vcmask 818176
  %v1314 = vsel %vm1312, %v1298, 0
  %v1317 = vsel %vm1312, %v1299, 0
  %vm1319 = vcmask 1043456
  %v1321 = vsel %vm1319, %v1293, 0
  %v1324 = vsel %vm1319, %v1294, 0
  %v1327 = vsel %vm1319, %v1295, 0
  %v1330 = vsel %vm1319, %v1296, 0
  %v1333 = vsel %vm1319, %v1297, 0
  %1335 = vmatpush.msra.mxu0 0.0
  %1336 = vmatpush.msra.mxu0 0.0
  %1337 = vmatpush.msra.mxu0 0.0
  %1338 = vmatpush.msra.mxu0 %v1321
  %1339 = vmatpush.msra.mxu0 %v1288
  %1340 = vmatpush.msra.mxu0 %v1283
  %1341 = vmatpush.msra.mxu0 %v1278
  %1342 = vmatpush.msra.mxu0 %v1273
  %1343 = vmatpush.msra.mxu0 %v1268
  %1344 = vmatpush.msra.mxu0 %v1263
  %1345 = vmatpush.msra.mxu0 %v1258
  %1346 = vmatpush.msra.mxu0 %v1253
  %1347 = vmatpush.msra.mxu0 %v1248
  %1348 = vmatpush.msra.mxu0 %v1243
  %1349 = vmatpush.msra.mxu0 %v1238
  %1350 = vmatpush.msra.mxu0 %v1233
  %1351 = vmatmul.f32.gmra.mxu0 %v1314
  %v1352 = vpop.f32.mrf.mxu0
  %v1353 = vadd.f32 %v1305, %v1352
  %1354 = vmatmul.f32.gmra.mxu0 %v1317
  %v1355 = vpop.f32.mrf.mxu0
  %v1356 = vadd.f32 %v1310, %v1355
  %1357 = vdwg.mxu0
  %1358 = vmatpush.msra.mxu0 0.0
  %1359 = vmatpush.msra.mxu0 0.0
  %1360 = vmatpush.msra.mxu0 0.0
  %1361 = vmatpush.msra.mxu0 %v1324
  %1362 = vmatpush.msra.mxu0 %v1289
  %1363 = vmatpush.msra.mxu0 %v1284
  %1364 = vmatpush.msra.mxu0 %v1279
  %1365 = vmatpush.msra.mxu0 %v1274
  %1366 = vmatpush.msra.mxu0 %v1269
  %1367 = vmatpush.msra.mxu0 %v1264
  %1368 = vmatpush.msra.mxu0 %v1259
  %1369 = vmatpush.msra.mxu0 %v1254
  %1370 = vmatpush.msra.mxu0 %v1249
  %1371 = vmatpush.msra.mxu0 %v1244
  %1372 = vmatpush.msra.mxu0 %v1239
  %1373 = vmatpush.msra.mxu0 %v1234
  %1374 = vmatmul.f32.gmra.mxu0 %v1314
  %v1375 = vpop.f32.mrf.mxu0
  %v1376 = vadd.f32 %v1305, %v1375
  %1377 = vmatmul.f32.gmra.mxu0 %v1317
  %v1378 = vpop.f32.mrf.mxu0
  %v1379 = vadd.f32 %v1310, %v1378
  %1380 = vdwg.mxu0
  %1381 = vmatpush.msra.mxu0 0.0
  %1382 = vmatpush.msra.mxu0 0.0
  %1383 = vmatpush.msra.mxu0 0.0
  %1384 = vmatpush.msra.mxu0 %v1327
  %1385 = vmatpush.msra.mxu0 %v1290
  %1386 = vmatpush.msra.mxu0 %v1285
  %1387 = vmatpush.msra.mxu0 %v1280
  %1388 = vmatpush.msra.mxu0 %v1275
  %1389 = vmatpush.msra.mxu0 %v1270
  %1390 = vmatpush.msra.mxu0 %v1265
  %1391 = vmatpush.msra.mxu0 %v1260
  %1392 = vmatpush.msra.mxu0 %v1255
  %1393 = vmatpush.msra.mxu0 %v1250
  %1394 = vmatpush.msra.mxu0 %v1245
  %1395 = vmatpush.msra.mxu0 %v1240
  %1396 = vmatpush.msra.mxu0 %v1235
  %1397 = vmatmul.f32.gmra.mxu0 %v1314
  %v1398 = vpop.f32.mrf.mxu0
  %v1399 = vadd.f32 %v1305, %v1398
  %1400 = vmatmul.f32.gmra.mxu0 %v1317
  %v1401 = vpop.f32.mrf.mxu0
  %v1402 = vadd.f32 %v1310, %v1401
  %1403 = vdwg.mxu0
  %1404 = vmatpush.msra.mxu0 0.0
  %1405 = vmatpush.msra.mxu0 0.0
  %1406 = vmatpush.msra.mxu0 0.0
  %1407 = vmatpush.msra.mxu0 %v1330
  %1408 = vmatpush.msra.mxu0 %v1291
  %1409 = vmatpush.msra.mxu0 %v1286
  %1410 = vmatpush.msra.mxu0 %v1281
  %1411 = vmatpush.msra.mxu0 %v1276
  %1412 = vmatpush.msra.mxu0 %v1271
  %1413 = vmatpush.msra.mxu0 %v1266
  %1414 = vmatpush.msra.mxu0 %v1261
  %1415 = vmatpush.msra.mxu0 %v1256
  %1416 = vmatpush.msra.mxu0 %v1251
  %1417 = vmatpush.msra.mxu0 %v1246
  %1418 = vmatpush.msra.mxu0 %v1241
  %1419 = vmatpush.msra.mxu0 %v1236
  %1420 = vmatmul.f32.gmra.mxu0 %v1314
  %v1421 = vpop.f32.mrf.mxu0
  %v1422 = vadd.f32 %v1305, %v1421
  %1423 = vmatmul.f32.gmra.mxu0 %v1317
  %v1424 = vpop.f32.mrf.mxu0
  %v1425 = vadd.f32 %v1310, %v1424
  %1426 = vdwg.mxu0
  %1427 = vmatpush.msra.mxu0 0.0
  %1428 = vmatpush.msra.mxu0 0.0
  %1429 = vmatpush.msra.mxu0 0.0
  %1430 = vmatpush.msra.mxu0 %v1333
  %1431 = vmatpush.msra.mxu0 %v1292
  %1432 = vmatpush.msra.mxu0 %v1287
  %1433 = vmatpush.msra.mxu0 %v1282
  %1434 = vmatpush.msra.mxu0 %v1277
  %1435 = vmatpush.msra.mxu0 %v1272
  %1436 = vmatpush.msra.mxu0 %v1267
  %1437 = vmatpush.msra.mxu0 %v1262
  %1438 = vmatpush.msra.mxu0 %v1257
  %1439 = vmatpush.msra.mxu0 %v1252
  %1440 = vmatpush.msra.mxu0 %v1247
  %1441 = vmatpush.msra.mxu0 %v1242
  %1442 = vmatpush.msra.mxu0 %v1237
  %1443 = vmatmul.f32.gmra.mxu0 %v1314
  %v1444 = vpop.f32.mrf.mxu0
  %v1445 = vadd.f32 %v1305, %v1444
  %1446 = vmatmul.f32.gmra.mxu0 %v1317
  %v1447 = vpop.f32.mrf.mxu0
  %v1448 = vadd.f32 %v1310, %v1447
  %1449 = vdwg.mxu0
  %v1451 = vperm.slane %v86, 0
  %v1452 = vperm.slane %v86, 1
  %v1453 = vperm.slane %v86, 2
  %v1454 = vperm.slane %v86, 3
  %v1455 = vperm.slane %v86, 4
  %v1461 = vmul.f32 %v1353, %v1451
  %v1462 = vmul.f32 %v1376, %v1452
  %v1463 = vmul.f32 %v1399, %v1453
  %v1464 = vmul.f32 %v1422, %v1454
  %v1465 = vmul.f32 %v1445, %v1455
  %v1466 = vmul.f32 %v1356, %v1451
  %v1467 = vmul.f32 %v1379, %v1452
  %v1468 = vmul.f32 %v1402, %v1453
  %v1469 = vmul.f32 %v1425, %v1454
  %v1470 = vmul.f32 %v1448, %v1455
  %v1471 = vadd.f32 %v1461, %v1462
  %v1472 = vadd.f32 %v1471, %v1463
  %v1473 = vadd.f32 %v1472, %v1464
  %vm1474 = vcmask 982016
  %v1475 = vsel %vm1474, %v1465, 0.0
  %v1476 = vadd.f32 %v1473, %v1475
  %1477 = vadd.xlane.f32.xlu0 %v1476
  %v1478 = vpop.xlane.xlu0 %1477
  %v1479 = vadd.f32 %v1466, %v1467
  %v1480 = vadd.f32 %v1479, %v1468
  %v1481 = vadd.f32 %v1480, %v1469
  %v1482 = vsel %vm1474, %v1470, 0.0
  %v1483 = vadd.f32 %v1481, %v1482
  %1484 = vadd.xlane.f32.xlu0 %v1483
  %v1485 = vpop.xlane.xlu0 %1484
  %v1486 = vmul.f32 %v1461, %v1353
  %v1487 = vmul.f32 %v1462, %v1376
  %v1488 = vmul.f32 %v1463, %v1399
  %v1489 = vmul.f32 %v1464, %v1422
  %v1490 = vmul.f32 %v1465, %v1445
  %v1491 = vmul.f32 %v1466, %v1356
  %v1492 = vmul.f32 %v1467, %v1379
  %v1493 = vmul.f32 %v1468, %v1402
  %v1494 = vmul.f32 %v1469, %v1425
  %v1495 = vmul.f32 %v1470, %v1448
  %v1496 = vadd.f32 %v1486, %v1487
  %v1497 = vadd.f32 %v1496, %v1488
  %v1498 = vadd.f32 %v1497, %v1489
  %v1499 = vsel %vm1474, %v1490, 0.0
  %v1500 = vadd.f32 %v1498, %v1499
  %1501 = vadd.xlane.f32.xlu0 %v1500
  %v1502 = vpop.xlane.xlu0 %1501
  %v1503 = vadd.f32 %v1491, %v1492
  %v1504 = vadd.f32 %v1503, %v1493
  %v1505 = vadd.f32 %v1504, %v1494
  %v1506 = vsel %vm1474, %v1495, 0.0
  %v1507 = vadd.f32 %v1505, %v1506
  %1508 = vadd.xlane.f32.xlu0 %v1507
  %v1509 = vpop.xlane.xlu0 %1508
  %v1510 = vmul.f32 %v1478, 0.001953125
  %v1511 = vmul.f32 %v1485, 0.001953125
  %v1512 = vmul.f32 %v1502, 0.001953125
  %v1513 = vmul.f32 %v1509, 0.001953125
  %v1514 = vmul.f32 %v1510, %v1510
  %v1515 = vmul.f32 %v1511, %v1511
  %v1516 = vsub.f32 %v1512, %v1514
  %v1517 = vsub.f32 %v1513, %v1515
  %v1518 = vsub.f32 %v1353, %v1510
  %v1519 = vsub.f32 %v1376, %v1510
  %v1520 = vsub.f32 %v1399, %v1510
  %v1521 = vsub.f32 %v1422, %v1510
  %v1522 = vsub.f32 %v1445, %v1510
  %v1523 = vsub.f32 %v1356, %v1511
  %v1524 = vsub.f32 %v1379, %v1511
  %v1525 = vsub.f32 %v1402, %v1511
  %v1526 = vsub.f32 %v1425, %v1511
  %v1527 = vsub.f32 %v1448, %v1511
  %v1528 = vadd.f32 %v1516, 1e-05
  %v1529 = vadd.f32 %v1517, 1e-05
  %v1530 = vrsqrt.pop %v1528
  %v1531 = vmul.f32 %v1530, %v1528
  %v1532 = vmul.f32 %v1531, %v1530
  %v1533 = vmul.f32 0.5, %v1532
  %v1534 = vsub.f32 1.5, %v1533
  %v1535 = vmul.f32 %v1530, %v1534
  %vm1536 = vweird.f32 %v1528
  %vm1537 = vweird.f32 %v1530
  %vm1538 = vmor %vm1536, %vm1537
  %v1539 = vsel %vm1538, %v1530, %v1535
  %v1540 = vrsqrt.pop %v1529
  %v1541 = vmul.f32 %v1540, %v1529
  %v1542 = vmul.f32 %v1541, %v1540
  %v1543 = vmul.f32 0.5, %v1542
  %v1544 = vsub.f32 1.5, %v1543
  %v1545 = vmul.f32 %v1540, %v1544
  %vm1546 = vweird.f32 %v1529
  %vm1547 = vweird.f32 %v1540
  %vm1548 = vmor %vm1546, %vm1547
  %v1549 = vsel %vm1548, %v1540, %v1545
  %v1550 = vmul.f32 %v1518, %v1539
  %v1551 = vmul.f32 %v1519, %v1539
  %v1552 = vmul.f32 %v1520, %v1539
  %v1553 = vmul.f32 %v1521, %v1539
  %v1554 = vmul.f32 %v1522, %v1539
  %v1555 = vmul.f32 %v1523, %v1549
  %v1556 = vmul.f32 %v1524, %v1549
  %v1557 = vmul.f32 %v1525, %v1549
  %v1558 = vmul.f32 %v1526, %v1549
  %v1559 = vmul.f32 %v1527, %v1549
  %v1560 = vld [vmem:[%s8] sm:$0xff]
  %v1561 = vld [vmem:[%s8 + $0x8] sm:$0xff]
  %1563 = vset.pattern.permute.xlu0 0
  %1564 = vperm.xlu0 %1563, %v1560
  %v1565 = vpop.permute.xlu0 %1564
  %1568 = vset.pattern.permute.xlu0 0
  %1569 = vperm.xlu0 %1568, %v1561
  %v1570 = vpop.permute.xlu0 %1569
  %v1572 = vmul.f32 %v1550, %v1565
  %v1573 = vmul.f32 %v1551, %v1565
  %v1574 = vmul.f32 %v1552, %v1565
  %v1575 = vmul.f32 %v1553, %v1565
  %v1576 = vmul.f32 %v1554, %v1565
  %v1577 = vmul.f32 %v1555, %v1570
  %v1578 = vmul.f32 %v1556, %v1570
  %v1579 = vmul.f32 %v1557, %v1570
  %v1580 = vmul.f32 %v1558, %v1570
  %v1581 = vmul.f32 %v1559, %v1570
  %v1582 = vld [vmem:[%s11] sm:$0xff]
  %v1583 = vld [vmem:[%s11 + $0x8] sm:$0xff]
  %1585 = vset.pattern.permute.xlu0 0
  %1586 = vperm.xlu0 %1585, %v1582
  %v1587 = vpop.permute.xlu0 %1586
  %1590 = vset.pattern.permute.xlu0 0
  %1591 = vperm.xlu0 %1590, %v1583
  %v1592 = vpop.permute.xlu0 %1591
  %v1594 = vadd.f32 %v1572, %v1587
  %v1595 = vadd.f32 %v1573, %v1587
  %v1596 = vadd.f32 %v1574, %v1587
  %v1597 = vadd.f32 %v1575, %v1587
  %v1598 = vadd.f32 %v1576, %v1587
  %v1599 = vadd.f32 %v1577, %v1592
  %v1600 = vadd.f32 %v1578, %v1592
  %v1601 = vadd.f32 %v1579, %v1592
  %v1602 = vadd.f32 %v1580, %v1592
  %v1603 = vadd.f32 %v1581, %v1592
  %vm1604 = vcmp.gt.f32.partialorder %v1594, 0.0
  %vm1605 = vcmp.gt.f32.partialorder %v1595, 0.0
  %vm1606 = vcmp.gt.f32.partialorder %v1596, 0.0
  %vm1607 = vcmp.gt.f32.partialorder %v1597, 0.0
  %vm1608 = vcmp.gt.f32.partialorder %v1598, 0.0
  %vm1609 = vcmp.gt.f32.partialorder %v1599, 0.0
  %vm1610 = vcmp.gt.f32.partialorder %v1600, 0.0
  %vm1611 = vcmp.gt.f32.partialorder %v1601, 0.0
  %vm1612 = vcmp.gt.f32.partialorder %v1602, 0.0
  %vm1613 = vcmp.gt.f32.partialorder %v1603, 0.0
  %v1614 = vmul.f32 %v1594, 0.5
  %v1615 = vmul.f32 %v1595, 0.5
  %v1616 = vmul.f32 %v1596, 0.5
  %v1617 = vmul.f32 %v1597, 0.5
  %v1618 = vmul.f32 %v1598, 0.5
  %v1619 = vmul.f32 %v1599, 0.5
  %v1620 = vmul.f32 %v1600, 0.5
  %v1621 = vmul.f32 %v1601, 0.5
  %v1622 = vmul.f32 %v1602, 0.5
  %v1623 = vmul.f32 %v1603, 0.5
  %v1624 = vtanh.pop %v1614
  %v1625 = vtanh.pop %v1615
  %v1626 = vtanh.pop %v1616
  %v1627 = vtanh.pop %v1617
  %v1628 = vtanh.pop %v1618
  %v1629 = vtanh.pop %v1619
  %v1630 = vtanh.pop %v1620
  %v1631 = vtanh.pop %v1621
  %v1632 = vtanh.pop %v1622
  %v1633 = vtanh.pop %v1623
  %v1634 = vmul.f32 %v1594, 1.442695
  %v1635 = vpow.pop %v1634
  %v1636 = vmul.f32 %v1595, 1.442695
  %v1637 = vpow.pop %v1636
  %v1638 = vmul.f32 %v1596, 1.442695
  %v1639 = vpow.pop %v1638
  %v1640 = vmul.f32 %v1597, 1.442695
  %v1641 = vpow.pop %v1640
  %v1642 = vmul.f32 %v1598, 1.442695
  %v1643 = vpow.pop %v1642
  %v1644 = vmul.f32 %v1599, 1.442695
  %v1645 = vpow.pop %v1644
  %v1646 = vmul.f32 %v1600, 1.442695
  %v1647 = vpow.pop %v1646
  %v1648 = vmul.f32 %v1601, 1.442695
  %v1649 = vpow.pop %v1648
  %v1650 = vmul.f32 %v1602, 1.442695
  %v1651 = vpow.pop %v1650
  %v1652 = vmul.f32 %v1603, 1.442695
  %v1653 = vpow.pop %v1652
  %v1654 = vadd.f32 %v1635, 1.0
  %v1655 = vadd.f32 %v1637, 1.0
  %v1656 = vadd.f32 %v1639, 1.0
  %v1657 = vadd.f32 %v1641, 1.0
  %v1658 = vadd.f32 %v1643, 1.0
  %v1659 = vadd.f32 %v1645, 1.0
  %v1660 = vadd.f32 %v1647, 1.0
  %v1661 = vadd.f32 %v1649, 1.0
  %v1662 = vadd.f32 %v1651, 1.0
  %v1663 = vadd.f32 %v1653, 1.0
  %v1664 = vmul.f32 %v1624, %v1654
  %v1665 = vmul.f32 %v1625, %v1655
  %v1666 = vmul.f32 %v1626, %v1656
  %v1667 = vmul.f32 %v1627, %v1657
  %v1668 = vmul.f32 %v1628, %v1658
  %v1669 = vmul.f32 %v1629, %v1659
  %v1670 = vmul.f32 %v1630, %v1660
  %v1671 = vmul.f32 %v1631, %v1661
  %v1672 = vmul.f32 %v1632, %v1662
  %v1673 = vmul.f32 %v1633, %v1663
  %v1674 = vsel %vm1604, %v1594, %v1664
  %v1675 = vsel %vm1605, %v1595, %v1665
  %v1676 = vsel %vm1606, %v1596, %v1666
  %v1677 = vsel %vm1607, %v1597, %v1667
  %v1678 = vsel %vm1608, %v1598, %v1668
  %v1679 = vsel %vm1609, %v1599, %v1669
  %v1680 = vsel %vm1610, %v1600, %v1670
  %v1681 = vsel %vm1611, %v1601, %v1671
  %v1682 = vsel %vm1612, %v1602, %v1672
  %v1683 = vsel %vm1613, %v1603, %v1673
  %v1684 = vmul.f32 %v1674, %v1451
  %v1685 = vmul.f32 %v1675, %v1452
  %v1686 = vmul.f32 %v1676, %v1453
  %v1687 = vmul.f32 %v1677, %v1454
  %v1688 = vmul.f32 %v1678, %v1455
  %v1689 = vmul.f32 %v1679, %v1451
  %v1690 = vmul.f32 %v1680, %v1452
  %v1691 = vmul.f32 %v1681, %v1453
  %v1692 = vmul.f32 %v1682, %v1454
  %v1693 = vmul.f32 %v1683, %v1455
  %1700 = vrot.lane.b32.xlu0 %v1684, 42
  %v1701 = vpop.permute.xlu0 %1700
  %1702 = vrot.lane.b32.xlu0 %v1685, 42
  %v1703 = vpop.permute.xlu0 %1702
  %1704 = vrot.lane.b32.xlu0 %v1686, 42
  %v1705 = vpop.permute.xlu0 %1704
  %1706 = vrot.lane.b32.xlu0 %v1689, 42
  %v1707 = vpop.permute.xlu0 %1706
  %1708 = vrot.lane.b32.xlu0 %v1690, 42
  %v1709 = vpop.permute.xlu0 %1708
  %1710 = vrot.lane.b32.xlu0 %v1691, 42
  %v1711 = vpop.permute.xlu0 %1710
  %v1712 = vsel %vm47, %v1701, %v1703
  %v1713 = vsel %vm47, %v1703, %v1705
  %v1714 = vsel %vm47, %v1707, %v1709
  %v1715 = vsel %vm47, %v1709, %v1711
  %vm1722 = vcmask 1047888
  %1723 = vst.msk [vmem:[%s14] sm:$0xff] %vm1722, %v1701
  %1724 = vst [vmem:[%s14 + $0x8] sm:$0xff] %v1712
  %vm1725 = vcmask 834560
  %1726 = vst.msk [vmem:[%s14 + $0x10] sm:$0xff] %vm1725, %v1713
  %1727 = vst.msk [vmem:[%s14 + $0x20] sm:$0xff] %vm1722, %v1707
  %1728 = vst [vmem:[%s14 + $0x28] sm:$0xff] %v1714
  %1729 = vst.msk [vmem:[%s14 + $0x30] sm:$0xff] %vm1725, %v1715
  %1734 = vrot.lane.b32.xlu0 %v1686, 110
  %v1735 = vpop.permute.xlu0 %1734
  %1736 = vrot.lane.b32.xlu0 %v1687, 110
  %v1737 = vpop.permute.xlu0 %1736
  %1738 = vrot.lane.b32.xlu0 %v1688, 110
  %v1739 = vpop.permute.xlu0 %1738
  %1740 = vrot.lane.b32.xlu0 %v1691, 110
  %v1741 = vpop.permute.xlu0 %1740
  %1742 = vrot.lane.b32.xlu0 %v1692, 110
  %v1743 = vpop.permute.xlu0 %1742
  %1744 = vrot.lane.b32.xlu0 %v1693, 110
  %v1745 = vpop.permute.xlu0 %1744
  %vm1746 = vcmask 900096
  %v1747 = vsel %vm1746, %v1735, %v1737
  %v1748 = vsel %vm1746, %v1737, %v1739
  %v1749 = vsel %vm1746, %v1741, %v1743
  %v1750 = vsel %vm1746, %v1743, %v1745
  %1757 = vst.msk [vmem:[%s14 + $0xc0] sm:$0xff] %vm1722, %v1747
  %1758 = vst [vmem:[%s14 + $0xc8] sm:$0xff] %v1748
  %1759 = vst.msk [vmem:[%s14 + $0xd0] sm:$0xff] %vm1725, %v1739
  %1760 = vst.msk [vmem:[%s14 + $0xe0] sm:$0xff] %vm1722, %v1749
  %1761 = vst [vmem:[%s14 + $0xe8] sm:$0xff] %v1750
  %1762 = vst.msk [vmem:[%s14 + $0xf0] sm:$0xff] %vm1725, %v1745
  %v1763 = vld [vmem:[%s14] sm:$0xff]
  %v1764 = vld [vmem:[%s14 + $0x8] sm:$0xff]
  %v1765 = vld [vmem:[%s14 + $0x10] sm:$0xff]
  %v1766 = vld [vmem:[%s14 + $0x20] sm:$0xff]
  %v1767 = vld [vmem:[%s14 + $0x28] sm:$0xff]
  %v1768 = vld [vmem:[%s14 + $0x30] sm:$0xff]
  %1775 = vrot.lane.b32.xlu0 %v1763, 107
  %v1776 = vpop.permute.xlu0 %1775
  %1777 = vrot.lane.b32.xlu0 %v1764, 107
  %v1778 = vpop.permute.xlu0 %1777
  %1779 = vrot.lane.b32.xlu0 %v1765, 107
  %v1780 = vpop.permute.xlu0 %1779
  %1781 = vrot.lane.b32.xlu0 %v1766, 107
  %v1782 = vpop.permute.xlu0 %1781
  %1783 = vrot.lane.b32.xlu0 %v1767, 107
  %v1784 = vpop.permute.xlu0 %1783
  %1785 = vrot.lane.b32.xlu0 %v1768, 107
  %v1786 = vpop.permute.xlu0 %1785
  %v1787 = vsel %vm360, %v1776, %v1778
  %v1788 = vsel %vm360, %v1778, %v1780
  %v1789 = vsel %vm360, %v1782, %v1784
  %v1790 = vsel %vm360, %v1784, %v1786
  %1797 = vst [vmem:[#allocation2] sm:$0xff] %v1787
  %1798 = vst [vmem:[#allocation2 + $0x8] sm:$0xff] %v1788
  %1799 = vst.msk [vmem:[#allocation2 + $0x10] sm:$0xff] %vm109, %v1780
  %1800 = vst [vmem:[#allocation2 + $0x28] sm:$0xff] %v1789
  %1801 = vst [vmem:[#allocation2 + $0x30] sm:$0xff] %v1790
  %1802 = vst.msk [vmem:[#allocation2 + $0x38] sm:$0xff] %vm109, %v1786
  %v1803 = vld [vmem:[%s14 + $0xc0] sm:$0xff]
  %v1804 = vld [vmem:[%s14 + $0xc8] sm:$0xff]
  %v1805 = vld [vmem:[%s14 + $0xd0] sm:$0xff]
  %v1806 = vld [vmem:[%s14 + $0xe0] sm:$0xff]
  %v1807 = vld [vmem:[%s14 + $0xe8] sm:$0xff]
  %v1808 = vld [vmem:[%s14 + $0xf0] sm:$0xff]
  %1815 = vrot.lane.b32.xlu0 %v1803, 39
  %v1816 = vpop.permute.xlu0 %1815
  %1817 = vrot.lane.b32.xlu0 %v1804, 39
  %v1818 = vpop.permute.xlu0 %1817
  %1819 = vrot.lane.b32.xlu0 %v1805, 39
  %v1820 = vpop.permute.xlu0 %1819
  %1821 = vrot.lane.b32.xlu0 %v1806, 39
  %v1822 = vpop.permute.xlu0 %1821
  %1823 = vrot.lane.b32.xlu0 %v1807, 39
  %v1824 = vpop.permute.xlu0 %1823
  %1825 = vrot.lane.b32.xlu0 %v1808, 39
  %v1826 = vpop.permute.xlu0 %1825
  %v1827 = vsel %vm384, %v1816, %v1818
  %v1828 = vsel %vm384, %v1818, %v1820
  %v1829 = vsel %vm384, %v1822, %v1824
  %v1830 = vsel %vm384, %v1824, %v1826
  %vm1837 = vcmask 1048032
  %1838 = vst.msk [vmem:[#allocation2 + $0x10] sm:$0xff] %vm1837, %v1816
  %1839 = vst [vmem:[#allocation2 + $0x18] sm:$0xff] %v1827
  %1840 = vst.msk [vmem:[#allocation2 + $0x20] sm:$0xff] %vm1474, %v1828
  %1841 = vst.msk [vmem:[#allocation2 + $0x38] sm:$0xff] %vm1837, %v1822
  %1842 = vst [vmem:[#allocation2 + $0x40] sm:$0xff] %v1829
  %1843 = vst.msk [vmem:[#allocation2 + $0x48] sm:$0xff] %vm1474, %v1830
  %v1844 = vld [vmem:[%s14] sm:$0xff]
  %v1845 = vld [vmem:[%s14 + $0x8] sm:$0xff]
  %v1846 = vld [vmem:[%s14 + $0x10] sm:$0xff]
  %v1847 = vld [vmem:[%s14 + $0x20] sm:$0xff]
  %v1848 = vld [vmem:[%s14 + $0x28] sm:$0xff]
  %v1849 = vld [vmem:[%s14 + $0x30] sm:$0xff]
  %1856 = vrot.lane.b32.xlu0 %v1844, 106
  %v1857 = vpop.permute.xlu0 %1856
  %1858 = vrot.lane.b32.xlu0 %v1845, 106
  %v1859 = vpop.permute.xlu0 %1858
  %1860 = vrot.lane.b32.xlu0 %v1846, 106
  %v1861 = vpop.permute.xlu0 %1860
  %1862 = vrot.lane.b32.xlu0 %v1847, 106
  %v1863 = vpop.permute.xlu0 %1862
  %1864 = vrot.lane.b32.xlu0 %v1848, 106
  %v1865 = vpop.permute.xlu0 %1864
  %1866 = vrot.lane.b32.xlu0 %v1849, 106
  %v1867 = vpop.permute.xlu0 %1866
  %v1868 = vsel %vm408, %v1857, %v1859
  %v1869 = vsel %vm408, %v1859, %v1861
  %v1870 = vsel %vm408, %v1863, %v1865
  %v1871 = vsel %vm408, %v1865, %v1867
  %1878 = vst [vmem:[#allocation2 + $0x50] sm:$0xff] %v1868
  %1879 = vst [vmem:[#allocation2 + $0x58] sm:$0xff] %v1869
  %1880 = vst.msk [vmem:[#allocation2 + $0x60] sm:$0xff] %vm109, %v1861
  %1881 = vst [vmem:[#allocation2 + $0x78] sm:$0xff] %v1870
  %1882 = vst [vmem:[#allocation2 + $0x80] sm:$0xff] %v1871
  %1883 = vst.msk [vmem:[#allocation2 + $0x88] sm:$0xff] %vm109, %v1867
  %v1884 = vld [vmem:[%s14 + $0xc0] sm:$0xff]
  %v1885 = vld [vmem:[%s14 + $0xc8] sm:$0xff]
  %v1886 = vld [vmem:[%s14 + $0xd0] sm:$0xff]
  %v1887 = vld [vmem:[%s14 + $0xe0] sm:$0xff]
  %v1888 = vld [vmem:[%s14 + $0xe8] sm:$0xff]
  %v1889 = vld [vmem:[%s14 + $0xf0] sm:$0xff]
  %1896 = vrot.lane.b32.xlu0 %v1884, 38
  %v1897 = vpop.permute.xlu0 %1896
  %1898 = vrot.lane.b32.xlu0 %v1885, 38
  %v1899 = vpop.permute.xlu0 %1898
  %1900 = vrot.lane.b32.xlu0 %v1886, 38
  %v1901 = vpop.permute.xlu0 %1900
  %1902 = vrot.lane.b32.xlu0 %v1887, 38
  %v1903 = vpop.permute.xlu0 %1902
  %1904 = vrot.lane.b32.xlu0 %v1888, 38
  %v1905 = vpop.permute.xlu0 %1904
  %1906 = vrot.lane.b32.xlu0 %v1889, 38
  %v1907 = vpop.permute.xlu0 %1906
  %v1908 = vsel %vm429, %v1897, %v1899
  %v1909 = vsel %vm429, %v1899, %v1901
  %v1910 = vsel %vm429, %v1903, %v1905
  %v1911 = vsel %vm429, %v1905, %v1907
  %1918 = vst.msk [vmem:[#allocation2 + $0x60] sm:$0xff] %vm1837, %v1897
  %1919 = vst [vmem:[#allocation2 + $0x68] sm:$0xff] %v1908
  %1920 = vst.msk [vmem:[#allocation2 + $0x70] sm:$0xff] %vm1474, %v1909
  %1921 = vst.msk [vmem:[#allocation2 + $0x88] sm:$0xff] %vm1837, %v1903
  %1922 = vst [vmem:[#allocation2 + $0x90] sm:$0xff] %v1910
  %1923 = vst.msk [vmem:[#allocation2 + $0x98] sm:$0xff] %vm1474, %v1911
  %v1924 = vld [vmem:[%s14] sm:$0xff]
  %v1925 = vld [vmem:[%s14 + $0x8] sm:$0xff]
  %v1926 = vld [vmem:[%s14 + $0x10] sm:$0xff]
  %v1927 = vld [vmem:[%s14 + $0x20] sm:$0xff]
  %v1928 = vld [vmem:[%s14 + $0x28] sm:$0xff]
  %v1929 = vld [vmem:[%s14 + $0x30] sm:$0xff]
  %1936 = vrot.lane.b32.xlu0 %v1924, 105
  %v1937 = vpop.permute.xlu0 %1936
  %1938 = vrot.lane.b32.xlu0 %v1925, 105
  %v1939 = vpop.permute.xlu0 %1938
  %1940 = vrot.lane.b32.xlu0 %v1926, 105
  %v1941 = vpop.permute.xlu0 %1940
  %1942 = vrot.lane.b32.xlu0 %v1927, 105
  %v1943 = vpop.permute.xlu0 %1942
  %1944 = vrot.lane.b32.xlu0 %v1928, 105
  %v1945 = vpop.permute.xlu0 %1944
  %1946 = vrot.lane.b32.xlu0 %v1929, 105
  %v1947 = vpop.permute.xlu0 %1946
  %v1948 = vsel %vm450, %v1937, %v1939
  %v1949 = vsel %vm450, %v1939, %v1941
  %v1950 = vsel %vm450, %v1943, %v1945
  %v1951 = vsel %vm450, %v1945, %v1947
  %1958 = vst [vmem:[#allocation2 + $0xa0] sm:$0xff] %v1948
  %1959 = vst [vmem:[#allocation2 + $0xa8] sm:$0xff] %v1949
  %1960 = vst.msk [vmem:[#allocation2 + $0xb0] sm:$0xff] %vm109, %v1941
  %1961 = vst [vmem:[#allocation2 + $0xc8] sm:$0xff] %v1950
  %1962 = vst [vmem:[#allocation2 + $0xd0] sm:$0xff] %v1951
  %1963 = vst.msk [vmem:[#allocation2 + $0xd8] sm:$0xff] %vm109, %v1947
  %v1964 = vld [vmem:[%s14 + $0xc0] sm:$0xff]
  %v1965 = vld [vmem:[%s14 + $0xc8] sm:$0xff]
  %v1966 = vld [vmem:[%s14 + $0xd0] sm:$0xff]
  %v1967 = vld [vmem:[%s14 + $0xe0] sm:$0xff]
  %v1968 = vld [vmem:[%s14 + $0xe8] sm:$0xff]
  %v1969 = vld [vmem:[%s14 + $0xf0] sm:$0xff]
  %1976 = vrot.lane.b32.xlu0 %v1964, 37
  %v1977 = vpop.permute.xlu0 %1976
  %1978 = vrot.lane.b32.xlu0 %v1965, 37
  %v1979 = vpop.permute.xlu0 %1978
  %1980 = vrot.lane.b32.xlu0 %v1966, 37
  %v1981 = vpop.permute.xlu0 %1980
  %1982 = vrot.lane.b32.xlu0 %v1967, 37
  %v1983 = vpop.permute.xlu0 %1982
  %1984 = vrot.lane.b32.xlu0 %v1968, 37
  %v1985 = vpop.permute.xlu0 %1984
  %1986 = vrot.lane.b32.xlu0 %v1969, 37
  %v1987 = vpop.permute.xlu0 %1986
  %v1988 = vsel %vm474, %v1977, %v1979
  %v1989 = vsel %vm474, %v1979, %v1981
  %v1990 = vsel %vm474, %v1983, %v1985
  %v1991 = vsel %vm474, %v1985, %v1987
  %1998 = vst.msk [vmem:[#allocation2 + $0xb0] sm:$0xff] %vm1837, %v1977
  %1999 = vst [vmem:[#allocation2 + $0xb8] sm:$0xff] %v1988
  %2000 = vst.msk [vmem:[#allocation2 + $0xc0] sm:$0xff] %vm1474, %v1989
  %2001 = vst.msk [vmem:[#allocation2 + $0xd8] sm:$0xff] %vm1837, %v1983
  %2002 = vst [vmem:[#allocation2 + $0xe0] sm:$0xff] %v1990
  %2003 = vst.msk [vmem:[#allocation2 + $0xe8] sm:$0xff] %vm1474, %v1991
  %v2004 = vld [vmem:[%s14] sm:$0xff]
  %v2005 = vld [vmem:[%s14 + $0x8] sm:$0xff]
  %v2006 = vld [vmem:[%s14 + $0x10] sm:$0xff]
  %v2007 = vld [vmem:[%s14 + $0x20] sm:$0xff]
  %v2008 = vld [vmem:[%s14 + $0x28] sm:$0xff]
  %v2009 = vld [vmem:[%s14 + $0x30] sm:$0xff]
  %2016 = vrot.lane.b32.xlu0 %v2004, 87
  %v2017 = vpop.permute.xlu0 %2016
  %2018 = vrot.lane.b32.xlu0 %v2005, 87
  %v2019 = vpop.permute.xlu0 %2018
  %2020 = vrot.lane.b32.xlu0 %v2006, 87
  %v2021 = vpop.permute.xlu0 %2020
  %2022 = vrot.lane.b32.xlu0 %v2007, 87
  %v2023 = vpop.permute.xlu0 %2022
  %2024 = vrot.lane.b32.xlu0 %v2008, 87
  %v2025 = vpop.permute.xlu0 %2024
  %2026 = vrot.lane.b32.xlu0 %v2009, 87
  %v2027 = vpop.permute.xlu0 %2026
  %v2028 = vsel %vm588, %v2017, %v2019
  %v2029 = vsel %vm588, %v2019, %v2021
  %v2030 = vsel %vm588, %v2023, %v2025
  %v2031 = vsel %vm588, %v2025, %v2027
  %2038 = vst [vmem:[#allocation2 + $0xf0] sm:$0xff] %v2028
  %2039 = vst [vmem:[#allocation2 + $0xf8] sm:$0xff] %v2029
  %2040 = vst.msk [vmem:[#allocation2 + $0x100] sm:$0xff] %vm109, %v2021
  %2041 = vst [vmem:[#allocation2 + $0x118] sm:$0xff] %v2030
  %2042 = vst [vmem:[#allocation2 + $0x120] sm:$0xff] %v2031
  %2043 = vst.msk [vmem:[#allocation2 + $0x128] sm:$0xff] %vm109, %v2027
  %v2044 = vld [vmem:[%s14 + $0xc0] sm:$0xff]
  %v2045 = vld [vmem:[%s14 + $0xc8] sm:$0xff]
  %v2046 = vld [vmem:[%s14 + $0xd0] sm:$0xff]
  %v2047 = vld [vmem:[%s14 + $0xe0] sm:$0xff]
  %v2048 = vld [vmem:[%s14 + $0xe8] sm:$0xff]
  %v2049 = vld [vmem:[%s14 + $0xf0] sm:$0xff]
  %2056 = vrot.lane.b32.xlu0 %v2044, 19
  %v2057 = vpop.permute.xlu0 %2056
  %2058 = vrot.lane.b32.xlu0 %v2045, 19
  %v2059 = vpop.permute.xlu0 %2058
  %2060 = vrot.lane.b32.xlu0 %v2046, 19
  %v2061 = vpop.permute.xlu0 %2060
  %2062 = vrot.lane.b32.xlu0 %v2047, 19
  %v2063 = vpop.permute.xlu0 %2062
  %2064 = vrot.lane.b32.xlu0 %v2048, 19
  %v2065 = vpop.permute.xlu0 %2064
  %2066 = vrot.lane.b32.xlu0 %v2049, 19
  %v2067 = vpop.permute.xlu0 %2066
  %v2068 = vsel %vm609, %v2057, %v2059
  %v2069 = vsel %vm609, %v2059, %v2061
  %v2070 = vsel %vm609, %v2063, %v2065
  %v2071 = vsel %vm609, %v2065, %v2067
  %2078 = vst.msk [vmem:[#allocation2 + $0x100] sm:$0xff] %vm1837, %v2057
  %2079 = vst [vmem:[#allocation2 + $0x108] sm:$0xff] %v2068
  %2080 = vst.msk [vmem:[#allocation2 + $0x110] sm:$0xff] %vm1474, %v2069
  %2081 = vst.msk [vmem:[#allocation2 + $0x128] sm:$0xff] %vm1837, %v2063
  %2082 = vst [vmem:[#allocation2 + $0x130] sm:$0xff] %v2070
  %2083 = vst.msk [vmem:[#allocation2 + $0x138] sm:$0xff] %vm1474, %v2071
  %v2084 = vld [vmem:[%s14] sm:$0xff]
  %v2085 = vld [vmem:[%s14 + $0x8] sm:$0xff]
  %v2086 = vld [vmem:[%s14 + $0x10] sm:$0xff]
  %v2087 = vld [vmem:[%s14 + $0x20] sm:$0xff]
  %v2088 = vld [vmem:[%s14 + $0x28] sm:$0xff]
  %v2089 = vld [vmem:[%s14 + $0x30] sm:$0xff]
  %2096 = vrot.lane.b32.xlu0 %v2084, 86
  %v2097 = vpop.permute.xlu0 %2096
  %2098 = vrot.lane.b32.xlu0 %v2085, 86
  %v2099 = vpop.permute.xlu0 %2098
  %2100 = vrot.lane.b32.xlu0 %v2086, 86
  %v2101 = vpop.permute.xlu0 %2100
  %2102 = vrot.lane.b32.xlu0 %v2087, 86
  %v2103 = vpop.permute.xlu0 %2102
  %2104 = vrot.lane.b32.xlu0 %v2088, 86
  %v2105 = vpop.permute.xlu0 %2104
  %2106 = vrot.lane.b32.xlu0 %v2089, 86
  %v2107 = vpop.permute.xlu0 %2106
  %v2108 = vsel %vm630, %v2097, %v2099
  %v2109 = vsel %vm630, %v2099, %v2101
  %v2110 = vsel %vm630, %v2103, %v2105
  %v2111 = vsel %vm630, %v2105, %v2107
  %2118 = vst [vmem:[#allocation2 + $0x140] sm:$0xff] %v2108
  %2119 = vst [vmem:[#allocation2 + $0x148] sm:$0xff] %v2109
  %2120 = vst.msk [vmem:[#allocation2 + $0x150] sm:$0xff] %vm109, %v2101
  %2121 = vst [vmem:[#allocation2 + $0x168] sm:$0xff] %v2110
  %2122 = vst [vmem:[#allocation2 + $0x170] sm:$0xff] %v2111
  %2123 = vst.msk [vmem:[#allocation2 + $0x178] sm:$0xff] %vm109, %v2107
  %v2124 = vld [vmem:[%s14 + $0xc0] sm:$0xff]
  %v2125 = vld [vmem:[%s14 + $0xc8] sm:$0xff]
  %v2126 = vld [vmem:[%s14 + $0xd0] sm:$0xff]
  %v2127 = vld [vmem:[%s14 + $0xe0] sm:$0xff]
  %v2128 = vld [vmem:[%s14 + $0xe8] sm:$0xff]
  %v2129 = vld [vmem:[%s14 + $0xf0] sm:$0xff]
  %2136 = vrot.lane.b32.xlu0 %v2124, 18
  %v2137 = vpop.permute.xlu0 %2136
  %2138 = vrot.lane.b32.xlu0 %v2125, 18
  %v2139 = vpop.permute.xlu0 %2138
  %2140 = vrot.lane.b32.xlu0 %v2126, 18
  %v2141 = vpop.permute.xlu0 %2140
  %2142 = vrot.lane.b32.xlu0 %v2127, 18
  %v2143 = vpop.permute.xlu0 %2142
  %2144 = vrot.lane.b32.xlu0 %v2128, 18
  %v2145 = vpop.permute.xlu0 %2144
  %2146 = vrot.lane.b32.xlu0 %v2129, 18
  %v2147 = vpop.permute.xlu0 %2146
  %v2148 = vsel %vm654, %v2137, %v2139
  %v2149 = vsel %vm654, %v2139, %v2141
  %v2150 = vsel %vm654, %v2143, %v2145
  %v2151 = vsel %vm654, %v2145, %v2147
  %2158 = vst.msk [vmem:[#allocation2 + $0x150] sm:$0xff] %vm1837, %v2137
  %2159 = vst [vmem:[#allocation2 + $0x158] sm:$0xff] %v2148
  %2160 = vst.msk [vmem:[#allocation2 + $0x160] sm:$0xff] %vm1474, %v2149
  %2161 = vst.msk [vmem:[#allocation2 + $0x178] sm:$0xff] %vm1837, %v2143
  %2162 = vst [vmem:[#allocation2 + $0x180] sm:$0xff] %v2150
  %2163 = vst.msk [vmem:[#allocation2 + $0x188] sm:$0xff] %vm1474, %v2151
  %v2164 = vld [vmem:[%s14] sm:$0xff]
  %v2165 = vld [vmem:[%s14 + $0x8] sm:$0xff]
  %v2166 = vld [vmem:[%s14 + $0x10] sm:$0xff]
  %v2167 = vld [vmem:[%s14 + $0x20] sm:$0xff]
  %v2168 = vld [vmem:[%s14 + $0x28] sm:$0xff]
  %v2169 = vld [vmem:[%s14 + $0x30] sm:$0xff]
  %2176 = vrot.lane.b32.xlu0 %v2164, 85
  %v2177 = vpop.permute.xlu0 %2176
  %2178 = vrot.lane.b32.xlu0 %v2165, 85
  %v2179 = vpop.permute.xlu0 %2178
  %2180 = vrot.lane.b32.xlu0 %v2166, 85
  %v2181 = vpop.permute.xlu0 %2180
  %2182 = vrot.lane.b32.xlu0 %v2167, 85
  %v2183 = vpop.permute.xlu0 %2182
  %2184 = vrot.lane.b32.xlu0 %v2168, 85
  %v2185 = vpop.permute.xlu0 %2184
  %2186 = vrot.lane.b32.xlu0 %v2169, 85
  %v2187 = vpop.permute.xlu0 %2186
  %v2188 = vsel %vm678, %v2177, %v2179
  %v2189 = vsel %vm678, %v2179, %v2181
  %v2190 = vsel %vm678, %v2183, %v2185
  %v2191 = vsel %vm678, %v2185, %v2187
  %2198 = vst [vmem:[#allocation2 + $0x190] sm:$0xff] %v2188
  %2199 = vst [vmem:[#allocation2 + $0x198] sm:$0xff] %v2189
  %2200 = vst.msk [vmem:[#allocation2 + $0x1a0] sm:$0xff] %vm109, %v2181
  %2201 = vst [vmem:[#allocation2 + $0x1b8] sm:$0xff] %v2190
  %2202 = vst [vmem:[#allocation2 + $0x1c0] sm:$0xff] %v2191
  %2203 = vst.msk [vmem:[#allocation2 + $0x1c8] sm:$0xff] %vm109, %v2187
  %v2204 = vld [vmem:[%s14 + $0xc0] sm:$0xff]
  %v2205 = vld [vmem:[%s14 + $0xc8] sm:$0xff]
  %v2206 = vld [vmem:[%s14 + $0xd0] sm:$0xff]
  %v2207 = vld [vmem:[%s14 + $0xe0] sm:$0xff]
  %v2208 = vld [vmem:[%s14 + $0xe8] sm:$0xff]
  %v2209 = vld [vmem:[%s14 + $0xf0] sm:$0xff]
  %2216 = vrot.lane.b32.xlu0 %v2204, 17
  %v2217 = vpop.permute.xlu0 %2216
  %2218 = vrot.lane.b32.xlu0 %v2205, 17
  %v2219 = vpop.permute.xlu0 %2218
  %2220 = vrot.lane.b32.xlu0 %v2206, 17
  %v2221 = vpop.permute.xlu0 %2220
  %2222 = vrot.lane.b32.xlu0 %v2207, 17
  %v2223 = vpop.permute.xlu0 %2222
  %2224 = vrot.lane.b32.xlu0 %v2208, 17
  %v2225 = vpop.permute.xlu0 %2224
  %2226 = vrot.lane.b32.xlu0 %v2209, 17
  %v2227 = vpop.permute.xlu0 %2226
  %v2228 = vsel %vm699, %v2217, %v2219
  %v2229 = vsel %vm699, %v2219, %v2221
  %v2230 = vsel %vm699, %v2223, %v2225
  %v2231 = vsel %vm699, %v2225, %v2227
  %2238 = vst.msk [vmem:[#allocation2 + $0x1a0] sm:$0xff] %vm1837, %v2217
  %2239 = vst [vmem:[#allocation2 + $0x1a8] sm:$0xff] %v2228
  %2240 = vst.msk [vmem:[#allocation2 + $0x1b0] sm:$0xff] %vm1474, %v2229
  %2241 = vst.msk [vmem:[#allocation2 + $0x1c8] sm:$0xff] %vm1837, %v2223
  %2242 = vst [vmem:[#allocation2 + $0x1d0] sm:$0xff] %v2230
  %2243 = vst.msk [vmem:[#allocation2 + $0x1d8] sm:$0xff] %vm1474, %v2231
  %v2244 = vld [vmem:[%s14] sm:$0xff]
  %v2245 = vld [vmem:[%s14 + $0x8] sm:$0xff]
  %v2246 = vld [vmem:[%s14 + $0x10] sm:$0xff]
  %v2247 = vld [vmem:[%s14 + $0x20] sm:$0xff]
  %v2248 = vld [vmem:[%s14 + $0x28] sm:$0xff]
  %v2249 = vld [vmem:[%s14 + $0x30] sm:$0xff]
  %2256 = vrot.lane.b32.xlu0 %v2244, 67
  %v2257 = vpop.permute.xlu0 %2256
  %2258 = vrot.lane.b32.xlu0 %v2245, 67
  %v2259 = vpop.permute.xlu0 %2258
  %2260 = vrot.lane.b32.xlu0 %v2246, 67
  %v2261 = vpop.permute.xlu0 %2260
  %2262 = vrot.lane.b32.xlu0 %v2247, 67
  %v2263 = vpop.permute.xlu0 %2262
  %2264 = vrot.lane.b32.xlu0 %v2248, 67
  %v2265 = vpop.permute.xlu0 %2264
  %2266 = vrot.lane.b32.xlu0 %v2249, 67
  %v2267 = vpop.permute.xlu0 %2266
  %v2268 = vsel %vm794, %v2257, %v2259
  %v2269 = vsel %vm794, %v2259, %v2261
  %v2270 = vsel %vm794, %v2263, %v2265
  %v2271 = vsel %vm794, %v2265, %v2267
  %2278 = vst [vmem:[#allocation2 + $0x1e0] sm:$0xff] %v2268
  %2279 = vst [vmem:[#allocation2 + $0x1e8] sm:$0xff] %v2269
  %2280 = vst.msk [vmem:[#allocation2 + $0x1f0] sm:$0xff] %vm109, %v2261
  %2281 = vst [vmem:[#allocation2 + $0x208] sm:$0xff] %v2270
  %2282 = vst [vmem:[#allocation2 + $0x210] sm:$0xff] %v2271
  %2283 = vst.msk [vmem:[#allocation2 + $0x218] sm:$0xff] %vm109, %v2267
  %v2284 = vld [vmem:[%s14 + $0xc0] sm:$0xff]
  %v2285 = vld [vmem:[%s14 + $0xc8] sm:$0xff]
  %v2286 = vld [vmem:[%s14 + $0xd0] sm:$0xff]
  %v2287 = vld [vmem:[%s14 + $0xe0] sm:$0xff]
  %v2288 = vld [vmem:[%s14 + $0xe8] sm:$0xff]
  %v2289 = vld [vmem:[%s14 + $0xf0] sm:$0xff]
  %2296 = vrot.lane.b32.xlu0 %v2284, 127
  %v2297 = vpop.permute.xlu0 %2296
  %2298 = vrot.lane.b32.xlu0 %v2285, 127
  %v2299 = vpop.permute.xlu0 %2298
  %2300 = vrot.lane.b32.xlu0 %v2286, 127
  %v2301 = vpop.permute.xlu0 %2300
  %2302 = vrot.lane.b32.xlu0 %v2287, 127
  %v2303 = vpop.permute.xlu0 %2302
  %2304 = vrot.lane.b32.xlu0 %v2288, 127
  %v2305 = vpop.permute.xlu0 %2304
  %2306 = vrot.lane.b32.xlu0 %v2289, 127
  %v2307 = vpop.permute.xlu0 %2306
  %v2308 = vsel %vm135, %v2297, %v2299
  %v2309 = vsel %vm135, %v2299, %v2301
  %v2310 = vsel %vm135, %v2303, %v2305
  %v2311 = vsel %vm135, %v2305, %v2307
  %2318 = vst.msk [vmem:[#allocation2 + $0x1f0] sm:$0xff] %vm1837, %v2308
  %2319 = vst [vmem:[#allocation2 + $0x1f8] sm:$0xff] %v2309
  %2320 = vst.msk [vmem:[#allocation2 + $0x200] sm:$0xff] %vm1474, %v2301
  %2321 = vst.msk [vmem:[#allocation2 + $0x218] sm:$0xff] %vm1837, %v2310
  %2322 = vst [vmem:[#allocation2 + $0x220] sm:$0xff] %v2311
  %2323 = vst.msk [vmem:[#allocation2 + $0x228] sm:$0xff] %vm1474, %v2307
  %v2324 = vld [vmem:[%s14] sm:$0xff]
  %v2325 = vld [vmem:[%s14 + $0x8] sm:$0xff]
  %v2326 = vld [vmem:[%s14 + $0x10] sm:$0xff]
  %v2327 = vld [vmem:[%s14 + $0x20] sm:$0xff]
  %v2328 = vld [vmem:[%s14 + $0x28] sm:$0xff]
  %v2329 = vld [vmem:[%s14 + $0x30] sm:$0xff]
  %2336 = vrot.lane.b32.xlu0 %v2324, 66
  %v2337 = vpop.permute.xlu0 %2336
  %2338 = vrot.lane.b32.xlu0 %v2325, 66
  %v2339 = vpop.permute.xlu0 %2338
  %2340 = vrot.lane.b32.xlu0 %v2326, 66
  %v2341 = vpop.permute.xlu0 %2340
  %2342 = vrot.lane.b32.xlu0 %v2327, 66
  %v2343 = vpop.permute.xlu0 %2342
  %2344 = vrot.lane.b32.xlu0 %v2328, 66
  %v2345 = vpop.permute.xlu0 %2344
  %2346 = vrot.lane.b32.xlu0 %v2329, 66
  %v2347 = vpop.permute.xlu0 %2346
  %v2348 = vsel %vm841, %v2337, %v2339
  %v2349 = vsel %vm841, %v2339, %v2341
  %v2350 = vsel %vm841, %v2343, %v2345
  %v2351 = vsel %vm841, %v2345, %v2347
  %2358 = vst [vmem:[#allocation2 + $0x230] sm:$0xff] %v2348
  %2359 = vst [vmem:[#allocation2 + $0x238] sm:$0xff] %v2349
  %2360 = vst.msk [vmem:[#allocation2 + $0x240] sm:$0xff] %vm109, %v2341
  %2361 = vst [vmem:[#allocation2 + $0x258] sm:$0xff] %v2350
  %2362 = vst [vmem:[#allocation2 + $0x260] sm:$0xff] %v2351
  %2363 = vst.msk [vmem:[#allocation2 + $0x268] sm:$0xff] %vm109, %v2347
  %v2364 = vld [vmem:[%s14 + $0xc0] sm:$0xff]
  %v2365 = vld [vmem:[%s14 + $0xc8] sm:$0xff]
  %v2366 = vld [vmem:[%s14 + $0xd0] sm:$0xff]
  %v2367 = vld [vmem:[%s14 + $0xe0] sm:$0xff]
  %v2368 = vld [vmem:[%s14 + $0xe8] sm:$0xff]
  %v2369 = vld [vmem:[%s14 + $0xf0] sm:$0xff]
  %2376 = vrot.lane.b32.xlu0 %v2364, 126
  %v2377 = vpop.permute.xlu0 %2376
  %2378 = vrot.lane.b32.xlu0 %v2365, 126
  %v2379 = vpop.permute.xlu0 %2378
  %2380 = vrot.lane.b32.xlu0 %v2366, 126
  %v2381 = vpop.permute.xlu0 %2380
  %2382 = vrot.lane.b32.xlu0 %v2367, 126
  %v2383 = vpop.permute.xlu0 %2382
  %2384 = vrot.lane.b32.xlu0 %v2368, 126
  %v2385 = vpop.permute.xlu0 %2384
  %2386 = vrot.lane.b32.xlu0 %v2369, 126
  %v2387 = vpop.permute.xlu0 %2386
  %v2388 = vsel %vm180, %v2377, %v2379
  %v2389 = vsel %vm180, %v2379, %v2381
  %v2390 = vsel %vm180, %v2383, %v2385
  %v2391 = vsel %vm180, %v2385, %v2387
  %2398 = vst.msk [vmem:[#allocation2 + $0x240] sm:$0xff] %vm1837, %v2388
  %2399 = vst [vmem:[#allocation2 + $0x248] sm:$0xff] %v2389
  %2400 = vst.msk [vmem:[#allocation2 + $0x250] sm:$0xff] %vm1474, %v2381
  %2401 = vst.msk [vmem:[#allocation2 + $0x268] sm:$0xff] %vm1837, %v2390
  %2402 = vst [vmem:[#allocation2 + $0x270] sm:$0xff] %v2391
  %2403 = vst.msk [vmem:[#allocation2 + $0x278] sm:$0xff] %vm1474, %v2387
  %v2404 = vld [vmem:[%s14] sm:$0xff]
  %v2405 = vld [vmem:[%s14 + $0x8] sm:$0xff]
  %v2406 = vld [vmem:[%s14 + $0x10] sm:$0xff]
  %v2407 = vld [vmem:[%s14 + $0x20] sm:$0xff]
  %v2408 = vld [vmem:[%s14 + $0x28] sm:$0xff]
  %v2409 = vld [vmem:[%s14 + $0x30] sm:$0xff]
  %2416 = vrot.lane.b32.xlu0 %v2404, 65
  %v2417 = vpop.permute.xlu0 %2416
  %2418 = vrot.lane.b32.xlu0 %v2405, 65
  %v2419 = vpop.permute.xlu0 %2418
  %2420 = vrot.lane.b32.xlu0 %v2406, 65
  %v2421 = vpop.permute.xlu0 %2420
  %2422 = vrot.lane.b32.xlu0 %v2407, 65
  %v2423 = vpop.permute.xlu0 %2422
  %2424 = vrot.lane.b32.xlu0 %v2408, 65
  %v2425 = vpop.permute.xlu0 %2424
  %2426 = vrot.lane.b32.xlu0 %v2409, 65
  %v2427 = vpop.permute.xlu0 %2426
  %v2428 = vsel %vm882, %v2417, %v2419
  %v2429 = vsel %vm882, %v2419, %v2421
  %v2430 = vsel %vm882, %v2423, %v2425
  %v2431 = vsel %vm882, %v2425, %v2427
  %2438 = vst [vmem:[#allocation2 + $0x280] sm:$0xff] %v2428
  %2439 = vst [vmem:[#allocation2 + $0x288] sm:$0xff] %v2429
  %2440 = vst.msk [vmem:[#allocation2 + $0x290] sm:$0xff] %vm109, %v2421
  %2441 = vst [vmem:[#allocation2 + $0x2a8] sm:$0xff] %v2430
  %2442 = vst [vmem:[#allocation2 + $0x2b0] sm:$0xff] %v2431
  %2443 = vst.msk [vmem:[#allocation2 + $0x2b8] sm:$0xff] %vm109, %v2427
  %v2444 = vld [vmem:[%s14 + $0xc0] sm:$0xff]
  %v2445 = vld [vmem:[%s14 + $0xc8] sm:$0xff]
  %v2446 = vld [vmem:[%s14 + $0xd0] sm:$0xff]
  %v2447 = vld [vmem:[%s14 + $0xe0] sm:$0xff]
  %v2448 = vld [vmem:[%s14 + $0xe8] sm:$0xff]
  %v2449 = vld [vmem:[%s14 + $0xf0] sm:$0xff]
  %2456 = vrot.lane.b32.xlu0 %v2444, 125
  %v2457 = vpop.permute.xlu0 %2456
  %2458 = vrot.lane.b32.xlu0 %v2445, 125
  %v2459 = vpop.permute.xlu0 %2458
  %2460 = vrot.lane.b32.xlu0 %v2446, 125
  %v2461 = vpop.permute.xlu0 %2460
  %2462 = vrot.lane.b32.xlu0 %v2447, 125
  %v2463 = vpop.permute.xlu0 %2462
  %2464 = vrot.lane.b32.xlu0 %v2448, 125
  %v2465 = vpop.permute.xlu0 %2464
  %2466 = vrot.lane.b32.xlu0 %v2449, 125
  %v2467 = vpop.permute.xlu0 %2466
  %v2468 = vsel %vm228, %v2457, %v2459
  %v2469 = vsel %vm228, %v2459, %v2461
  %v2470 = vsel %vm228, %v2463, %v2465
  %v2471 = vsel %vm228, %v2465, %v2467
  %2478 = vst.msk [vmem:[#allocation2 + $0x290] sm:$0xff] %vm1837, %v2468
  %2479 = vst [vmem:[#allocation2 + $0x298] sm:$0xff] %v2469
  %2480 = vst.msk [vmem:[#allocation2 + $0x2a0] sm:$0xff] %vm1474, %v2461
  %2481 = vst.msk [vmem:[#allocation2 + $0x2b8] sm:$0xff] %vm1837, %v2470
  %2482 = vst [vmem:[#allocation2 + $0x2c0] sm:$0xff] %v2471
  %2483 = vst.msk [vmem:[#allocation2 + $0x2c8] sm:$0xff] %vm1474, %v2467
  %v2484 = vld [vmem:[#allocation2] sm:$0xff]
  %v2485 = vld [vmem:[#allocation2 + $0x8] sm:$0xff]
  %v2486 = vld [vmem:[#allocation2 + $0x10] sm:$0xff]
  %v2487 = vld [vmem:[#allocation2 + $0x18] sm:$0xff]
  %v2488 = vld [vmem:[#allocation2 + $0x20] sm:$0xff]
  %v2489 = vld [vmem:[#allocation2 + $0x28] sm:$0xff]
  %v2490 = vld [vmem:[#allocation2 + $0x30] sm:$0xff]
  %v2491 = vld [vmem:[#allocation2 + $0x38] sm:$0xff]
  %v2492 = vld [vmem:[#allocation2 + $0x40] sm:$0xff]
  %v2493 = vld [vmem:[#allocation2 + $0x48] sm:$0xff]
  %v2494 = vld [vmem:[#allocation2 + $0x50] sm:$0xff]
  %v2495 = vld [vmem:[#allocation2 + $0x58] sm:$0xff]
  %v2496 = vld [vmem:[#allocation2 + $0x60] sm:$0xff]
  %v2497 = vld [vmem:[#allocation2 + $0x68] sm:$0xff]
  %v2498 = vld [vmem:[#allocation2 + $0x70] sm:$0xff]
  %v2499 = vld [vmem:[#allocation2 + $0x78] sm:$0xff]
  %v2500 = vld [vmem:[#allocation2 + $0x80] sm:$0xff]
  %v2501 = vld [vmem:[#allocation2 + $0x88] sm:$0xff]
  %v2502 = vld [vmem:[#allocation2 + $0x90] sm:$0xff]
  %v2503 = vld [vmem:[#allocation2 + $0x98] sm:$0xff]
  %v2504 = vld [vmem:[#allocation2 + $0xa0] sm:$0xff]
  %v2505 = vld [vmem:[#allocation2 + $0xa8] sm:$0xff]
  %v2506 = vld [vmem:[#allocation2 + $0xb0] sm:$0xff]
  %v2507 = vld [vmem:[#allocation2 + $0xb8] sm:$0xff]
  %v2508 = vld [vmem:[#allocation2 + $0xc0] sm:$0xff]
  %v2509 = vld [vmem:[#allocation2 + $0xc8] sm:$0xff]
  %v2510 = vld [vmem:[#allocation2 + $0xd0] sm:$0xff]
  %v2511 = vld [vmem:[#allocation2 + $0xd8] sm:$0xff]
  %v2512 = vld [vmem:[#allocation2 + $0xe0] sm:$0xff]
  %v2513 = vld [vmem:[#allocation2 + $0xe8] sm:$0xff]
  %v2514 = vld [vmem:[#allocation2 + $0xf0] sm:$0xff]
  %v2515 = vld [vmem:[#allocation2 + $0xf8] sm:$0xff]
  %v2516 = vld [vmem:[#allocation2 + $0x100] sm:$0xff]
  %v2517 = vld [vmem:[#allocation2 + $0x108] sm:$0xff]
  %v2518 = vld [vmem:[#allocation2 + $0x110] sm:$0xff]
  %v2519 = vld [vmem:[#allocation2 + $0x118] sm:$0xff]
  %v2520 = vld [vmem:[#allocation2 + $0x120] sm:$0xff]
  %v2521 = vld [vmem:[#allocation2 + $0x128] sm:$0xff]
  %v2522 = vld [vmem:[#allocation2 + $0x130] sm:$0xff]
  %v2523 = vld [vmem:[#allocation2 + $0x138] sm:$0xff]
  %v2524 = vld [vmem:[#allocation2 + $0x140] sm:$0xff]
  %v2525 = vld [vmem:[#allocation2 + $0x148] sm:$0xff]
  %v2526 = vld [vmem:[#allocation2 + $0x150] sm:$0xff]
  %v2527 = vld [vmem:[#allocation2 + $0x158] sm:$0xff]
  %v2528 = vld [vmem:[#allocation2 + $0x160] sm:$0xff]
  %v2529 = vld [vmem:[#allocation2 + $0x168] sm:$0xff]
  %v2530 = vld [vmem:[#allocation2 + $0x170] sm:$0xff]
  %v2531 = vld [vmem:[#allocation2 + $0x178] sm:$0xff]
  %v2532 = vld [vmem:[#allocation2 + $0x180] sm:$0xff]
  %v2533 = vld [vmem:[#allocation2 + $0x188] sm:$0xff]
  %v2534 = vld [vmem:[#allocation2 + $0x190] sm:$0xff]
  %v2535 = vld [vmem:[#allocation2 + $0x198] sm:$0xff]
  %v2536 = vld [vmem:[#allocation2 + $0x1a0] sm:$0xff]
  %v2537 = vld [vmem:[#allocation2 + $0x1a8] sm:$0xff]
  %v2538 = vld [vmem:[#allocation2 + $0x1b0] sm:$0xff]
  %v2539 = vld [vmem:[#allocation2 + $0x1b8] sm:$0xff]
  %v2540 = vld [vmem:[#allocation2 + $0x1c0] sm:$0xff]
  %v2541 = vld [vmem:[#allocation2 + $0x1c8] sm:$0xff]
  %v2542 = vld [vmem:[#allocation2 + $0x1d0] sm:$0xff]
  %v2543 = vld [vmem:[#allocation2 + $0x1d8] sm:$0xff]
  %v2544 = vld [vmem:[#allocation2 + $0x1e0] sm:$0xff]
  %v2545 = vld [vmem:[#allocation2 + $0x1e8] sm:$0xff]
  %v2546 = vld [vmem:[#allocation2 + $0x1f0] sm:$0xff]
  %v2547 = vld [vmem:[#allocation2 + $0x1f8] sm:$0xff]
  %v2548 = vld [vmem:[#allocation2 + $0x200] sm:$0xff]
  %v2549 = vld [vmem:[#allocation2 + $0x208] sm:$0xff]
  %v2550 = vld [vmem:[#allocation2 + $0x210] sm:$0xff]
  %v2551 = vld [vmem:[#allocation2 + $0x218] sm:$0xff]
  %v2552 = vld [vmem:[#allocation2 + $0x220] sm:$0xff]
  %v2553 = vld [vmem:[#allocation2 + $0x228] sm:$0xff]
  %v2554 = vld [vmem:[#allocation2 + $0x230] sm:$0xff]
  %v2555 = vld [vmem:[#allocation2 + $0x238] sm:$0xff]
  %v2556 = vld [vmem:[#allocation2 + $0x240] sm:$0xff]
  %v2557 = vld [vmem:[#allocation2 + $0x248] sm:$0xff]
  %v2558 = vld [vmem:[#allocation2 + $0x250] sm:$0xff]
  %v2559 = vld [vmem:[#allocation2 + $0x258] sm:$0xff]
  %v2560 = vld [vmem:[#allocation2 + $0x260] sm:$0xff]
  %v2561 = vld [vmem:[#allocation2 + $0x268] sm:$0xff]
  %v2562 = vld [vmem:[#allocation2 + $0x270] sm:$0xff]
  %v2563 = vld [vmem:[#allocation2 + $0x278] sm:$0xff]
  %v2564 = vld [vmem:[#allocation2 + $0x280] sm:$0xff]
  %v2565 = vld [vmem:[#allocation2 + $0x288] sm:$0xff]
  %v2566 = vld [vmem:[#allocation2 + $0x290] sm:$0xff]
  %v2567 = vld [vmem:[#allocation2 + $0x298] sm:$0xff]
  %v2568 = vld [vmem:[#allocation2 + $0x2a0] sm:$0xff]
  %v2569 = vld [vmem:[#allocation2 + $0x2a8] sm:$0xff]
  %v2570 = vld [vmem:[#allocation2 + $0x2b0] sm:$0xff]
  %v2571 = vld [vmem:[#allocation2 + $0x2b8] sm:$0xff]
  %v2572 = vld [vmem:[#allocation2 + $0x2c0] sm:$0xff]
  %v2573 = vld [vmem:[#allocation2 + $0x2c8] sm:$0xff]
  %v2574 = vld [vmem:[%s3] sm:$0xff]
  %v2575 = vld [vmem:[%s3 + $0x8] sm:$0xff]
  %v2576 = vld [vmem:[%s3 + $0x10] sm:$0xff]
  %v2577 = vld [vmem:[%s3 + $0x18] sm:$0xff]
  %v2578 = vld [vmem:[%s6] sm:$0xff]
  %v2579 = vld [vmem:[%s6 + $0x8] sm:$0xff]
  %2581 = vset.pattern.permute.xlu0 0
  %2582 = vperm.xlu0 %2581, %v2578
  %v2583 = vpop.permute.xlu0 %2582
  %2586 = vset.pattern.permute.xlu0 0
  %2587 = vperm.xlu0 %2586, %v2579
  %v2588 = vpop.permute.xlu0 %2587
  %v2591 = vsel %vm62, %v2575, 0
  %v2594 = vsel %vm62, %v2577, 0
  %2596 = vmatpush.msra.mxu0 %v2559
  %2597 = vmatpush.msra.mxu0 %v2554
  %2598 = vmatpush.msra.mxu0 %v2549
  %2599 = vmatpush.msra.mxu0 %v2544
  %2600 = vmatpush.msra.mxu0 %v2539
  %2601 = vmatpush.msra.mxu0 %v2534
  %2602 = vmatpush.msra.mxu0 %v2529
  %2603 = vmatpush.msra.mxu0 %v2524
  %2604 = vmatpush.msra.mxu0 %v2519
  %2605 = vmatpush.msra.mxu0 %v2514
  %2606 = vmatpush.msra.mxu0 %v2509
  %2607 = vmatpush.msra.mxu0 %v2504
  %2608 = vmatpush.msra.mxu0 %v2499
  %2609 = vmatpush.msra.mxu0 %v2494
  %2610 = vmatpush.msra.mxu0 %v2489
  %2611 = vmatpush.msra.mxu0 %v2484
  %2612 = vmatmul.f32.gmra.mxu0 %v2574
  %v2613 = vpop.f32.mrf.mxu0
  %v2614 = vadd.f32 %v2583, %v2613
  %2615 = vmatmul.f32.gmra.mxu0 %v2576
  %v2616 = vpop.f32.mrf.mxu0
  %v2617 = vadd.f32 %v2588, %v2616
  %2618 = vdwg.mxu0
  %2619 = vmatpush.msra.mxu0 0.0
  %2620 = vmatpush.msra.mxu0 0.0
  %2621 = vmatpush.msra.mxu0 0.0
  %2622 = vmatpush.msra.mxu0 0.0
  %2623 = vmatpush.msra.mxu0 0.0
  %2624 = vmatpush.msra.mxu0 0.0
  %2625 = vmatpush.msra.mxu0 0.0
  %2626 = vmatpush.msra.mxu0 0.0
  %2627 = vmatpush.msra.mxu0 0.0
  %2628 = vmatpush.msra.mxu0 0.0
  %2629 = vmatpush.msra.mxu0 0.0
  %2630 = vmatpush.msra.mxu0 0.0
  %2631 = vmatpush.msra.mxu0 0.0
  %2632 = vmatpush.msra.mxu0 0.0
  %2633 = vmatpush.msra.mxu0 %v2569
  %2634 = vmatpush.msra.mxu0 %v2564
  %2635 = vmatmul.f32.gmra.mxu0 %v2591
  %v2636 = vpop.f32.mrf.mxu0
  %v2637 = vadd.f32 %v2614, %v2636
  %2638 = vmatmul.f32.gmra.mxu0 %v2594
  %v2639 = vpop.f32.mrf.mxu0
  %v2640 = vadd.f32 %v2617, %v2639
  %2641 = vdwg.mxu0
  %2642 = vmatpush.msra.mxu0 %v2560
  %2643 = vmatpush.msra.mxu0 %v2555
  %2644 = vmatpush.msra.mxu0 %v2550
  %2645 = vmatpush.msra.mxu0 %v2545
  %2646 = vmatpush.msra.mxu0 %v2540
  %2647 = vmatpush.msra.mxu0 %v2535
  %2648 = vmatpush.msra.mxu0 %v2530
  %2649 = vmatpush.msra.mxu0 %v2525
  %2650 = vmatpush.msra.mxu0 %v2520
  %2651 = vmatpush.msra.mxu0 %v2515
  %2652 = vmatpush.msra.mxu0 %v2510
  %2653 = vmatpush.msra.mxu0 %v2505
  %2654 = vmatpush.msra.mxu0 %v2500
  %2655 = vmatpush.msra.mxu0 %v2495
  %2656 = vmatpush.msra.mxu0 %v2490
  %2657 = vmatpush.msra.mxu0 %v2485
  %2658 = vmatmul.f32.gmra.mxu0 %v2574
  %v2659 = vpop.f32.mrf.mxu0
  %v2660 = vadd.f32 %v2583, %v2659
  %2661 = vmatmul.f32.gmra.mxu0 %v2576
  %v2662 = vpop.f32.mrf.mxu0
  %v2663 = vadd.f32 %v2588, %v2662
  %2664 = vdwg.mxu0
  %2665 = vmatpush.msra.mxu0 0.0
  %2666 = vmatpush.msra.mxu0 0.0
  %2667 = vmatpush.msra.mxu0 0.0
  %2668 = vmatpush.msra.mxu0 0.0
  %2669 = vmatpush.msra.mxu0 0.0
  %2670 = vmatpush.msra.mxu0 0.0
  %2671 = vmatpush.msra.mxu0 0.0
  %2672 = vmatpush.msra.mxu0 0.0
  %2673 = vmatpush.msra.mxu0 0.0
  %2674 = vmatpush.msra.mxu0 0.0
  %2675 = vmatpush.msra.mxu0 0.0
  %2676 = vmatpush.msra.mxu0 0.0
  %2677 = vmatpush.msra.mxu0 0.0
  %2678 = vmatpush.msra.mxu0 0.0
  %2679 = vmatpush.msra.mxu0 %v2570
  %2680 = vmatpush.msra.mxu0 %v2565
  %2681 = vmatmul.f32.gmra.mxu0 %v2591
  %v2682 = vpop.f32.mrf.mxu0
  %v2683 = vadd.f32 %v2660, %v2682
  %2684 = vmatmul.f32.gmra.mxu0 %v2594
  %v2685 = vpop.f32.mrf.mxu0
  %v2686 = vadd.f32 %v2663, %v2685
  %2687 = vdwg.mxu0
  %2688 = vmatpush.msra.mxu0 %v2561
  %2689 = vmatpush.msra.mxu0 %v2556
  %2690 = vmatpush.msra.mxu0 %v2551
  %2691 = vmatpush.msra.mxu0 %v2546
  %2692 = vmatpush.msra.mxu0 %v2541
  %2693 = vmatpush.msra.mxu0 %v2536
  %2694 = vmatpush.msra.mxu0 %v2531
  %2695 = vmatpush.msra.mxu0 %v2526
  %2696 = vmatpush.msra.mxu0 %v2521
  %2697 = vmatpush.msra.mxu0 %v2516
  %2698 = vmatpush.msra.mxu0 %v2511
  %2699 = vmatpush.msra.mxu0 %v2506
  %2700 = vmatpush.msra.mxu0 %v2501
  %2701 = vmatpush.msra.mxu0 %v2496
  %2702 = vmatpush.msra.mxu0 %v2491
  %2703 = vmatpush.msra.mxu0 %v2486
  %2704 = vmatmul.f32.gmra.mxu0 %v2574
  %v2705 = vpop.f32.mrf.mxu0
  %v2706 = vadd.f32 %v2583, %v2705
  %2707 = vmatmul.f32.gmra.mxu0 %v2576
  %v2708 = vpop.f32.mrf.mxu0
  %v2709 = vadd.f32 %v2588, %v2708
  %2710 = vdwg.mxu0
  %2711 = vmatpush.msra.mxu0 0.0
  %2712 = vmatpush.msra.mxu0 0.0
  %2713 = vmatpush.msra.mxu0 0.0
  %2714 = vmatpush.msra.mxu0 0.0
  %2715 = vmatpush.msra.mxu0 0.0
  %2716 = vmatpush.msra.mxu0 0.0
  %2717 = vmatpush.msra.mxu0 0.0
  %2718 = vmatpush.msra.mxu0 0.0
  %2719 = vmatpush.msra.mxu0 0.0
  %2720 = vmatpush.msra.mxu0 0.0
  %2721 = vmatpush.msra.mxu0 0.0
  %2722 = vmatpush.msra.mxu0 0.0
  %2723 = vmatpush.msra.mxu0 0.0
  %2724 = vmatpush.msra.mxu0 0.0
  %2725 = vmatpush.msra.mxu0 %v2571
  %2726 = vmatpush.msra.mxu0 %v2566
  %2727 = vmatmul.f32.gmra.mxu0 %v2591
  %v2728 = vpop.f32.mrf.mxu0
  %v2729 = vadd.f32 %v2706, %v2728
  %2730 = vmatmul.f32.gmra.mxu0 %v2594
  %v2731 = vpop.f32.mrf.mxu0
  %v2732 = vadd.f32 %v2709, %v2731
  %2733 = vdwg.mxu0
  %2734 = vmatpush.msra.mxu0 %v2562
  %2735 = vmatpush.msra.mxu0 %v2557
  %2736 = vmatpush.msra.mxu0 %v2552
  %2737 = vmatpush.msra.mxu0 %v2547
  %2738 = vmatpush.msra.mxu0 %v2542
  %2739 = vmatpush.msra.mxu0 %v2537
  %2740 = vmatpush.msra.mxu0 %v2532
  %2741 = vmatpush.msra.mxu0 %v2527
  %2742 = vmatpush.msra.mxu0 %v2522
  %2743 = vmatpush.msra.mxu0 %v2517
  %2744 = vmatpush.msra.mxu0 %v2512
  %2745 = vmatpush.msra.mxu0 %v2507
  %2746 = vmatpush.msra.mxu0 %v2502
  %2747 = vmatpush.msra.mxu0 %v2497
  %2748 = vmatpush.msra.mxu0 %v2492
  %2749 = vmatpush.msra.mxu0 %v2487
  %2750 = vmatmul.f32.gmra.mxu0 %v2574
  %v2751 = vpop.f32.mrf.mxu0
  %v2752 = vadd.f32 %v2583, %v2751
  %2753 = vmatmul.f32.gmra.mxu0 %v2576
  %v2754 = vpop.f32.mrf.mxu0
  %v2755 = vadd.f32 %v2588, %v2754
  %2756 = vdwg.mxu0
  %2757 = vmatpush.msra.mxu0 0.0
  %2758 = vmatpush.msra.mxu0 0.0
  %2759 = vmatpush.msra.mxu0 0.0
  %2760 = vmatpush.msra.mxu0 0.0
  %2761 = vmatpush.msra.mxu0 0.0
  %2762 = vmatpush.msra.mxu0 0.0
  %2763 = vmatpush.msra.mxu0 0.0
  %2764 = vmatpush.msra.mxu0 0.0
  %2765 = vmatpush.msra.mxu0 0.0
  %2766 = vmatpush.msra.mxu0 0.0
  %2767 = vmatpush.msra.mxu0 0.0
  %2768 = vmatpush.msra.mxu0 0.0
  %2769 = vmatpush.msra.mxu0 0.0
  %2770 = vmatpush.msra.mxu0 0.0
  %2771 = vmatpush.msra.mxu0 %v2572
  %2772 = vmatpush.msra.mxu0 %v2567
  %2773 = vmatmul.f32.gmra.mxu0 %v2591
  %v2774 = vpop.f32.mrf.mxu0
  %v2775 = vadd.f32 %v2752, %v2774
  %2776 = vmatmul.f32.gmra.mxu0 %v2594
  %v2777 = vpop.f32.mrf.mxu0
  %v2778 = vadd.f32 %v2755, %v2777
  %2779 = vdwg.mxu0
  %2780 = vmatpush.msra.mxu0 %v2563
  %2781 = vmatpush.msra.mxu0 %v2558
  %2782 = vmatpush.msra.mxu0 %v2553
  %2783 = vmatpush.msra.mxu0 %v2548
  %2784 = vmatpush.msra.mxu0 %v2543
  %2785 = vmatpush.msra.mxu0 %v2538
  %2786 = vmatpush.msra.mxu0 %v2533
  %2787 = vmatpush.msra.mxu0 %v2528
  %2788 = vmatpush.msra.mxu0 %v2523
  %2789 = vmatpush.msra.mxu0 %v2518
  %2790 = vmatpush.msra.mxu0 %v2513
  %2791 = vmatpush.msra.mxu0 %v2508
  %2792 = vmatpush.msra.mxu0 %v2503
  %2793 = vmatpush.msra.mxu0 %v2498
  %2794 = vmatpush.msra.mxu0 %v2493
  %2795 = vmatpush.msra.mxu0 %v2488
  %2796 = vmatmul.f32.gmra.mxu0 %v2574
  %v2797 = vpop.f32.mrf.mxu0
  %v2798 = vadd.f32 %v2583, %v2797
  %2799 = vmatmul.f32.gmra.mxu0 %v2576
  %v2800 = vpop.f32.mrf.mxu0
  %v2801 = vadd.f32 %v2588, %v2800
  %2802 = vdwg.mxu0
  %2803 = vmatpush.msra.mxu0 0.0
  %2804 = vmatpush.msra.mxu0 0.0
  %2805 = vmatpush.msra.mxu0 0.0
  %2806 = vmatpush.msra.mxu0 0.0
  %2807 = vmatpush.msra.mxu0 0.0
  %2808 = vmatpush.msra.mxu0 0.0
  %2809 = vmatpush.msra.mxu0 0.0
  %2810 = vmatpush.msra.mxu0 0.0
  %2811 = vmatpush.msra.mxu0 0.0
  %2812 = vmatpush.msra.mxu0 0.0
  %2813 = vmatpush.msra.mxu0 0.0
  %2814 = vmatpush.msra.mxu0 0.0
  %2815 = vmatpush.msra.mxu0 0.0
  %2816 = vmatpush.msra.mxu0 0.0
  %2817 = vmatpush.msra.mxu0 %v2573
  %2818 = vmatpush.msra.mxu0 %v2568
  %2819 = vmatmul.f32.gmra.mxu0 %v2591
  %v2820 = vpop.f32.mrf.mxu0
  %v2821 = vadd.f32 %v2798, %v2820
  %2822 = vmatmul.f32.gmra.mxu0 %v2594
  %v2823 = vpop.f32.mrf.mxu0
  %v2824 = vadd.f32 %v2801, %v2823
  %2825 = vdwg.mxu0
  %v2826 = vmul.f32 %v2637, %v1451
  %v2827 = vmul.f32 %v2683, %v1452
  %v2828 = vmul.f32 %v2729, %v1453
  %v2829 = vmul.f32 %v2775, %v1454
  %v2830 = vmul.f32 %v2821, %v1455
  %v2831 = vmul.f32 %v2640, %v1451
  %v2832 = vmul.f32 %v2686, %v1452
  %v2833 = vmul.f32 %v2732, %v1453
  %v2834 = vmul.f32 %v2778, %v1454
  %v2835 = vmul.f32 %v2824, %v1455
  %v2836 = vadd.f32 %v2826, %v2827
  %v2837 = vadd.f32 %v2836, %v2828
  %v2838 = vadd.f32 %v2837, %v2829
  %v2839 = vsel %vm1474, %v2830, 0.0
  %v2840 = vadd.f32 %v2838, %v2839
  %2841 = vadd.xlane.f32.xlu0 %v2840
  %v2842 = vpop.xlane.xlu0 %2841
  %v2843 = vadd.f32 %v2831, %v2832
  %v2844 = vadd.f32 %v2843, %v2833
  %v2845 = vadd.f32 %v2844, %v2834
  %v2846 = vsel %vm1474, %v2835, 0.0
  %v2847 = vadd.f32 %v2845, %v2846
  %2848 = vadd.xlane.f32.xlu0 %v2847
  %v2849 = vpop.xlane.xlu0 %2848
  %v2850 = vmul.f32 %v2826, %v2637
  %v2851 = vmul.f32 %v2827, %v2683
  %v2852 = vmul.f32 %v2828, %v2729
  %v2853 = vmul.f32 %v2829, %v2775
  %v2854 = vmul.f32 %v2830, %v2821
  %v2855 = vmul.f32 %v2831, %v2640
  %v2856 = vmul.f32 %v2832, %v2686
  %v2857 = vmul.f32 %v2833, %v2732
  %v2858 = vmul.f32 %v2834, %v2778
  %v2859 = vmul.f32 %v2835, %v2824
  %v2860 = vadd.f32 %v2850, %v2851
  %v2861 = vadd.f32 %v2860, %v2852
  %v2862 = vadd.f32 %v2861, %v2853
  %v2863 = vsel %vm1474, %v2854, 0.0
  %v2864 = vadd.f32 %v2862, %v2863
  %2865 = vadd.xlane.f32.xlu0 %v2864
  %v2866 = vpop.xlane.xlu0 %2865
  %v2867 = vadd.f32 %v2855, %v2856
  %v2868 = vadd.f32 %v2867, %v2857
  %v2869 = vadd.f32 %v2868, %v2858
  %v2870 = vsel %vm1474, %v2859, 0.0
  %v2871 = vadd.f32 %v2869, %v2870
  %2872 = vadd.xlane.f32.xlu0 %v2871
  %v2873 = vpop.xlane.xlu0 %2872
  %v2874 = vmul.f32 %v2842, 0.001953125
  %v2875 = vmul.f32 %v2849, 0.001953125
  %v2876 = vmul.f32 %v2866, 0.001953125
  %v2877 = vmul.f32 %v2873, 0.001953125
  %v2878 = vmul.f32 %v2874, %v2874
  %v2879 = vmul.f32 %v2875, %v2875
  %v2880 = vsub.f32 %v2876, %v2878
  %v2881 = vsub.f32 %v2877, %v2879
  %v2882 = vsub.f32 %v2637, %v2874
  %v2883 = vsub.f32 %v2683, %v2874
  %v2884 = vsub.f32 %v2729, %v2874
  %v2885 = vsub.f32 %v2775, %v2874
  %v2886 = vsub.f32 %v2821, %v2874
  %v2887 = vsub.f32 %v2640, %v2875
  %v2888 = vsub.f32 %v2686, %v2875
  %v2889 = vsub.f32 %v2732, %v2875
  %v2890 = vsub.f32 %v2778, %v2875
  %v2891 = vsub.f32 %v2824, %v2875
  %v2892 = vadd.f32 %v2880, 1e-05
  %v2893 = vadd.f32 %v2881, 1e-05
  %v2894 = vrsqrt.pop %v2892
  %v2895 = vmul.f32 %v2894, %v2892
  %v2896 = vmul.f32 %v2895, %v2894
  %v2897 = vmul.f32 0.5, %v2896
  %v2898 = vsub.f32 1.5, %v2897
  %v2899 = vmul.f32 %v2894, %v2898
  %vm2900 = vweird.f32 %v2892
  %vm2901 = vweird.f32 %v2894
  %vm2902 = vmor %vm2900, %vm2901
  %v2903 = vsel %vm2902, %v2894, %v2899
  %v2904 = vrsqrt.pop %v2893
  %v2905 = vmul.f32 %v2904, %v2893
  %v2906 = vmul.f32 %v2905, %v2904
  %v2907 = vmul.f32 0.5, %v2906
  %v2908 = vsub.f32 1.5, %v2907
  %v2909 = vmul.f32 %v2904, %v2908
  %vm2910 = vweird.f32 %v2893
  %vm2911 = vweird.f32 %v2904
  %vm2912 = vmor %vm2910, %vm2911
  %v2913 = vsel %vm2912, %v2904, %v2909
  %v2914 = vmul.f32 %v2882, %v2903
  %v2915 = vmul.f32 %v2883, %v2903
  %v2916 = vmul.f32 %v2884, %v2903
  %v2917 = vmul.f32 %v2885, %v2903
  %v2918 = vmul.f32 %v2886, %v2903
  %v2919 = vmul.f32 %v2887, %v2913
  %v2920 = vmul.f32 %v2888, %v2913
  %v2921 = vmul.f32 %v2889, %v2913
  %v2922 = vmul.f32 %v2890, %v2913
  %v2923 = vmul.f32 %v2891, %v2913
  %v2924 = vld [vmem:[%s9] sm:$0xff]
  %v2925 = vld [vmem:[%s9 + $0x8] sm:$0xff]
  %2927 = vset.pattern.permute.xlu0 0
  %2928 = vperm.xlu0 %2927, %v2924
  %v2929 = vpop.permute.xlu0 %2928
  %2932 = vset.pattern.permute.xlu0 0
  %2933 = vperm.xlu0 %2932, %v2925
  %v2934 = vpop.permute.xlu0 %2933
  %v2936 = vmul.f32 %v2914, %v2929
  %v2937 = vmul.f32 %v2915, %v2929
  %v2938 = vmul.f32 %v2916, %v2929
  %v2939 = vmul.f32 %v2917, %v2929
  %v2940 = vmul.f32 %v2918, %v2929
  %v2941 = vmul.f32 %v2919, %v2934
  %v2942 = vmul.f32 %v2920, %v2934
  %v2943 = vmul.f32 %v2921, %v2934
  %v2944 = vmul.f32 %v2922, %v2934
  %v2945 = vmul.f32 %v2923, %v2934
  %v2946 = vld [vmem:[%s12] sm:$0xff]
  %v2947 = vld [vmem:[%s12 + $0x8] sm:$0xff]
  %2949 = vset.pattern.permute.xlu0 0
  %2950 = vperm.xlu0 %2949, %v2946
  %v2951 = vpop.permute.xlu0 %2950
  %2954 = vset.pattern.permute.xlu0 0
  %2955 = vperm.xlu0 %2954, %v2947
  %v2956 = vpop.permute.xlu0 %2955
  %v2958 = vadd.f32 %v2936, %v2951
  %v2959 = vadd.f32 %v2937, %v2951
  %v2960 = vadd.f32 %v2938, %v2951
  %v2961 = vadd.f32 %v2939, %v2951
  %v2962 = vadd.f32 %v2940, %v2951
  %v2963 = vadd.f32 %v2941, %v2956
  %v2964 = vadd.f32 %v2942, %v2956
  %v2965 = vadd.f32 %v2943, %v2956
  %v2966 = vadd.f32 %v2944, %v2956
  %v2967 = vadd.f32 %v2945, %v2956
  %vm2968 = vcmp.gt.f32.partialorder %v2958, 0.0
  %vm2969 = vcmp.gt.f32.partialorder %v2959, 0.0
  %vm2970 = vcmp.gt.f32.partialorder %v2960, 0.0
  %vm2971 = vcmp.gt.f32.partialorder %v2961, 0.0
  %vm2972 = vcmp.gt.f32.partialorder %v2962, 0.0
  %vm2973 = vcmp.gt.f32.partialorder %v2963, 0.0
  %vm2974 = vcmp.gt.f32.partialorder %v2964, 0.0
  %vm2975 = vcmp.gt.f32.partialorder %v2965, 0.0
  %vm2976 = vcmp.gt.f32.partialorder %v2966, 0.0
  %vm2977 = vcmp.gt.f32.partialorder %v2967, 0.0
  %v2978 = vmul.f32 %v2958, 0.5
  %v2979 = vmul.f32 %v2959, 0.5
  %v2980 = vmul.f32 %v2960, 0.5
  %v2981 = vmul.f32 %v2961, 0.5
  %v2982 = vmul.f32 %v2962, 0.5
  %v2983 = vmul.f32 %v2963, 0.5
  %v2984 = vmul.f32 %v2964, 0.5
  %v2985 = vmul.f32 %v2965, 0.5
  %v2986 = vmul.f32 %v2966, 0.5
  %v2987 = vmul.f32 %v2967, 0.5
  %v2988 = vtanh.pop %v2978
  %v2989 = vtanh.pop %v2979
  %v2990 = vtanh.pop %v2980
  %v2991 = vtanh.pop %v2981
  %v2992 = vtanh.pop %v2982
  %v2993 = vtanh.pop %v2983
  %v2994 = vtanh.pop %v2984
  %v2995 = vtanh.pop %v2985
  %v2996 = vtanh.pop %v2986
  %v2997 = vtanh.pop %v2987
  %v2998 = vmul.f32 %v2958, 1.442695
  %v2999 = vpow.pop %v2998
  %v3000 = vmul.f32 %v2959, 1.442695
  %v3001 = vpow.pop %v3000
  %v3002 = vmul.f32 %v2960, 1.442695
  %v3003 = vpow.pop %v3002
  %v3004 = vmul.f32 %v2961, 1.442695
  %v3005 = vpow.pop %v3004
  %v3006 = vmul.f32 %v2962, 1.442695
  %v3007 = vpow.pop %v3006
  %v3008 = vmul.f32 %v2963, 1.442695
  %v3009 = vpow.pop %v3008
  %v3010 = vmul.f32 %v2964, 1.442695
  %v3011 = vpow.pop %v3010
  %v3012 = vmul.f32 %v2965, 1.442695
  %v3013 = vpow.pop %v3012
  %v3014 = vmul.f32 %v2966, 1.442695
  %v3015 = vpow.pop %v3014
  %v3016 = vmul.f32 %v2967, 1.442695
  %v3017 = vpow.pop %v3016
  %v3018 = vadd.f32 %v2999, 1.0
  %v3019 = vadd.f32 %v3001, 1.0
  %v3020 = vadd.f32 %v3003, 1.0
  %v3021 = vadd.f32 %v3005, 1.0
  %v3022 = vadd.f32 %v3007, 1.0
  %v3023 = vadd.f32 %v3009, 1.0
  %v3024 = vadd.f32 %v3011, 1.0
  %v3025 = vadd.f32 %v3013, 1.0
  %v3026 = vadd.f32 %v3015, 1.0
  %v3027 = vadd.f32 %v3017, 1.0
  %v3028 = vmul.f32 %v2988, %v3018
  %v3029 = vmul.f32 %v2989, %v3019
  %v3030 = vmul.f32 %v2990, %v3020
  %v3031 = vmul.f32 %v2991, %v3021
  %v3032 = vmul.f32 %v2992, %v3022
  %v3033 = vmul.f32 %v2993, %v3023
  %v3034 = vmul.f32 %v2994, %v3024
  %v3035 = vmul.f32 %v2995, %v3025
  %v3036 = vmul.f32 %v2996, %v3026
  %v3037 = vmul.f32 %v2997, %v3027
  %v3038 = vsel %vm2968, %v2958, %v3028
  %v3039 = vsel %vm2969, %v2959, %v3029
  %v3040 = vsel %vm2970, %v2960, %v3030
  %v3041 = vsel %vm2971, %v2961, %v3031
  %v3042 = vsel %vm2972, %v2962, %v3032
  %v3043 = vsel %vm2973, %v2963, %v3033
  %v3044 = vsel %vm2974, %v2964, %v3034
  %v3045 = vsel %vm2975, %v2965, %v3035
  %v3046 = vsel %vm2976, %v2966, %v3036
  %v3047 = vsel %vm2977, %v2967, %v3037
  %v3048 = vmul.f32 %v3038, %v1451
  %v3049 = vmul.f32 %v3039, %v1452
  %v3050 = vmul.f32 %v3040, %v1453
  %v3051 = vmul.f32 %v3041, %v1454
  %v3052 = vmul.f32 %v3042, %v1455
  %v3053 = vmul.f32 %v3043, %v1451
  %v3054 = vmul.f32 %v3044, %v1452
  %v3055 = vmul.f32 %v3045, %v1453
  %v3056 = vmul.f32 %v3046, %v1454
  %v3057 = vmul.f32 %v3047, %v1455
  %3064 = vrot.lane.b32.xlu0 %v3048, 42
  %v3065 = vpop.permute.xlu0 %3064
  %3066 = vrot.lane.b32.xlu0 %v3049, 42
  %v3067 = vpop.permute.xlu0 %3066
  %3068 = vrot.lane.b32.xlu0 %v3050, 42
  %v3069 = vpop.permute.xlu0 %3068
  %3070 = vrot.lane.b32.xlu0 %v3053, 42
  %v3071 = vpop.permute.xlu0 %3070
  %3072 = vrot.lane.b32.xlu0 %v3054, 42
  %v3073 = vpop.permute.xlu0 %3072
  %3074 = vrot.lane.b32.xlu0 %v3055, 42
  %v3075 = vpop.permute.xlu0 %3074
  %v3076 = vsel %vm47, %v3065, %v3067
  %v3077 = vsel %vm47, %v3067, %v3069
  %v3078 = vsel %vm47, %v3071, %v3073
  %v3079 = vsel %vm47, %v3073, %v3075
  %3086 = vst.msk [vmem:[%s14 + $0x40] sm:$0xff] %vm1722, %v3065
  %3087 = vst [vmem:[%s14 + $0x48] sm:$0xff] %v3076
  %3088 = vst.msk [vmem:[%s14 + $0x50] sm:$0xff] %vm1725, %v3077
  %3089 = vst.msk [vmem:[%s14 + $0x60] sm:$0xff] %vm1722, %v3071
  %3090 = vst [vmem:[%s14 + $0x68] sm:$0xff] %v3078
  %3091 = vst.msk [vmem:[%s14 + $0x70] sm:$0xff] %vm1725, %v3079
  %3096 = vrot.lane.b32.xlu0 %v3050, 110
  %v3097 = vpop.permute.xlu0 %3096
  %3098 = vrot.lane.b32.xlu0 %v3051, 110
  %v3099 = vpop.permute.xlu0 %3098
  %3100 = vrot.lane.b32.xlu0 %v3052, 110
  %v3101 = vpop.permute.xlu0 %3100
  %3102 = vrot.lane.b32.xlu0 %v3055, 110
  %v3103 = vpop.permute.xlu0 %3102
  %3104 = vrot.lane.b32.xlu0 %v3056, 110
  %v3105 = vpop.permute.xlu0 %3104
  %3106 = vrot.lane.b32.xlu0 %v3057, 110
  %v3107 = vpop.permute.xlu0 %3106
  %v3108 = vsel %vm1746, %v3097, %v3099
  %v3109 = vsel %vm1746, %v3099, %v3101
  %v3110 = vsel %vm1746, %v3103, %v3105
  %v3111 = vsel %vm1746, %v3105, %v3107
  %3118 = vst.msk [vmem:[%s14 + $0x100] sm:$0xff] %vm1722, %v3108
  %3119 = vst [vmem:[%s14 + $0x108] sm:$0xff] %v3109
  %3120 = vst.msk [vmem:[%s14 + $0x110] sm:$0xff] %vm1725, %v3101
  %3121 = vst.msk [vmem:[%s14 + $0x120] sm:$0xff] %vm1722, %v3110
  %3122 = vst [vmem:[%s14 + $0x128] sm:$0xff] %v3111
  %3123 = vst.msk [vmem:[%s14 + $0x130] sm:$0xff] %vm1725, %v3107
  %v3124 = vld [vmem:[%s14 + $0x40] sm:$0xff]
  %v3125 = vld [vmem:[%s14 + $0x48] sm:$0xff]
  %v3126 = vld [vmem:[%s14 + $0x50] sm:$0xff]
  %v3127 = vld [vmem:[%s14 + $0x60] sm:$0xff]
  %v3128 = vld [vmem:[%s14 + $0x68] sm:$0xff]
  %v3129 = vld [vmem:[%s14 + $0x70] sm:$0xff]
  %3136 = vrot.lane.b32.xlu0 %v3124, 107
  %v3137 = vpop.permute.xlu0 %3136
  %3138 = vrot.lane.b32.xlu0 %v3125, 107
  %v3139 = vpop.permute.xlu0 %3138
  %3140 = vrot.lane.b32.xlu0 %v3126, 107
  %v3141 = vpop.permute.xlu0 %3140
  %3142 = vrot.lane.b32.xlu0 %v3127, 107
  %v3143 = vpop.permute.xlu0 %3142
  %3144 = vrot.lane.b32.xlu0 %v3128, 107
  %v3145 = vpop.permute.xlu0 %3144
  %3146 = vrot.lane.b32.xlu0 %v3129, 107
  %v3147 = vpop.permute.xlu0 %3146
  %v3148 = vsel %vm360, %v3137, %v3139
  %v3149 = vsel %vm360, %v3139, %v3141
  %v3150 = vsel %vm360, %v3143, %v3145
  %v3151 = vsel %vm360, %v3145, %v3147
  %3158 = vst [vmem:[#allocation2] sm:$0xff] %v3148
  %3159 = vst [vmem:[#allocation2 + $0x8] sm:$0xff] %v3149
  %3160 = vst.msk [vmem:[#allocation2 + $0x10] sm:$0xff] %vm109, %v3141
  %3161 = vst [vmem:[#allocation2 + $0x28] sm:$0xff] %v3150
  %3162 = vst [vmem:[#allocation2 + $0x30] sm:$0xff] %v3151
  %3163 = vst.msk [vmem:[#allocation2 + $0x38] sm:$0xff] %vm109, %v3147
  %v3164 = vld [vmem:[%s14 + $0x100] sm:$0xff]
  %v3165 = vld [vmem:[%s14 + $0x108] sm:$0xff]
  %v3166 = vld [vmem:[%s14 + $0x110] sm:$0xff]
  %v3167 = vld [vmem:[%s14 + $0x120] sm:$0xff]
  %v3168 = vld [vmem:[%s14 + $0x128] sm:$0xff]
  %v3169 = vld [vmem:[%s14 + $0x130] sm:$0xff]
  %3176 = vrot.lane.b32.xlu0 %v3164, 39
  %v3177 = vpop.permute.xlu0 %3176
  %3178 = vrot.lane.b32.xlu0 %v3165, 39
  %v3179 = vpop.permute.xlu0 %3178
  %3180 = vrot.lane.b32.xlu0 %v3166, 39
  %v3181 = vpop.permute.xlu0 %3180
  %3182 = vrot.lane.b32.xlu0 %v3167, 39
  %v3183 = vpop.permute.xlu0 %3182
  %3184 = vrot.lane.b32.xlu0 %v3168, 39
  %v3185 = vpop.permute.xlu0 %3184
  %3186 = vrot.lane.b32.xlu0 %v3169, 39
  %v3187 = vpop.permute.xlu0 %3186
  %v3188 = vsel %vm384, %v3177, %v3179
  %v3189 = vsel %vm384, %v3179, %v3181
  %v3190 = vsel %vm384, %v3183, %v3185
  %v3191 = vsel %vm384, %v3185, %v3187
  %3198 = vst.msk [vmem:[#allocation2 + $0x10] sm:$0xff] %vm1837, %v3177
  %3199 = vst [vmem:[#allocation2 + $0x18] sm:$0xff] %v3188
  %3200 = vst.msk [vmem:[#allocation2 + $0x20] sm:$0xff] %vm1474, %v3189
  %3201 = vst.msk [vmem:[#allocation2 + $0x38] sm:$0xff] %vm1837, %v3183
  %3202 = vst [vmem:[#allocation2 + $0x40] sm:$0xff] %v3190
  %3203 = vst.msk [vmem:[#allocation2 + $0x48] sm:$0xff] %vm1474, %v3191
  %v3204 = vld [vmem:[%s14 + $0x40] sm:$0xff]
  %v3205 = vld [vmem:[%s14 + $0x48] sm:$0xff]
  %v3206 = vld [vmem:[%s14 + $0x50] sm:$0xff]
  %v3207 = vld [vmem:[%s14 + $0x60] sm:$0xff]
  %v3208 = vld [vmem:[%s14 + $0x68] sm:$0xff]
  %v3209 = vld [vmem:[%s14 + $0x70] sm:$0xff]
  %3216 = vrot.lane.b32.xlu0 %v3204, 106
  %v3217 = vpop.permute.xlu0 %3216
  %3218 = vrot.lane.b32.xlu0 %v3205, 106
  %v3219 = vpop.permute.xlu0 %3218
  %3220 = vrot.lane.b32.xlu0 %v3206, 106
  %v3221 = vpop.permute.xlu0 %3220
  %3222 = vrot.lane.b32.xlu0 %v3207, 106
  %v3223 = vpop.permute.xlu0 %3222
  %3224 = vrot.lane.b32.xlu0 %v3208, 106
  %v3225 = vpop.permute.xlu0 %3224
  %3226 = vrot.lane.b32.xlu0 %v3209, 106
  %v3227 = vpop.permute.xlu0 %3226
  %v3228 = vsel %vm408, %v3217, %v3219
  %v3229 = vsel %vm408, %v3219, %v3221
  %v3230 = vsel %vm408, %v3223, %v3225
  %v3231 = vsel %vm408, %v3225, %v3227
  %3238 = vst [vmem:[#allocation2 + $0x50] sm:$0xff] %v3228
  %3239 = vst [vmem:[#allocation2 + $0x58] sm:$0xff] %v3229
  %3240 = vst.msk [vmem:[#allocation2 + $0x60] sm:$0xff] %vm109, %v3221
  %3241 = vst [vmem:[#allocation2 + $0x78] sm:$0xff] %v3230
  %3242 = vst [vmem:[#allocation2 + $0x80] sm:$0xff] %v3231
  %3243 = vst.msk [vmem:[#allocation2 + $0x88] sm:$0xff] %vm109, %v3227
  %v3244 = vld [vmem:[%s14 + $0x100] sm:$0xff]
  %v3245 = vld [vmem:[%s14 + $0x108] sm:$0xff]
  %v3246 = vld [vmem:[%s14 + $0x110] sm:$0xff]
  %v3247 = vld [vmem:[%s14 + $0x120] sm:$0xff]
  %v3248 = vld [vmem:[%s14 + $0x128] sm:$0xff]
  %v3249 = vld [vmem:[%s14 + $0x130] sm:$0xff]
  %3256 = vrot.lane.b32.xlu0 %v3244, 38
  %v3257 = vpop.permute.xlu0 %3256
  %3258 = vrot.lane.b32.xlu0 %v3245, 38
  %v3259 = vpop.permute.xlu0 %3258
  %3260 = vrot.lane.b32.xlu0 %v3246, 38
  %v3261 = vpop.permute.xlu0 %3260
  %3262 = vrot.lane.b32.xlu0 %v3247, 38
  %v3263 = vpop.permute.xlu0 %3262
  %3264 = vrot.lane.b32.xlu0 %v3248, 38
  %v3265 = vpop.permute.xlu0 %3264
  %3266 = vrot.lane.b32.xlu0 %v3249, 38
  %v3267 = vpop.permute.xlu0 %3266
  %v3268 = vsel %vm429, %v3257, %v3259
  %v3269 = vsel %vm429, %v3259, %v3261
  %v3270 = vsel %vm429, %v3263, %v3265
  %v3271 = vsel %vm429, %v3265, %v3267
  %3278 = vst.msk [vmem:[#allocation2 + $0x60] sm:$0xff] %vm1837, %v3257
  %3279 = vst [vmem:[#allocation2 + $0x68] sm:$0xff] %v3268
  %3280 = vst.msk [vmem:[#allocation2 + $0x70] sm:$0xff] %vm1474, %v3269
  %3281 = vst.msk [vmem:[#allocation2 + $0x88] sm:$0xff] %vm1837, %v3263
  %3282 = vst [vmem:[#allocation2 + $0x90] sm:$0xff] %v3270
  %3283 = vst.msk [vmem:[#allocation2 + $0x98] sm:$0xff] %vm1474, %v3271
  %v3284 = vld [vmem:[%s14 + $0x40] sm:$0xff]
  %v3285 = vld [vmem:[%s14 + $0x48] sm:$0xff]
  %v3286 = vld [vmem:[%s14 + $0x50] sm:$0xff]
  %v3287 = vld [vmem:[%s14 + $0x60] sm:$0xff]
  %v3288 = vld [vmem:[%s14 + $0x68] sm:$0xff]
  %v3289 = vld [vmem:[%s14 + $0x70] sm:$0xff]
  %3296 = vrot.lane.b32.xlu0 %v3284, 105
  %v3297 = vpop.permute.xlu0 %3296
  %3298 = vrot.lane.b32.xlu0 %v3285, 105
  %v3299 = vpop.permute.xlu0 %3298
  %3300 = vrot.lane.b32.xlu0 %v3286, 105
  %v3301 = vpop.permute.xlu0 %3300
  %3302 = vrot.lane.b32.xlu0 %v3287, 105
  %v3303 = vpop.permute.xlu0 %3302
  %3304 = vrot.lane.b32.xlu0 %v3288, 105
  %v3305 = vpop.permute.xlu0 %3304
  %3306 = vrot.lane.b32.xlu0 %v3289, 105
  %v3307 = vpop.permute.xlu0 %3306
  %v3308 = vsel %vm450, %v3297, %v3299
  %v3309 = vsel %vm450, %v3299, %v3301
  %v3310 = vsel %vm450, %v3303, %v3305
  %v3311 = vsel %vm450, %v3305, %v3307
  %3318 = vst [vmem:[#allocation2 + $0xa0] sm:$0xff] %v3308
  %3319 = vst [vmem:[#allocation2 + $0xa8] sm:$0xff] %v3309
  %3320 = vst.msk [vmem:[#allocation2 + $0xb0] sm:$0xff] %vm109, %v3301
  %3321 = vst [vmem:[#allocation2 + $0xc8] sm:$0xff] %v3310
  %3322 = vst [vmem:[#allocation2 + $0xd0] sm:$0xff] %v3311
  %3323 = vst.msk [vmem:[#allocation2 + $0xd8] sm:$0xff] %vm109, %v3307
  %v3324 = vld [vmem:[%s14 + $0x100] sm:$0xff]
  %v3325 = vld [vmem:[%s14 + $0x108] sm:$0xff]
  %v3326 = vld [vmem:[%s14 + $0x110] sm:$0xff]
  %v3327 = vld [vmem:[%s14 + $0x120] sm:$0xff]
  %v3328 = vld [vmem:[%s14 + $0x128] sm:$0xff]
  %v3329 = vld [vmem:[%s14 + $0x130] sm:$0xff]
  %3336 = vrot.lane.b32.xlu0 %v3324, 37
  %v3337 = vpop.permute.xlu0 %3336
  %3338 = vrot.lane.b32.xlu0 %v3325, 37
  %v3339 = vpop.permute.xlu0 %3338
  %3340 = vrot.lane.b32.xlu0 %v3326, 37
  %v3341 = vpop.permute.xlu0 %3340
  %3342 = vrot.lane.b32.xlu0 %v3327, 37
  %v3343 = vpop.permute.xlu0 %3342
  %3344 = vrot.lane.b32.xlu0 %v3328, 37
  %v3345 = vpop.permute.xlu0 %3344
  %3346 = vrot.lane.b32.xlu0 %v3329, 37
  %v3347 = vpop.permute.xlu0 %3346
  %v3348 = vsel %vm474, %v3337, %v3339
  %v3349 = vsel %vm474, %v3339, %v3341
  %v3350 = vsel %vm474, %v3343, %v3345
  %v3351 = vsel %vm474, %v3345, %v3347
  %3358 = vst.msk [vmem:[#allocation2 + $0xb0] sm:$0xff] %vm1837, %v3337
  %3359 = vst [vmem:[#allocation2 + $0xb8] sm:$0xff] %v3348
  %3360 = vst.msk [vmem:[#allocation2 + $0xc0] sm:$0xff] %vm1474, %v3349
  %3361 = vst.msk [vmem:[#allocation2 + $0xd8] sm:$0xff] %vm1837, %v3343
  %3362 = vst [vmem:[#allocation2 + $0xe0] sm:$0xff] %v3350
  %3363 = vst.msk [vmem:[#allocation2 + $0xe8] sm:$0xff] %vm1474, %v3351
  %v3364 = vld [vmem:[%s14 + $0x40] sm:$0xff]
  %v3365 = vld [vmem:[%s14 + $0x48] sm:$0xff]
  %v3366 = vld [vmem:[%s14 + $0x50] sm:$0xff]
  %v3367 = vld [vmem:[%s14 + $0x60] sm:$0xff]
  %v3368 = vld [vmem:[%s14 + $0x68] sm:$0xff]
  %v3369 = vld [vmem:[%s14 + $0x70] sm:$0xff]
  %3376 = vrot.lane.b32.xlu0 %v3364, 87
  %v3377 = vpop.permute.xlu0 %3376
  %3378 = vrot.lane.b32.xlu0 %v3365, 87
  %v3379 = vpop.permute.xlu0 %3378
  %3380 = vrot.lane.b32.xlu0 %v3366, 87
  %v3381 = vpop.permute.xlu0 %3380
  %3382 = vrot.lane.b32.xlu0 %v3367, 87
  %v3383 = vpop.permute.xlu0 %3382
  %3384 = vrot.lane.b32.xlu0 %v3368, 87
  %v3385 = vpop.permute.xlu0 %3384
  %3386 = vrot.lane.b32.xlu0 %v3369, 87
  %v3387 = vpop.permute.xlu0 %3386
  %v3388 = vsel %vm588, %v3377, %v3379
  %v3389 = vsel %vm588, %v3379, %v3381
  %v3390 = vsel %vm588, %v3383, %v3385
  %v3391 = vsel %vm588, %v3385, %v3387
  %3398 = vst [vmem:[#allocation2 + $0xf0] sm:$0xff] %v3388
  %3399 = vst [vmem:[#allocation2 + $0xf8] sm:$0xff] %v3389
  %3400 = vst.msk [vmem:[#allocation2 + $0x100] sm:$0xff] %vm109, %v3381
  %3401 = vst [vmem:[#allocation2 + $0x118] sm:$0xff] %v3390
  %3402 = vst [vmem:[#allocation2 + $0x120] sm:$0xff] %v3391
  %3403 = vst.msk [vmem:[#allocation2 + $0x128] sm:$0xff] %vm109, %v3387
  %v3404 = vld [vmem:[%s14 + $0x100] sm:$0xff]
  %v3405 = vld [vmem:[%s14 + $0x108] sm:$0xff]
  %v3406 = vld [vmem:[%s14 + $0x110] sm:$0xff]
  %v3407 = vld [vmem:[%s14 + $0x120] sm:$0xff]
  %v3408 = vld [vmem:[%s14 + $0x128] sm:$0xff]
  %v3409 = vld [vmem:[%s14 + $0x130] sm:$0xff]
  %3416 = vrot.lane.b32.xlu0 %v3404, 19
  %v3417 = vpop.permute.xlu0 %3416
  %3418 = vrot.lane.b32.xlu0 %v3405, 19
  %v3419 = vpop.permute.xlu0 %3418
  %3420 = vrot.lane.b32.xlu0 %v3406, 19
  %v3421 = vpop.permute.xlu0 %3420
  %3422 = vrot.lane.b32.xlu0 %v3407, 19
  %v3423 = vpop.permute.xlu0 %3422
  %3424 = vrot.lane.b32.xlu0 %v3408, 19
  %v3425 = vpop.permute.xlu0 %3424
  %3426 = vrot.lane.b32.xlu0 %v3409, 19
  %v3427 = vpop.permute.xlu0 %3426
  %v3428 = vsel %vm609, %v3417, %v3419
  %v3429 = vsel %vm609, %v3419, %v3421
  %v3430 = vsel %vm609, %v3423, %v3425
  %v3431 = vsel %vm609, %v3425, %v3427
  %3438 = vst.msk [vmem:[#allocation2 + $0x100] sm:$0xff] %vm1837, %v3417
  %3439 = vst [vmem:[#allocation2 + $0x108] sm:$0xff] %v3428
  %3440 = vst.msk [vmem:[#allocation2 + $0x110] sm:$0xff] %vm1474, %v3429
  %3441 = vst.msk [vmem:[#allocation2 + $0x128] sm:$0xff] %vm1837, %v3423
  %3442 = vst [vmem:[#allocation2 + $0x130] sm:$0xff] %v3430
  %3443 = vst.msk [vmem:[#allocation2 + $0x138] sm:$0xff] %vm1474, %v3431
  %v3444 = vld [vmem:[%s14 + $0x40] sm:$0xff]
  %v3445 = vld [vmem:[%s14 + $0x48] sm:$0xff]
  %v3446 = vld [vmem:[%s14 + $0x50] sm:$0xff]
  %v3447 = vld [vmem:[%s14 + $0x60] sm:$0xff]
  %v3448 = vld [vmem:[%s14 + $0x68] sm:$0xff]
  %v3449 = vld [vmem:[%s14 + $0x70] sm:$0xff]
  %3456 = vrot.lane.b32.xlu0 %v3444, 86
  %v3457 = vpop.permute.xlu0 %3456
  %3458 = vrot.lane.b32.xlu0 %v3445, 86
  %v3459 = vpop.permute.xlu0 %3458
  %3460 = vrot.lane.b32.xlu0 %v3446, 86
  %v3461 = vpop.permute.xlu0 %3460
  %3462 = vrot.lane.b32.xlu0 %v3447, 86
  %v3463 = vpop.permute.xlu0 %3462
  %3464 = vrot.lane.b32.xlu0 %v3448, 86
  %v3465 = vpop.permute.xlu0 %3464
  %3466 = vrot.lane.b32.xlu0 %v3449, 86
  %v3467 = vpop.permute.xlu0 %3466
  %v3468 = vsel %vm630, %v3457, %v3459
  %v3469 = vsel %vm630, %v3459, %v3461
  %v3470 = vsel %vm630, %v3463, %v3465
  %v3471 = vsel %vm630, %v3465, %v3467
  %3478 = vst [vmem:[#allocation2 + $0x140] sm:$0xff] %v3468
  %3479 = vst [vmem:[#allocation2 + $0x148] sm:$0xff] %v3469
  %3480 = vst.msk [vmem:[#allocation2 + $0x150] sm:$0xff] %vm109, %v3461
  %3481 = vst [vmem:[#allocation2 + $0x168] sm:$0xff] %v3470
  %3482 = vst [vmem:[#allocation2 + $0x170] sm:$0xff] %v3471
  %3483 = vst.msk [vmem:[#allocation2 + $0x178] sm:$0xff] %vm109, %v3467
  %v3484 = vld [vmem:[%s14 + $0x100] sm:$0xff]
  %v3485 = vld [vmem:[%s14 + $0x108] sm:$0xff]
  %v3486 = vld [vmem:[%s14 + $0x110] sm:$0xff]
  %v3487 = vld [vmem:[%s14 + $0x120] sm:$0xff]
  %v3488 = vld [vmem:[%s14 + $0x128] sm:$0xff]
  %v3489 = vld [vmem:[%s14 + $0x130] sm:$0xff]
  %3496 = vrot.lane.b32.xlu0 %v3484, 18
  %v3497 = vpop.permute.xlu0 %3496
  %3498 = vrot.lane.b32.xlu0 %v3485, 18
  %v3499 = vpop.permute.xlu0 %3498
  %3500 = vrot.lane.b32.xlu0 %v3486, 18
  %v3501 = vpop.permute.xlu0 %3500
  %3502 = vrot.lane.b32.xlu0 %v3487, 18
  %v3503 = vpop.permute.xlu0 %3502
  %3504 = vrot.lane.b32.xlu0 %v3488, 18
  %v3505 = vpop.permute.xlu0 %3504
  %3506 = vrot.lane.b32.xlu0 %v3489, 18
  %v3507 = vpop.permute.xlu0 %3506
  %v3508 = vsel %vm654, %v3497, %v3499
  %v3509 = vsel %vm654, %v3499, %v3501
  %v3510 = vsel %vm654, %v3503, %v3505
  %v3511 = vsel %vm654, %v3505, %v3507
  %3518 = vst.msk [vmem:[#allocation2 + $0x150] sm:$0xff] %vm1837, %v3497
  %3519 = vst [vmem:[#allocation2 + $0x158] sm:$0xff] %v3508
  %3520 = vst.msk [vmem:[#allocation2 + $0x160] sm:$0xff] %vm1474, %v3509
  %3521 = vst.msk [vmem:[#allocation2 + $0x178] sm:$0xff] %vm1837, %v3503
  %3522 = vst [vmem:[#allocation2 + $0x180] sm:$0xff] %v3510
  %3523 = vst.msk [vmem:[#allocation2 + $0x188] sm:$0xff] %vm1474, %v3511
  %v3524 = vld [vmem:[%s14 + $0x40] sm:$0xff]
  %v3525 = vld [vmem:[%s14 + $0x48] sm:$0xff]
  %v3526 = vld [vmem:[%s14 + $0x50] sm:$0xff]
  %v3527 = vld [vmem:[%s14 + $0x60] sm:$0xff]
  %v3528 = vld [vmem:[%s14 + $0x68] sm:$0xff]
  %v3529 = vld [vmem:[%s14 + $0x70] sm:$0xff]
  %3536 = vrot.lane.b32.xlu0 %v3524, 85
  %v3537 = vpop.permute.xlu0 %3536
  %3538 = vrot.lane.b32.xlu0 %v3525, 85
  %v3539 = vpop.permute.xlu0 %3538
  %3540 = vrot.lane.b32.xlu0 %v3526, 85
  %v3541 = vpop.permute.xlu0 %3540
  %3542 = vrot.lane.b32.xlu0 %v3527, 85
  %v3543 = vpop.permute.xlu0 %3542
  %3544 = vrot.lane.b32.xlu0 %v3528, 85
  %v3545 = vpop.permute.xlu0 %3544
  %3546 = vrot.lane.b32.xlu0 %v3529, 85
  %v3547 = vpop.permute.xlu0 %3546
  %v3548 = vsel %vm678, %v3537, %v3539
  %v3549 = vsel %vm678, %v3539, %v3541
  %v3550 = vsel %vm678, %v3543, %v3545
  %v3551 = vsel %vm678, %v3545, %v3547
  %3558 = vst [vmem:[#allocation2 + $0x190] sm:$0xff] %v3548
  %3559 = vst [vmem:[#allocation2 + $0x198] sm:$0xff] %v3549
  %3560 = vst.msk [vmem:[#allocation2 + $0x1a0] sm:$0xff] %vm109, %v3541
  %3561 = vst [vmem:[#allocation2 + $0x1b8] sm:$0xff] %v3550
  %3562 = vst [vmem:[#allocation2 + $0x1c0] sm:$0xff] %v3551
  %3563 = vst.msk [vmem:[#allocation2 + $0x1c8] sm:$0xff] %vm109, %v3547
  %v3564 = vld [vmem:[%s14 + $0x100] sm:$0xff]
  %v3565 = vld [vmem:[%s14 + $0x108] sm:$0xff]
  %v3566 = vld [vmem:[%s14 + $0x110] sm:$0xff]
  %v3567 = vld [vmem:[%s14 + $0x120] sm:$0xff]
  %v3568 = vld [vmem:[%s14 + $0x128] sm:$0xff]
  %v3569 = vld [vmem:[%s14 + $0x130] sm:$0xff]
  %3576 = vrot.lane.b32.xlu0 %v3564, 17
  %v3577 = vpop.permute.xlu0 %3576
  %3578 = vrot.lane.b32.xlu0 %v3565, 17
  %v3579 = vpop.permute.xlu0 %3578
  %3580 = vrot.lane.b32.xlu0 %v3566, 17
  %v3581 = vpop.permute.xlu0 %3580
  %3582 = vrot.lane.b32.xlu0 %v3567, 17
  %v3583 = vpop.permute.xlu0 %3582
  %3584 = vrot.lane.b32.xlu0 %v3568, 17
  %v3585 = vpop.permute.xlu0 %3584
  %3586 = vrot.lane.b32.xlu0 %v3569, 17
  %v3587 = vpop.permute.xlu0 %3586
  %v3588 = vsel %vm699, %v3577, %v3579
  %v3589 = vsel %vm699, %v3579, %v3581
  %v3590 = vsel %vm699, %v3583, %v3585
  %v3591 = vsel %vm699, %v3585, %v3587
  %3598 = vst.msk [vmem:[#allocation2 + $0x1a0] sm:$0xff] %vm1837, %v3577
  %3599 = vst [vmem:[#allocation2 + $0x1a8] sm:$0xff] %v3588
  %3600 = vst.msk [vmem:[#allocation2 + $0x1b0] sm:$0xff] %vm1474, %v3589
  %3601 = vst.msk [vmem:[#allocation2 + $0x1c8] sm:$0xff] %vm1837, %v3583
  %3602 = vst [vmem:[#allocation2 + $0x1d0] sm:$0xff] %v3590
  %3603 = vst.msk [vmem:[#allocation2 + $0x1d8] sm:$0xff] %vm1474, %v3591
  %v3604 = vld [vmem:[%s14 + $0x40] sm:$0xff]
  %v3605 = vld [vmem:[%s14 + $0x48] sm:$0xff]
  %v3606 = vld [vmem:[%s14 + $0x50] sm:$0xff]
  %v3607 = vld [vmem:[%s14 + $0x60] sm:$0xff]
  %v3608 = vld [vmem:[%s14 + $0x68] sm:$0xff]
  %v3609 = vld [vmem:[%s14 + $0x70] sm:$0xff]
  %3616 = vrot.lane.b32.xlu0 %v3604, 67
  %v3617 = vpop.permute.xlu0 %3616
  %3618 = vrot.lane.b32.xlu0 %v3605, 67
  %v3619 = vpop.permute.xlu0 %3618
  %3620 = vrot.lane.b32.xlu0 %v3606, 67
  %v3621 = vpop.permute.xlu0 %3620
  %3622 = vrot.lane.b32.xlu0 %v3607, 67
  %v3623 = vpop.permute.xlu0 %3622
  %3624 = vrot.lane.b32.xlu0 %v3608, 67
  %v3625 = vpop.permute.xlu0 %3624
  %3626 = vrot.lane.b32.xlu0 %v3609, 67
  %v3627 = vpop.permute.xlu0 %3626
  %v3628 = vsel %vm794, %v3617, %v3619
  %v3629 = vsel %vm794, %v3619, %v3621
  %v3630 = vsel %vm794, %v3623, %v3625
  %v3631 = vsel %vm794, %v3625, %v3627
  %3638 = vst [vmem:[#allocation2 + $0x1e0] sm:$0xff] %v3628
  %3639 = vst [vmem:[#allocation2 + $0x1e8] sm:$0xff] %v3629
  %3640 = vst.msk [vmem:[#allocation2 + $0x1f0] sm:$0xff] %vm109, %v3621
  %3641 = vst [vmem:[#allocation2 + $0x208] sm:$0xff] %v3630
  %3642 = vst [vmem:[#allocation2 + $0x210] sm:$0xff] %v3631
  %3643 = vst.msk [vmem:[#allocation2 + $0x218] sm:$0xff] %vm109, %v3627
  %v3644 = vld [vmem:[%s14 + $0x100] sm:$0xff]
  %v3645 = vld [vmem:[%s14 + $0x108] sm:$0xff]
  %v3646 = vld [vmem:[%s14 + $0x110] sm:$0xff]
  %v3647 = vld [vmem:[%s14 + $0x120] sm:$0xff]
  %v3648 = vld [vmem:[%s14 + $0x128] sm:$0xff]
  %v3649 = vld [vmem:[%s14 + $0x130] sm:$0xff]
  %3656 = vrot.lane.b32.xlu0 %v3644, 127
  %v3657 = vpop.permute.xlu0 %3656
  %3658 = vrot.lane.b32.xlu0 %v3645, 127
  %v3659 = vpop.permute.xlu0 %3658
  %3660 = vrot.lane.b32.xlu0 %v3646, 127
  %v3661 = vpop.permute.xlu0 %3660
  %3662 = vrot.lane.b32.xlu0 %v3647, 127
  %v3663 = vpop.permute.xlu0 %3662
  %3664 = vrot.lane.b32.xlu0 %v3648, 127
  %v3665 = vpop.permute.xlu0 %3664
  %3666 = vrot.lane.b32.xlu0 %v3649, 127
  %v3667 = vpop.permute.xlu0 %3666
  %v3668 = vsel %vm135, %v3657, %v3659
  %v3669 = vsel %vm135, %v3659, %v3661
  %v3670 = vsel %vm135, %v3663, %v3665
  %v3671 = vsel %vm135, %v3665, %v3667
  %3678 = vst.msk [vmem:[#allocation2 + $0x1f0] sm:$0xff] %vm1837, %v3668
  %3679 = vst [vmem:[#allocation2 + $0x1f8] sm:$0xff] %v3669
  %3680 = vst.msk [vmem:[#allocation2 + $0x200] sm:$0xff] %vm1474, %v3661
  %3681 = vst.msk [vmem:[#allocation2 + $0x218] sm:$0xff] %vm1837, %v3670
  %3682 = vst [vmem:[#allocation2 + $0x220] sm:$0xff] %v3671
  %3683 = vst.msk [vmem:[#allocation2 + $0x228] sm:$0xff] %vm1474, %v3667
  %v3684 = vld [vmem:[%s14 + $0x40] sm:$0xff]
  %v3685 = vld [vmem:[%s14 + $0x48] sm:$0xff]
  %v3686 = vld [vmem:[%s14 + $0x50] sm:$0xff]
  %v3687 = vld [vmem:[%s14 + $0x60] sm:$0xff]
  %v3688 = vld [vmem:[%s14 + $0x68] sm:$0xff]
  %v3689 = vld [vmem:[%s14 + $0x70] sm:$0xff]
  %3696 = vrot.lane.b32.xlu0 %v3684, 66
  %v3697 = vpop.permute.xlu0 %3696
  %3698 = vrot.lane.b32.xlu0 %v3685, 66
  %v3699 = vpop.permute.xlu0 %3698
  %3700 = vrot.lane.b32.xlu0 %v3686, 66
  %v3701 = vpop.permute.xlu0 %3700
  %3702 = vrot.lane.b32.xlu0 %v3687, 66
  %v3703 = vpop.permute.xlu0 %3702
  %3704 = vrot.lane.b32.xlu0 %v3688, 66
  %v3705 = vpop.permute.xlu0 %3704
  %3706 = vrot.lane.b32.xlu0 %v3689, 66
  %v3707 = vpop.permute.xlu0 %3706
  %v3708 = vsel %vm841, %v3697, %v3699
  %v3709 = vsel %vm841, %v3699, %v3701
  %v3710 = vsel %vm841, %v3703, %v3705
  %v3711 = vsel %vm841, %v3705, %v3707
  %3718 = vst [vmem:[#allocation2 + $0x230] sm:$0xff] %v3708
  %3719 = vst [vmem:[#allocation2 + $0x238] sm:$0xff] %v3709
  %3720 = vst.msk [vmem:[#allocation2 + $0x240] sm:$0xff] %vm109, %v3701
  %3721 = vst [vmem:[#allocation2 + $0x258] sm:$0xff] %v3710
  %3722 = vst [vmem:[#allocation2 + $0x260] sm:$0xff] %v3711
  %3723 = vst.msk [vmem:[#allocation2 + $0x268] sm:$0xff] %vm109, %v3707
  %v3724 = vld [vmem:[%s14 + $0x100] sm:$0xff]
  %v3725 = vld [vmem:[%s14 + $0x108] sm:$0xff]
  %v3726 = vld [vmem:[%s14 + $0x110] sm:$0xff]
  %v3727 = vld [vmem:[%s14 + $0x120] sm:$0xff]
  %v3728 = vld [vmem:[%s14 + $0x128] sm:$0xff]
  %v3729 = vld [vmem:[%s14 + $0x130] sm:$0xff]
  %3736 = vrot.lane.b32.xlu0 %v3724, 126
  %v3737 = vpop.permute.xlu0 %3736
  %3738 = vrot.lane.b32.xlu0 %v3725, 126
  %v3739 = vpop.permute.xlu0 %3738
  %3740 = vrot.lane.b32.xlu0 %v3726, 126
  %v3741 = vpop.permute.xlu0 %3740
  %3742 = vrot.lane.b32.xlu0 %v3727, 126
  %v3743 = vpop.permute.xlu0 %3742
  %3744 = vrot.lane.b32.xlu0 %v3728, 126
  %v3745 = vpop.permute.xlu0 %3744
  %3746 = vrot.lane.b32.xlu0 %v3729, 126
  %v3747 = vpop.permute.xlu0 %3746
  %v3748 = vsel %vm180, %v3737, %v3739
  %v3749 = vsel %vm180, %v3739, %v3741
  %v3750 = vsel %vm180, %v3743, %v3745
  %v3751 = vsel %vm180, %v3745, %v3747
  %3758 = vst.msk [vmem:[#allocation2 + $0x240] sm:$0xff] %vm1837, %v3748
  %3759 = vst [vmem:[#allocation2 + $0x248] sm:$0xff] %v3749
  %3760 = vst.msk [vmem:[#allocation2 + $0x250] sm:$0xff] %vm1474, %v3741
  %3761 = vst.msk [vmem:[#allocation2 + $0x268] sm:$0xff] %vm1837, %v3750
  %3762 = vst [vmem:[#allocation2 + $0x270] sm:$0xff] %v3751
  %3763 = vst.msk [vmem:[#allocation2 + $0x278] sm:$0xff] %vm1474, %v3747
  %v3764 = vld [vmem:[%s14 + $0x40] sm:$0xff]
  %v3765 = vld [vmem:[%s14 + $0x48] sm:$0xff]
  %v3766 = vld [vmem:[%s14 + $0x50] sm:$0xff]
  %v3767 = vld [vmem:[%s14 + $0x60] sm:$0xff]
  %v3768 = vld [vmem:[%s14 + $0x68] sm:$0xff]
  %v3769 = vld [vmem:[%s14 + $0x70] sm:$0xff]
  %3776 = vrot.lane.b32.xlu0 %v3764, 65
  %v3777 = vpop.permute.xlu0 %3776
  %3778 = vrot.lane.b32.xlu0 %v3765, 65
  %v3779 = vpop.permute.xlu0 %3778
  %3780 = vrot.lane.b32.xlu0 %v3766, 65
  %v3781 = vpop.permute.xlu0 %3780
  %3782 = vrot.lane.b32.xlu0 %v3767, 65
  %v3783 = vpop.permute.xlu0 %3782
  %3784 = vrot.lane.b32.xlu0 %v3768, 65
  %v3785 = vpop.permute.xlu0 %3784
  %3786 = vrot.lane.b32.xlu0 %v3769, 65
  %v3787 = vpop.permute.xlu0 %3786
  %v3788 = vsel %vm882, %v3777, %v3779
  %v3789 = vsel %vm882, %v3779, %v3781
  %v3790 = vsel %vm882, %v3783, %v3785
  %v3791 = vsel %vm882, %v3785, %v3787
  %3798 = vst [vmem:[#allocation2 + $0x280] sm:$0xff] %v3788
  %3799 = vst [vmem:[#allocation2 + $0x288] sm:$0xff] %v3789
  %3800 = vst.msk [vmem:[#allocation2 + $0x290] sm:$0xff] %vm109, %v3781
  %3801 = vst [vmem:[#allocation2 + $0x2a8] sm:$0xff] %v3790
  %3802 = vst [vmem:[#allocation2 + $0x2b0] sm:$0xff] %v3791
  %3803 = vst.msk [vmem:[#allocation2 + $0x2b8] sm:$0xff] %vm109, %v3787
  %v3804 = vld [vmem:[%s14 + $0x100] sm:$0xff]
  %v3805 = vld [vmem:[%s14 + $0x108] sm:$0xff]
  %v3806 = vld [vmem:[%s14 + $0x110] sm:$0xff]
  %v3807 = vld [vmem:[%s14 + $0x120] sm:$0xff]
  %v3808 = vld [vmem:[%s14 + $0x128] sm:$0xff]
  %v3809 = vld [vmem:[%s14 + $0x130] sm:$0xff]
  %3816 = vrot.lane.b32.xlu0 %v3804, 125
  %v3817 = vpop.permute.xlu0 %3816
  %3818 = vrot.lane.b32.xlu0 %v3805, 125
  %v3819 = vpop.permute.xlu0 %3818
  %3820 = vrot.lane.b32.xlu0 %v3806, 125
  %v3821 = vpop.permute.xlu0 %3820
  %3822 = vrot.lane.b32.xlu0 %v3807, 125
  %v3823 = vpop.permute.xlu0 %3822
  %3824 = vrot.lane.b32.xlu0 %v3808, 125
  %v3825 = vpop.permute.xlu0 %3824
  %3826 = vrot.lane.b32.xlu0 %v3809, 125
  %v3827 = vpop.permute.xlu0 %3826
  %v3828 = vsel %vm228, %v3817, %v3819
  %v3829 = vsel %vm228, %v3819, %v3821
  %v3830 = vsel %vm228, %v3823, %v3825
  %v3831 = vsel %vm228, %v3825, %v3827
  %3838 = vst.msk [vmem:[#allocation2 + $0x290] sm:$0xff] %vm1837, %v3828
  %3839 = vst [vmem:[#allocation2 + $0x298] sm:$0xff] %v3829
  %3840 = vst.msk [vmem:[#allocation2 + $0x2a0] sm:$0xff] %vm1474, %v3821
  %3841 = vst.msk [vmem:[#allocation2 + $0x2b8] sm:$0xff] %vm1837, %v3830
  %3842 = vst [vmem:[#allocation2 + $0x2c0] sm:$0xff] %v3831
  %3843 = vst.msk [vmem:[#allocation2 + $0x2c8] sm:$0xff] %vm1474, %v3827
  %v3844 = vld [vmem:[#allocation2] sm:$0xff]
  %v3845 = vld [vmem:[#allocation2 + $0x8] sm:$0xff]
  %v3846 = vld [vmem:[#allocation2 + $0x10] sm:$0xff]
  %v3847 = vld [vmem:[#allocation2 + $0x18] sm:$0xff]
  %v3848 = vld [vmem:[#allocation2 + $0x20] sm:$0xff]
  %v3849 = vld [vmem:[#allocation2 + $0x28] sm:$0xff]
  %v3850 = vld [vmem:[#allocation2 + $0x30] sm:$0xff]
  %v3851 = vld [vmem:[#allocation2 + $0x38] sm:$0xff]
  %v3852 = vld [vmem:[#allocation2 + $0x40] sm:$0xff]
  %v3853 = vld [vmem:[#allocation2 + $0x48] sm:$0xff]
  %v3854 = vld [vmem:[#allocation2 + $0x50] sm:$0xff]
  %v3855 = vld [vmem:[#allocation2 + $0x58] sm:$0xff]
  %v3856 = vld [vmem:[#allocation2 + $0x60] sm:$0xff]
  %v3857 = vld [vmem:[#allocation2 + $0x68] sm:$0xff]
  %v3858 = vld [vmem:[#allocation2 + $0x70] sm:$0xff]
  %v3859 = vld [vmem:[#allocation2 + $0x78] sm:$0xff]
  %v3860 = vld [vmem:[#allocation2 + $0x80] sm:$0xff]
  %v3861 = vld [vmem:[#allocation2 + $0x88] sm:$0xff]
  %v3862 = vld [vmem:[#allocation2 + $0x90] sm:$0xff]
  %v3863 = vld [vmem:[#allocation2 + $0x98] sm:$0xff]
  %v3864 = vld [vmem:[#allocation2 + $0xa0] sm:$0xff]
  %v3865 = vld [vmem:[#allocation2 + $0xa8] sm:$0xff]
  %v3866 = vld [vmem:[#allocation2 + $0xb0] sm:$0xff]
  %v3867 = vld [vmem:[#allocation2 + $0xb8] sm:$0xff]
  %v3868 = vld [vmem:[#allocation2 + $0xc0] sm:$0xff]
  %v3869 = vld [vmem:[#allocation2 + $0xc8] sm:$0xff]
  %v3870 = vld [vmem:[#allocation2 + $0xd0] sm:$0xff]
  %v3871 = vld [vmem:[#allocation2 + $0xd8] sm:$0xff]
  %v3872 = vld [vmem:[#allocation2 + $0xe0] sm:$0xff]
  %v3873 = vld [vmem:[#allocation2 + $0xe8] sm:$0xff]
  %v3874 = vld [vmem:[#allocation2 + $0xf0] sm:$0xff]
  %v3875 = vld [vmem:[#allocation2 + $0xf8] sm:$0xff]
  %v3876 = vld [vmem:[#allocation2 + $0x100] sm:$0xff]
  %v3877 = vld [vmem:[#allocation2 + $0x108] sm:$0xff]
  %v3878 = vld [vmem:[#allocation2 + $0x110] sm:$0xff]
  %v3879 = vld [vmem:[#allocation2 + $0x118] sm:$0xff]
  %v3880 = vld [vmem:[#allocation2 + $0x120] sm:$0xff]
  %v3881 = vld [vmem:[#allocation2 + $0x128] sm:$0xff]
  %v3882 = vld [vmem:[#allocation2 + $0x130] sm:$0xff]
  %v3883 = vld [vmem:[#allocation2 + $0x138] sm:$0xff]
  %v3884 = vld [vmem:[#allocation2 + $0x140] sm:$0xff]
  %v3885 = vld [vmem:[#allocation2 + $0x148] sm:$0xff]
  %v3886 = vld [vmem:[#allocation2 + $0x150] sm:$0xff]
  %v3887 = vld [vmem:[#allocation2 + $0x158] sm:$0xff]
  %v3888 = vld [vmem:[#allocation2 + $0x160] sm:$0xff]
  %v3889 = vld [vmem:[#allocation2 + $0x168] sm:$0xff]
  %v3890 = vld [vmem:[#allocation2 + $0x170] sm:$0xff]
  %v3891 = vld [vmem:[#allocation2 + $0x178] sm:$0xff]
  %v3892 = vld [vmem:[#allocation2 + $0x180] sm:$0xff]
  %v3893 = vld [vmem:[#allocation2 + $0x188] sm:$0xff]
  %v3894 = vld [vmem:[#allocation2 + $0x190] sm:$0xff]
  %v3895 = vld [vmem:[#allocation2 + $0x198] sm:$0xff]
  %v3896 = vld [vmem:[#allocation2 + $0x1a0] sm:$0xff]
  %v3897 = vld [vmem:[#allocation2 + $0x1a8] sm:$0xff]
  %v3898 = vld [vmem:[#allocation2 + $0x1b0] sm:$0xff]
  %v3899 = vld [vmem:[#allocation2 + $0x1b8] sm:$0xff]
  %v3900 = vld [vmem:[#allocation2 + $0x1c0] sm:$0xff]
  %v3901 = vld [vmem:[#allocation2 + $0x1c8] sm:$0xff]
  %v3902 = vld [vmem:[#allocation2 + $0x1d0] sm:$0xff]
  %v3903 = vld [vmem:[#allocation2 + $0x1d8] sm:$0xff]
  %v3904 = vld [vmem:[#allocation2 + $0x1e0] sm:$0xff]
  %v3905 = vld [vmem:[#allocation2 + $0x1e8] sm:$0xff]
  %v3906 = vld [vmem:[#allocation2 + $0x1f0] sm:$0xff]
  %v3907 = vld [vmem:[#allocation2 + $0x1f8] sm:$0xff]
  %v3908 = vld [vmem:[#allocation2 + $0x200] sm:$0xff]
  %v3909 = vld [vmem:[#allocation2 + $0x208] sm:$0xff]
  %v3910 = vld [vmem:[#allocation2 + $0x210] sm:$0xff]
  %v3911 = vld [vmem:[#allocation2 + $0x218] sm:$0xff]
  %v3912 = vld [vmem:[#allocation2 + $0x220] sm:$0xff]
  %v3913 = vld [vmem:[#allocation2 + $0x228] sm:$0xff]
  %v3914 = vld [vmem:[#allocation2 + $0x230] sm:$0xff]
  %v3915 = vld [vmem:[#allocation2 + $0x238] sm:$0xff]
  %v3916 = vld [vmem:[#allocation2 + $0x240] sm:$0xff]
  %v3917 = vld [vmem:[#allocation2 + $0x248] sm:$0xff]
  %v3918 = vld [vmem:[#allocation2 + $0x250] sm:$0xff]
  %v3919 = vld [vmem:[#allocation2 + $0x258] sm:$0xff]
  %v3920 = vld [vmem:[#allocation2 + $0x260] sm:$0xff]
  %v3921 = vld [vmem:[#allocation2 + $0x268] sm:$0xff]
  %v3922 = vld [vmem:[#allocation2 + $0x270] sm:$0xff]
  %v3923 = vld [vmem:[#allocation2 + $0x278] sm:$0xff]
  %v3924 = vld [vmem:[#allocation2 + $0x280] sm:$0xff]
  %v3925 = vld [vmem:[#allocation2 + $0x288] sm:$0xff]
  %v3926 = vld [vmem:[#allocation2 + $0x290] sm:$0xff]
  %v3927 = vld [vmem:[#allocation2 + $0x298] sm:$0xff]
  %v3928 = vld [vmem:[#allocation2 + $0x2a0] sm:$0xff]
  %v3929 = vld [vmem:[#allocation2 + $0x2a8] sm:$0xff]
  %v3930 = vld [vmem:[#allocation2 + $0x2b0] sm:$0xff]
  %v3931 = vld [vmem:[#allocation2 + $0x2b8] sm:$0xff]
  %v3932 = vld [vmem:[#allocation2 + $0x2c0] sm:$0xff]
  %v3933 = vld [vmem:[#allocation2 + $0x2c8] sm:$0xff]
  %v3934 = vld [vmem:[%s4] sm:$0xff]
  %v3935 = vld [vmem:[%s4 + $0x8] sm:$0xff]
  %v3936 = vld [vmem:[%s4 + $0x10] sm:$0xff]
  %v3937 = vld [vmem:[%s4 + $0x18] sm:$0xff]
  %v3938 = vld [vmem:[%s7] sm:$0xff]
  %v3939 = vld [vmem:[%s7 + $0x8] sm:$0xff]
  %3941 = vset.pattern.permute.xlu0 0
  %3942 = vperm.xlu0 %3941, %v3938
  %v3943 = vpop.permute.xlu0 %3942
  %3946 = vset.pattern.permute.xlu0 0
  %3947 = vperm.xlu0 %3946, %v3939
  %v3948 = vpop.permute.xlu0 %3947
  %v3951 = vsel %vm62, %v3935, 0
  %v3954 = vsel %vm62, %v3937, 0
  %3956 = vmatpush.msra.mxu0 %v3919
  %3957 = vmatpush.msra.mxu0 %v3914
  %3958 = vmatpush.msra.mxu0 %v3909
  %3959 = vmatpush.msra.mxu0 %v3904
  %3960 = vmatpush.msra.mxu0 %v3899
  %3961 = vmatpush.msra.mxu0 %v3894
  %3962 = vmatpush.msra.mxu0 %v3889
  %3963 = vmatpush.msra.mxu0 %v3884
  %3964 = vmatpush.msra.mxu0 %v3879
  %3965 = vmatpush.msra.mxu0 %v3874
  %3966 = vmatpush.msra.mxu0 %v3869
  %3967 = vmatpush.msra.mxu0 %v3864
  %3968 = vmatpush.msra.mxu0 %v3859
  %3969 = vmatpush.msra.mxu0 %v3854
  %3970 = vmatpush.msra.mxu0 %v3849
  %3971 = vmatpush.msra.mxu0 %v3844
  %3972 = vmatmul.f32.gmra.mxu0 %v3934
  %v3973 = vpop.f32.mrf.mxu0
  %v3974 = vadd.f32 %v3943, %v3973
  %3975 = vmatmul.f32.gmra.mxu0 %v3936
  %v3976 = vpop.f32.mrf.mxu0
  %v3977 = vadd.f32 %v3948, %v3976
  %3978 = vdwg.mxu0
  %3979 = vmatpush.msra.mxu0 0.0
  %3980 = vmatpush.msra.mxu0 0.0
  %3981 = vmatpush.msra.mxu0 0.0
  %3982 = vmatpush.msra.mxu0 0.0
  %3983 = vmatpush.msra.mxu0 0.0
  %3984 = vmatpush.msra.mxu0 0.0
  %3985 = vmatpush.msra.mxu0 0.0
  %3986 = vmatpush.msra.mxu0 0.0
  %3987 = vmatpush.msra.mxu0 0.0
  %3988 = vmatpush.msra.mxu0 0.0
  %3989 = vmatpush.msra.mxu0 0.0
  %3990 = vmatpush.msra.mxu0 0.0
  %3991 = vmatpush.msra.mxu0 0.0
  %3992 = vmatpush.msra.mxu0 0.0
  %3993 = vmatpush.msra.mxu0 %v3929
  %3994 = vmatpush.msra.mxu0 %v3924
  %3995 = vmatmul.f32.gmra.mxu0 %v3951
  %v3996 = vpop.f32.mrf.mxu0
  %v3997 = vadd.f32 %v3974, %v3996
  %3998 = vmatmul.f32.gmra.mxu0 %v3954
  %v3999 = vpop.f32.mrf.mxu0
  %v4000 = vadd.f32 %v3977, %v3999
  %4001 = vdwg.mxu0
  %4002 = vmatpush.msra.mxu0 %v3920
  %4003 = vmatpush.msra.mxu0 %v3915
  %4004 = vmatpush.msra.mxu0 %v3910
  %4005 = vmatpush.msra.mxu0 %v3905
  %4006 = vmatpush.msra.mxu0 %v3900
  %4007 = vmatpush.msra.mxu0 %v3895
  %4008 = vmatpush.msra.mxu0 %v3890
  %4009 = vmatpush.msra.mxu0 %v3885
  %4010 = vmatpush.msra.mxu0 %v3880
  %4011 = vmatpush.msra.mxu0 %v3875
  %4012 = vmatpush.msra.mxu0 %v3870
  %4013 = vmatpush.msra.mxu0 %v3865
  %4014 = vmatpush.msra.mxu0 %v3860
  %4015 = vmatpush.msra.mxu0 %v3855
  %4016 = vmatpush.msra.mxu0 %v3850
  %4017 = vmatpush.msra.mxu0 %v3845
  %4018 = vmatmul.f32.gmra.mxu0 %v3934
  %v4019 = vpop.f32.mrf.mxu0
  %v4020 = vadd.f32 %v3943, %v4019
  %4021 = vmatmul.f32.gmra.mxu0 %v3936
  %v4022 = vpop.f32.mrf.mxu0
  %v4023 = vadd.f32 %v3948, %v4022
  %4024 = vdwg.mxu0
  %4025 = vmatpush.msra.mxu0 0.0
  %4026 = vmatpush.msra.mxu0 0.0
  %4027 = vmatpush.msra.mxu0 0.0
  %4028 = vmatpush.msra.mxu0 0.0
  %4029 = vmatpush.msra.mxu0 0.0
  %4030 = vmatpush.msra.mxu0 0.0
  %4031 = vmatpush.msra.mxu0 0.0
  %4032 = vmatpush.msra.mxu0 0.0
  %4033 = vmatpush.msra.mxu0 0.0
  %4034 = vmatpush.msra.mxu0 0.0
  %4035 = vmatpush.msra.mxu0 0.0
  %4036 = vmatpush.msra.mxu0 0.0
  %4037 = vmatpush.msra.mxu0 0.0
  %4038 = vmatpush.msra.mxu0 0.0
  %4039 = vmatpush.msra.mxu0 %v3930
  %4040 = vmatpush.msra.mxu0 %v3925
  %4041 = vmatmul.f32.gmra.mxu0 %v3951
  %v4042 = vpop.f32.mrf.mxu0
  %v4043 = vadd.f32 %v4020, %v4042
  %4044 = vmatmul.f32.gmra.mxu0 %v3954
  %v4045 = vpop.f32.mrf.mxu0
  %v4046 = vadd.f32 %v4023, %v4045
  %4047 = vdwg.mxu0
  %4048 = vmatpush.msra.mxu0 %v3921
  %4049 = vmatpush.msra.mxu0 %v3916
  %4050 = vmatpush.msra.mxu0 %v3911
  %4051 = vmatpush.msra.mxu0 %v3906
  %4052 = vmatpush.msra.mxu0 %v3901
  %4053 = vmatpush.msra.mxu0 %v3896
  %4054 = vmatpush.msra.mxu0 %v3891
  %4055 = vmatpush.msra.mxu0 %v3886
  %4056 = vmatpush.msra.mxu0 %v3881
  %4057 = vmatpush.msra.mxu0 %v3876
  %4058 = vmatpush.msra.mxu0 %v3871
  %4059 = vmatpush.msra.mxu0 %v3866
  %4060 = vmatpush.msra.mxu0 %v3861
  %4061 = vmatpush.msra.mxu0 %v3856
  %4062 = vmatpush.msra.mxu0 %v3851
  %4063 = vmatpush.msra.mxu0 %v3846
  %4064 = vmatmul.f32.gmra.mxu0 %v3934
  %v4065 = vpop.f32.mrf.mxu0
  %v4066 = vadd.f32 %v3943, %v4065
  %4067 = vmatmul.f32.gmra.mxu0 %v3936
  %v4068 = vpop.f32.mrf.mxu0
  %v4069 = vadd.f32 %v3948, %v4068
  %4070 = vdwg.mxu0
  %4071 = vmatpush.msra.mxu0 0.0
  %4072 = vmatpush.msra.mxu0 0.0
  %4073 = vmatpush.msra.mxu0 0.0
  %4074 = vmatpush.msra.mxu0 0.0
  %4075 = vmatpush.msra.mxu0 0.0
  %4076 = vmatpush.msra.mxu0 0.0
  %4077 = vmatpush.msra.mxu0 0.0
  %4078 = vmatpush.msra.mxu0 0.0
  %4079 = vmatpush.msra.mxu0 0.0
  %4080 = vmatpush.msra.mxu0 0.0
  %4081 = vmatpush.msra.mxu0 0.0
  %4082 = vmatpush.msra.mxu0 0.0
  %4083 = vmatpush.msra.mxu0 0.0
  %4084 = vmatpush.msra.mxu0 0.0
  %4085 = vmatpush.msra.mxu0 %v3931
  %4086 = vmatpush.msra.mxu0 %v3926
  %4087 = vmatmul.f32.gmra.mxu0 %v3951
  %v4088 = vpop.f32.mrf.mxu0
  %v4089 = vadd.f32 %v4066, %v4088
  %4090 = vmatmul.f32.gmra.mxu0 %v3954
  %v4091 = vpop.f32.mrf.mxu0
  %v4092 = vadd.f32 %v4069, %v4091
  %4093 = vdwg.mxu0
  %4094 = vmatpush.msra.mxu0 %v3922
  %4095 = vmatpush.msra.mxu0 %v3917
  %4096 = vmatpush.msra.mxu0 %v3912
  %4097 = vmatpush.msra.mxu0 %v3907
  %4098 = vmatpush.msra.mxu0 %v3902
  %4099 = vmatpush.msra.mxu0 %v3897
  %4100 = vmatpush.msra.mxu0 %v3892
  %4101 = vmatpush.msra.mxu0 %v3887
  %4102 = vmatpush.msra.mxu0 %v3882
  %4103 = vmatpush.msra.mxu0 %v3877
  %4104 = vmatpush.msra.mxu0 %v3872
  %4105 = vmatpush.msra.mxu0 %v3867
  %4106 = vmatpush.msra.mxu0 %v3862
  %4107 = vmatpush.msra.mxu0 %v3857
  %4108 = vmatpush.msra.mxu0 %v3852
  %4109 = vmatpush.msra.mxu0 %v3847
  %4110 = vmatmul.f32.gmra.mxu0 %v3934
  %v4111 = vpop.f32.mrf.mxu0
  %v4112 = vadd.f32 %v3943, %v4111
  %4113 = vmatmul.f32.gmra.mxu0 %v3936
  %v4114 = vpop.f32.mrf.mxu0
  %v4115 = vadd.f32 %v3948, %v4114
  %4116 = vdwg.mxu0
  %4117 = vmatpush.msra.mxu0 0.0
  %4118 = vmatpush.msra.mxu0 0.0
  %4119 = vmatpush.msra.mxu0 0.0
  %4120 = vmatpush.msra.mxu0 0.0
  %4121 = vmatpush.msra.mxu0 0.0
  %4122 = vmatpush.msra.mxu0 0.0
  %4123 = vmatpush.msra.mxu0 0.0
  %4124 = vmatpush.msra.mxu0 0.0
  %4125 = vmatpush.msra.mxu0 0.0
  %4126 = vmatpush.msra.mxu0 0.0
  %4127 = vmatpush.msra.mxu0 0.0
  %4128 = vmatpush.msra.mxu0 0.0
  %4129 = vmatpush.msra.mxu0 0.0
  %4130 = vmatpush.msra.mxu0 0.0
  %4131 = vmatpush.msra.mxu0 %v3932
  %4132 = vmatpush.msra.mxu0 %v3927
  %4133 = vmatmul.f32.gmra.mxu0 %v3951
  %v4134 = vpop.f32.mrf.mxu0
  %v4135 = vadd.f32 %v4112, %v4134
  %4136 = vmatmul.f32.gmra.mxu0 %v3954
  %v4137 = vpop.f32.mrf.mxu0
  %v4138 = vadd.f32 %v4115, %v4137
  %4139 = vdwg.mxu0
  %4140 = vmatpush.msra.mxu0 %v3923
  %4141 = vmatpush.msra.mxu0 %v3918
  %4142 = vmatpush.msra.mxu0 %v3913
  %4143 = vmatpush.msra.mxu0 %v3908
  %4144 = vmatpush.msra.mxu0 %v3903
  %4145 = vmatpush.msra.mxu0 %v3898
  %4146 = vmatpush.msra.mxu0 %v3893
  %4147 = vmatpush.msra.mxu0 %v3888
  %4148 = vmatpush.msra.mxu0 %v3883
  %4149 = vmatpush.msra.mxu0 %v3878
  %4150 = vmatpush.msra.mxu0 %v3873
  %4151 = vmatpush.msra.mxu0 %v3868
  %4152 = vmatpush.msra.mxu0 %v3863
  %4153 = vmatpush.msra.mxu0 %v3858
  %4154 = vmatpush.msra.mxu0 %v3853
  %4155 = vmatpush.msra.mxu0 %v3848
  %4156 = vmatmul.f32.gmra.mxu0 %v3934
  %v4157 = vpop.f32.mrf.mxu0
  %v4158 = vadd.f32 %v3943, %v4157
  %4159 = vmatmul.f32.gmra.mxu0 %v3936
  %v4160 = vpop.f32.mrf.mxu0
  %v4161 = vadd.f32 %v3948, %v4160
  %4162 = vdwg.mxu0
  %4163 = vmatpush.msra.mxu0 0.0
  %4164 = vmatpush.msra.mxu0 0.0
  %4165 = vmatpush.msra.mxu0 0.0
  %4166 = vmatpush.msra.mxu0 0.0
  %4167 = vmatpush.msra.mxu0 0.0
  %4168 = vmatpush.msra.mxu0 0.0
  %4169 = vmatpush.msra.mxu0 0.0
  %4170 = vmatpush.msra.mxu0 0.0
  %4171 = vmatpush.msra.mxu0 0.0
  %4172 = vmatpush.msra.mxu0 0.0
  %4173 = vmatpush.msra.mxu0 0.0
  %4174 = vmatpush.msra.mxu0 0.0
  %4175 = vmatpush.msra.mxu0 0.0
  %4176 = vmatpush.msra.mxu0 0.0
  %4177 = vmatpush.msra.mxu0 %v3933
  %4178 = vmatpush.msra.mxu0 %v3928
  %4179 = vmatmul.f32.gmra.mxu0 %v3951
  %v4180 = vpop.f32.mrf.mxu0
  %v4181 = vadd.f32 %v4158, %v4180
  %4182 = vmatmul.f32.gmra.mxu0 %v3954
  %v4183 = vpop.f32.mrf.mxu0
  %v4184 = vadd.f32 %v4161, %v4183
  %4185 = vdwg.mxu0
  %v4186 = vmul.f32 %v3997, %v1451
  %v4187 = vmul.f32 %v4043, %v1452
  %v4188 = vmul.f32 %v4089, %v1453
  %v4189 = vmul.f32 %v4135, %v1454
  %v4190 = vmul.f32 %v4181, %v1455
  %v4191 = vmul.f32 %v4000, %v1451
  %v4192 = vmul.f32 %v4046, %v1452
  %v4193 = vmul.f32 %v4092, %v1453
  %v4194 = vmul.f32 %v4138, %v1454
  %v4195 = vmul.f32 %v4184, %v1455
  %v4196 = vadd.f32 %v4186, %v4187
  %v4197 = vadd.f32 %v4196, %v4188
  %v4198 = vadd.f32 %v4197, %v4189
  %v4199 = vsel %vm1474, %v4190, 0.0
  %v4200 = vadd.f32 %v4198, %v4199
  %4201 = vadd.xlane.f32.xlu0 %v4200
  %v4202 = vpop.xlane.xlu0 %4201
  %v4203 = vadd.f32 %v4191, %v4192
  %v4204 = vadd.f32 %v4203, %v4193
  %v4205 = vadd.f32 %v4204, %v4194
  %v4206 = vsel %vm1474, %v4195, 0.0
  %v4207 = vadd.f32 %v4205, %v4206
  %4208 = vadd.xlane.f32.xlu0 %v4207
  %v4209 = vpop.xlane.xlu0 %4208
  %v4210 = vmul.f32 %v4186, %v3997
  %v4211 = vmul.f32 %v4187, %v4043
  %v4212 = vmul.f32 %v4188, %v4089
  %v4213 = vmul.f32 %v4189, %v4135
  %v4214 = vmul.f32 %v4190, %v4181
  %v4215 = vmul.f32 %v4191, %v4000
  %v4216 = vmul.f32 %v4192, %v4046
  %v4217 = vmul.f32 %v4193, %v4092
  %v4218 = vmul.f32 %v4194, %v4138
  %v4219 = vmul.f32 %v4195, %v4184
  %v4220 = vadd.f32 %v4210, %v4211
  %v4221 = vadd.f32 %v4220, %v4212
  %v4222 = vadd.f32 %v4221, %v4213
  %v4223 = vsel %vm1474, %v4214, 0.0
  %v4224 = vadd.f32 %v4222, %v4223
  %4225 = vadd.xlane.f32.xlu0 %v4224
  %v4226 = vpop.xlane.xlu0 %4225
  %v4227 = vadd.f32 %v4215, %v4216
  %v4228 = vadd.f32 %v4227, %v4217
  %v4229 = vadd.f32 %v4228, %v4218
  %v4230 = vsel %vm1474, %v4219, 0.0
  %v4231 = vadd.f32 %v4229, %v4230
  %4232 = vadd.xlane.f32.xlu0 %v4231
  %v4233 = vpop.xlane.xlu0 %4232
  %v4234 = vmul.f32 %v4202, 0.001953125
  %v4235 = vmul.f32 %v4209, 0.001953125
  %v4236 = vmul.f32 %v4226, 0.001953125
  %v4237 = vmul.f32 %v4233, 0.001953125
  %v4238 = vmul.f32 %v4234, %v4234
  %v4239 = vmul.f32 %v4235, %v4235
  %v4240 = vsub.f32 %v4236, %v4238
  %v4241 = vsub.f32 %v4237, %v4239
  %v4242 = vsub.f32 %v3997, %v4234
  %v4243 = vsub.f32 %v4043, %v4234
  %v4244 = vsub.f32 %v4089, %v4234
  %v4245 = vsub.f32 %v4135, %v4234
  %v4246 = vsub.f32 %v4181, %v4234
  %v4247 = vsub.f32 %v4000, %v4235
  %v4248 = vsub.f32 %v4046, %v4235
  %v4249 = vsub.f32 %v4092, %v4235
  %v4250 = vsub.f32 %v4138, %v4235
  %v4251 = vsub.f32 %v4184, %v4235
  %v4252 = vadd.f32 %v4240, 1e-05
  %v4253 = vadd.f32 %v4241, 1e-05
  %v4254 = vrsqrt.pop %v4252
  %v4255 = vmul.f32 %v4254, %v4252
  %v4256 = vmul.f32 %v4255, %v4254
  %v4257 = vmul.f32 0.5, %v4256
  %v4258 = vsub.f32 1.5, %v4257
  %v4259 = vmul.f32 %v4254, %v4258
  %vm4260 = vweird.f32 %v4252
  %vm4261 = vweird.f32 %v4254
  %vm4262 = vmor %vm4260, %vm4261
  %v4263 = vsel %vm4262, %v4254, %v4259
  %v4264 = vrsqrt.pop %v4253
  %v4265 = vmul.f32 %v4264, %v4253
  %v4266 = vmul.f32 %v4265, %v4264
  %v4267 = vmul.f32 0.5, %v4266
  %v4268 = vsub.f32 1.5, %v4267
  %v4269 = vmul.f32 %v4264, %v4268
  %vm4270 = vweird.f32 %v4253
  %vm4271 = vweird.f32 %v4264
  %vm4272 = vmor %vm4270, %vm4271
  %v4273 = vsel %vm4272, %v4264, %v4269
  %v4274 = vmul.f32 %v4242, %v4263
  %v4275 = vmul.f32 %v4243, %v4263
  %v4276 = vmul.f32 %v4244, %v4263
  %v4277 = vmul.f32 %v4245, %v4263
  %v4278 = vmul.f32 %v4246, %v4263
  %v4279 = vmul.f32 %v4247, %v4273
  %v4280 = vmul.f32 %v4248, %v4273
  %v4281 = vmul.f32 %v4249, %v4273
  %v4282 = vmul.f32 %v4250, %v4273
  %v4283 = vmul.f32 %v4251, %v4273
  %v4284 = vld [vmem:[%s10] sm:$0xff]
  %v4285 = vld [vmem:[%s10 + $0x8] sm:$0xff]
  %4287 = vset.pattern.permute.xlu0 0
  %4288 = vperm.xlu0 %4287, %v4284
  %v4289 = vpop.permute.xlu0 %4288
  %4292 = vset.pattern.permute.xlu0 0
  %4293 = vperm.xlu0 %4292, %v4285
  %v4294 = vpop.permute.xlu0 %4293
  %v4296 = vmul.f32 %v4274, %v4289
  %v4297 = vmul.f32 %v4275, %v4289
  %v4298 = vmul.f32 %v4276, %v4289
  %v4299 = vmul.f32 %v4277, %v4289
  %v4300 = vmul.f32 %v4278, %v4289
  %v4301 = vmul.f32 %v4279, %v4294
  %v4302 = vmul.f32 %v4280, %v4294
  %v4303 = vmul.f32 %v4281, %v4294
  %v4304 = vmul.f32 %v4282, %v4294
  %v4305 = vmul.f32 %v4283, %v4294
  %v4306 = vld [vmem:[%s13] sm:$0xff]
  %v4307 = vld [vmem:[%s13 + $0x8] sm:$0xff]
  %4309 = vset.pattern.permute.xlu0 0
  %4310 = vperm.xlu0 %4309, %v4306
  %v4311 = vpop.permute.xlu0 %4310
  %4314 = vset.pattern.permute.xlu0 0
  %4315 = vperm.xlu0 %4314, %v4307
  %v4316 = vpop.permute.xlu0 %4315
  %v4318 = vadd.f32 %v4296, %v4311
  %v4319 = vadd.f32 %v4297, %v4311
  %v4320 = vadd.f32 %v4298, %v4311
  %v4321 = vadd.f32 %v4299, %v4311
  %v4322 = vadd.f32 %v4300, %v4311
  %v4323 = vadd.f32 %v4301, %v4316
  %v4324 = vadd.f32 %v4302, %v4316
  %v4325 = vadd.f32 %v4303, %v4316
  %v4326 = vadd.f32 %v4304, %v4316
  %v4327 = vadd.f32 %v4305, %v4316
  %vm4328 = vcmp.gt.f32.partialorder %v4318, 0.0
  %vm4329 = vcmp.gt.f32.partialorder %v4319, 0.0
  %vm4330 = vcmp.gt.f32.partialorder %v4320, 0.0
  %vm4331 = vcmp.gt.f32.partialorder %v4321, 0.0
  %vm4332 = vcmp.gt.f32.partialorder %v4322, 0.0
  %vm4333 = vcmp.gt.f32.partialorder %v4323, 0.0
  %vm4334 = vcmp.gt.f32.partialorder %v4324, 0.0
  %vm4335 = vcmp.gt.f32.partialorder %v4325, 0.0
  %vm4336 = vcmp.gt.f32.partialorder %v4326, 0.0
  %vm4337 = vcmp.gt.f32.partialorder %v4327, 0.0
  %v4338 = vmul.f32 %v4318, 0.5
  %v4339 = vmul.f32 %v4319, 0.5
  %v4340 = vmul.f32 %v4320, 0.5
  %v4341 = vmul.f32 %v4321, 0.5
  %v4342 = vmul.f32 %v4322, 0.5
  %v4343 = vmul.f32 %v4323, 0.5
  %v4344 = vmul.f32 %v4324, 0.5
  %v4345 = vmul.f32 %v4325, 0.5
  %v4346 = vmul.f32 %v4326, 0.5
  %v4347 = vmul.f32 %v4327, 0.5
  %v4348 = vtanh.pop %v4338
  %v4349 = vtanh.pop %v4339
  %v4350 = vtanh.pop %v4340
  %v4351 = vtanh.pop %v4341
  %v4352 = vtanh.pop %v4342
  %v4353 = vtanh.pop %v4343
  %v4354 = vtanh.pop %v4344
  %v4355 = vtanh.pop %v4345
  %v4356 = vtanh.pop %v4346
  %v4357 = vtanh.pop %v4347
  %v4358 = vmul.f32 %v4318, 1.442695
  %v4359 = vpow.pop %v4358
  %v4360 = vmul.f32 %v4319, 1.442695
  %v4361 = vpow.pop %v4360
  %v4362 = vmul.f32 %v4320, 1.442695
  %v4363 = vpow.pop %v4362
  %v4364 = vmul.f32 %v4321, 1.442695
  %v4365 = vpow.pop %v4364
  %v4366 = vmul.f32 %v4322, 1.442695
  %v4367 = vpow.pop %v4366
  %v4368 = vmul.f32 %v4323, 1.442695
  %v4369 = vpow.pop %v4368
  %v4370 = vmul.f32 %v4324, 1.442695
  %v4371 = vpow.pop %v4370
  %v4372 = vmul.f32 %v4325, 1.442695
  %v4373 = vpow.pop %v4372
  %v4374 = vmul.f32 %v4326, 1.442695
  %v4375 = vpow.pop %v4374
  %v4376 = vmul.f32 %v4327, 1.442695
  %v4377 = vpow.pop %v4376
  %v4378 = vadd.f32 %v4359, 1.0
  %v4379 = vadd.f32 %v4361, 1.0
  %v4380 = vadd.f32 %v4363, 1.0
  %v4381 = vadd.f32 %v4365, 1.0
  %v4382 = vadd.f32 %v4367, 1.0
  %v4383 = vadd.f32 %v4369, 1.0
  %v4384 = vadd.f32 %v4371, 1.0
  %v4385 = vadd.f32 %v4373, 1.0
  %v4386 = vadd.f32 %v4375, 1.0
  %v4387 = vadd.f32 %v4377, 1.0
  %v4388 = vmul.f32 %v4348, %v4378
  %v4389 = vmul.f32 %v4349, %v4379
  %v4390 = vmul.f32 %v4350, %v4380
  %v4391 = vmul.f32 %v4351, %v4381
  %v4392 = vmul.f32 %v4352, %v4382
  %v4393 = vmul.f32 %v4353, %v4383
  %v4394 = vmul.f32 %v4354, %v4384
  %v4395 = vmul.f32 %v4355, %v4385
  %v4396 = vmul.f32 %v4356, %v4386
  %v4397 = vmul.f32 %v4357, %v4387
  %v4398 = vsel %vm4328, %v4318, %v4388
  %v4399 = vsel %vm4329, %v4319, %v4389
  %v4400 = vsel %vm4330, %v4320, %v4390
  %v4401 = vsel %vm4331, %v4321, %v4391
  %v4402 = vsel %vm4332, %v4322, %v4392
  %v4403 = vsel %vm4333, %v4323, %v4393
  %v4404 = vsel %vm4334, %v4324, %v4394
  %v4405 = vsel %vm4335, %v4325, %v4395
  %v4406 = vsel %vm4336, %v4326, %v4396
  %v4407 = vsel %vm4337, %v4327, %v4397
  %v4408 = vmul.f32 %v4398, %v1451
  %v4409 = vmul.f32 %v4399, %v1452
  %v4410 = vmul.f32 %v4400, %v1453
  %v4411 = vmul.f32 %v4401, %v1454
  %v4412 = vmul.f32 %v4402, %v1455
  %v4413 = vmul.f32 %v4403, %v1451
  %v4414 = vmul.f32 %v4404, %v1452
  %v4415 = vmul.f32 %v4405, %v1453
  %v4416 = vmul.f32 %v4406, %v1454
  %v4417 = vmul.f32 %v4407, %v1455
  %4424 = vrot.lane.b32.xlu0 %v4408, 42
  %v4425 = vpop.permute.xlu0 %4424
  %4426 = vrot.lane.b32.xlu0 %v4409, 42
  %v4427 = vpop.permute.xlu0 %4426
  %4428 = vrot.lane.b32.xlu0 %v4410, 42
  %v4429 = vpop.permute.xlu0 %4428
  %4430 = vrot.lane.b32.xlu0 %v4413, 42
  %v4431 = vpop.permute.xlu0 %4430
  %4432 = vrot.lane.b32.xlu0 %v4414, 42
  %v4433 = vpop.permute.xlu0 %4432
  %4434 = vrot.lane.b32.xlu0 %v4415, 42
  %v4435 = vpop.permute.xlu0 %4434
  %v4436 = vsel %vm47, %v4425, %v4427
  %v4437 = vsel %vm47, %v4427, %v4429
  %v4438 = vsel %vm47, %v4431, %v4433
  %v4439 = vsel %vm47, %v4433, %v4435
  %4446 = vst.msk [vmem:[%s14 + $0x80] sm:$0xff] %vm1722, %v4425
  %4447 = vst [vmem:[%s14 + $0x88] sm:$0xff] %v4436
  %4448 = vst.msk [vmem:[%s14 + $0x90] sm:$0xff] %vm1725, %v4437
  %4449 = vst.msk [vmem:[%s14 + $0xa0] sm:$0xff] %vm1722, %v4431
  %4450 = vst [vmem:[%s14 + $0xa8] sm:$0xff] %v4438
  %4451 = vst.msk [vmem:[%s14 + $0xb0] sm:$0xff] %vm1725, %v4439
  %4456 = vrot.lane.b32.xlu0 %v4410, 110
  %v4457 = vpop.permute.xlu0 %4456
  %4458 = vrot.lane.b32.xlu0 %v4411, 110
  %v4459 = vpop.permute.xlu0 %4458
  %4460 = vrot.lane.b32.xlu0 %v4412, 110
  %v4461 = vpop.permute.xlu0 %4460
  %4462 = vrot.lane.b32.xlu0 %v4415, 110
  %v4463 = vpop.permute.xlu0 %4462
  %4464 = vrot.lane.b32.xlu0 %v4416, 110
  %v4465 = vpop.permute.xlu0 %4464
  %4466 = vrot.lane.b32.xlu0 %v4417, 110
  %v4467 = vpop.permute.xlu0 %4466
  %v4468 = vsel %vm1746, %v4457, %v4459
  %v4469 = vsel %vm1746, %v4459, %v4461
  %v4470 = vsel %vm1746, %v4463, %v4465
  %v4471 = vsel %vm1746, %v4465, %v4467
  %4478 = vst.msk [vmem:[%s14 + $0x140] sm:$0xff] %vm1722, %v4468
  %4479 = vst [vmem:[%s14 + $0x148] sm:$0xff] %v4469
  %4480 = vst.msk [vmem:[%s14 + $0x150] sm:$0xff] %vm1725, %v4461
  %4481 = vst.msk [vmem:[%s14 + $0x160] sm:$0xff] %vm1722, %v4470
  %4482 = vst [vmem:[%s14 + $0x168] sm:$0xff] %v4471
  %4483 = vst.msk [vmem:[%s14 + $0x170] sm:$0xff] %vm1725, %v4467
  // Predicated region
  $region58: #{_lambda_.1} parent=0 // pred_check
    _
  $region59: #{_lambda_.1} parent=0 // pred_check_branch
    %4485 = sbr.rel (0) target = $region61
  $region60: #{_lambda_.1} parent=0 // pred_region
    _
  $region61: #{_lambda_.1} parent=0 // pred_fallthru
    _
  // Predicated region
  $region62: #{_lambda_.1} parent=0 // pred_check
    _
  $region63: #{_lambda_.1} parent=0 // pred_check_branch
    %4487 = sbr.rel (0) target = $region65
  $region64: #{_lambda_.1} parent=0 // pred_region
    _
  $region65: #{_lambda_.1} parent=0 // pred_fallthru
    _

</llo_original>
